<compile_context>
chip_gen: v7x
topology: tpu7x:2x2x1
jax: 0.10.0
libtpu: 0.0.40
codegen_flags: <defaults>
</compile_context>

<pallas_src>
import functools

import numpy as np

import jax
import jax.numpy as jnp
from jax.experimental import pallas as pl
from jax.experimental.pallas import tpu as pltpu

# ---- model hyper-parameters (synthetic, deterministic) ----------------------
NUM_TRACKS = 8
NUM_BOXES = 8
REID_DIM = 32
NODE_DIM = 32
EDGE_DIM = 16
EDGES_IN_DIM = 6       # 5 motion feats + 1 appearance feat
NUM_STEPS = 3

DATA_W = REID_DIM + 8  # [reid(32) | x1,y1,x2,y2 | t | pad(3)]


# -----------------------------------------------------------------------------
# Kernel: one grid step == one assignment problem.
# -----------------------------------------------------------------------------
def _assignment_kernel(const_ref, data_ref, out_ref, *, layout, T, B, R, num_steps):
    f32 = jnp.float32
    TB = T * B
    relu = jax.nn.relu

    def cst(name):
        off, h, w = layout[name]
        return const_ref[off:off + h, :w]

    def mm(a, b):
        return jnp.dot(a, b, preferred_element_type=f32)

    # ---- packed constants (weights / biases / 0-1 selectors) -----------------
    R_ab = cst("R_ab")                    # (TB, T+B) = [R_a | R_b]
    S = cst("S")                          # (T+B, TB): bipartite sum selector
    cnn_w, cnn_b = cst("cnn_w"), cst("cnn_b")
    ein_w1, ein_b1 = cst("ein_w1"), cst("ein_b1")
    ein_w2, ein_b2 = cst("ein_w2"), cst("ein_b2")
    em_w1a, em_w1b = cst("em_w1a"), cst("em_w1b")
    em_w1e, em_w1i = cst("em_w1e"), cst("em_w1i")
    em_b1, em_w2, em_b2 = cst("em_b1"), cst("em_w2"), cst("em_b2")
    nm_w1n, nm_w1e, nm_b1 = cst("nm_w1n"), cst("nm_w1e"), cst("nm_b1")
    nm_w2, nm_b2 = cst("nm_w2"), cst("nm_b2")
    cl_w1, cl_b1 = cst("cl_w1"), cst("cl_b1")
    cl_w2t, cl_b2 = cst("cl_w2t"), cst("cl_b2")

    # ---- packed per-node data (rows 0..T-1 = tracks, T..T+B-1 = boxes) -------
    app_all = data_ref[:, 0:R]            # (T+B, R) reid embeddings
    meta = data_ref[:, R:R + 8]           # (T+B, 8): x1, y1, x2, y2, t, pad

    # ---- cosine distance (1 - cos sim), one value per (track, box) edge ------
    nrm = jnp.sqrt(jnp.sum(app_all * app_all, axis=1, keepdims=True))
    app_n = app_all * pl.reciprocal(jnp.maximum(nrm, 1e-8), approx=True)
    a_exp = mm(R_ab[:, :T], app_n[:T])    # (TB, R) track reid per edge row
    b_exp = mm(R_ab[:, T:], app_n[T:])    # (TB, R) box reid per edge row
    app_dist = 1.0 - jnp.sum(a_exp * b_exp, axis=1, keepdims=True)   # (TB, 1)

    # ---- motion features: signed per-node panel -> ONE selector matmul -------
    x1, y1 = meta[:, 0:1], meta[:, 1:2]
    x2, y2 = meta[:, 2:3], meta[:, 3:4]
    ts = meta[:, 4:5]
    hh, ww = y2 - y1, x2 - x1
    cx = x1 + jnp.floor(ww * 0.5)         # reference uses floor division
    cy = y1 + jnp.floor(hh * 0.5)
    node_i = jax.lax.broadcasted_iota(jnp.int32, (T + B, 1), 0)
    sgn = jnp.where(node_i < T, -1.0, 1.0)            # tracks -, boxes +
    lane_p = jax.lax.broadcasted_iota(jnp.int32, (T + B, 6), 1)
    panel = (jnp.where(lane_p == 0, sgn * cx, 0.0)
             + jnp.where(lane_p == 1, sgn * cy, 0.0)
             + jnp.where(lane_p == 2, -sgn * jnp.log(hh), 0.0)
             + jnp.where(lane_p == 3, -sgn * jnp.log(ww), 0.0)
             + jnp.where(lane_p == 4, sgn * ts, 0.0)
             + jnp.where(lane_p == 5, hh, 0.0))        # (T+B, 6)
    # per edge row e = t*B + b: [x_dist, y_dist, log(th/ch), log(tw/cw), dt, th+ch]
    M = mm(R_ab, panel)                                # (TB, 6)
    inv_den = pl.reciprocal(M[:, 5:6], approx=True)
    lane_e = jax.lax.broadcasted_iota(jnp.int32, (TB, 6), 1)
    feats = jnp.where(lane_e < 2, (2.0 * inv_den) * M, M)
    feats = jnp.where(lane_e == 5, app_dist, feats)    # (TB, 6) edge_feats

    # ---- edge_in_mlp (dropout p=0 -> identity) -------------------------------
    h1 = relu(mm(feats, ein_w1) + ein_b1)
    edge0 = relu(mm(h1, ein_w2) + ein_b2)              # initial edge embeds (TB, E)

    # ---- initial node embeds: relu(cnn_linear(reid)), tracks + boxes fused ---
    nodes = relu(mm(app_all, cnn_w) + cnn_b)           # (T+B, N)

    # ---- hoisted loop invariants ----------------------------------------------
    init_term = mm(edge0, em_w1i) + em_b1              # step-invariant edge-MLP term
    mask_a = jnp.where(node_i < T, 1.0, 0.0)           # (T+B, 1) track-row mask

    # ---- neural message passing steps -----------------------------------------
    edge = edge0
    for step in range(num_steps):
        # edge update: cat([nodes_a, nodes_b, edge, initial]) @ W1 realized as
        # partial-sum matmuls on a row-stacked per-side operand (no concats).
        na = nodes * mask_a
        pab = mm(na, em_w1a) + mm(nodes - na, em_w1b)              # (T+B, E)
        pre1 = mm(R_ab, pab) + mm(edge, em_w1e) + init_term        # (TB, E)
        edge = relu(mm(relu(pre1), em_w2) + em_b2)                 # (TB, E)

        # node update: both bipartite sum-reductions via one selector matmul.
        sums = mm(S, edge)                                         # (T+B, E)
        npre = mm(nodes, nm_w1n) + mm(sums, nm_w1e) + nm_b1
        nodes = relu(mm(relu(npre), nm_w2) + nm_b2)                # (T+B, N)

        # classifier + sigmoid; logits produced directly as a lane-dense row.
        ch = relu(mm(edge, cl_w1) + cl_b1)                         # (TB, E)
        logits = jax.lax.dot_general(
            cl_w2t, ch, (((1,), (1,)), ((), ())),
            preferred_element_type=f32) + cl_b2                    # (1, TB)
        out_ref[step:step + 1, :] = jax.nn.sigmoid(logits)


# -----------------------------------------------------------------------------
# Wrapper-side packing (free XLA plumbing / host constants).
# -----------------------------------------------------------------------------
def _build_selectors(T, B):
    e = np.arange(T * B)
    r_a = (e[:, None] // B == np.arange(T)[None, :]).astype(np.float32)
    r_b = (e[:, None] % B == np.arange(B)[None, :]).astype(np.float32)
    r_ab = np.concatenate([r_a, r_b], axis=1)          # (TB, T+B)
    return jnp.asarray(r_ab), jnp.asarray(r_ab.T)      # R_ab, S


def _pack_const(params, T, B):
    (cnn_w, cnn_b, ein_w1, ein_b1, ein_w2, ein_b2,
     em_w1, em_b1, em_w2, em_b2,
     nm_w1, nm_b1, nm_w2, nm_b2,
     cl_w1, cl_b1, cl_w2, cl_b2) = params
    N = cnn_w.shape[1]
    E = em_w1.shape[1]
    R_ab, S = _build_selectors(T, B)
    entries = [
        ("R_ab", R_ab), ("S", S),
        ("cnn_w", cnn_w), ("cnn_b", cnn_b),
        ("ein_w1", ein_w1), ("ein_b1", ein_b1), ("ein_w2", ein_w2), ("ein_b2", ein_b2),
        # edge_mlp[0] input order: [nodes_a, nodes_b, edge, initial_edge]
        ("em_w1a", em_w1[:N]), ("em_w1b", em_w1[N:2 * N]),
        ("em_w1e", em_w1[2 * N:2 * N + E]), ("em_w1i", em_w1[2 * N + E:]),
        ("em_b1", em_b1), ("em_w2", em_w2), ("em_b2", em_b2),
        # node_mlp[0] input order: [node_embed, edge_sum]
        ("nm_w1n", nm_w1[:N]), ("nm_w1e", nm_w1[N:]), ("nm_b1", nm_b1),
        ("nm_w2", nm_w2), ("nm_b2", nm_b2),
        ("cl_w1", cl_w1), ("cl_b1", cl_b1),
        ("cl_w2t", cl_w2.T), ("cl_b2", cl_b2.reshape(1, 1)),
    ]
    width = max(int(a.shape[1]) for _, a in entries)
    parts, layout, row = [], {}, 0
    for name, a in entries:
        a = jnp.asarray(a, jnp.float32)
        h, w = int(a.shape[0]), int(a.shape[1])
        ph = ((h + 7) // 8) * 8                        # 8-sublane aligned segments
        parts.append(jnp.pad(a, ((0, ph - h), (0, width - w))))
        layout[name] = (row, h, w)
        row += ph
    return jnp.concatenate(parts, axis=0), layout


def _pack_data(track_app, current_app, track_coords, current_coords, track_t, curr_t):
    # Works for unbatched (T, ...) or batched (P, T, ...) inputs.
    t_t = track_t[..., None].astype(jnp.float32)
    c_t = curr_t[..., None].astype(jnp.float32)
    pad_t = jnp.zeros(track_app.shape[:-1] + (3,), jnp.float32)
    pad_b = jnp.zeros(current_app.shape[:-1] + (3,), jnp.float32)
    top = jnp.concatenate([track_app, track_coords, t_t, pad_t], axis=-1)
    bot = jnp.concatenate([current_app, current_coords, c_t, pad_b], axis=-1)
    return jnp.concatenate([top, bot], axis=-2).astype(jnp.float32)


def _run(const, layout, data, T, B, R, num_steps):
    P = data.shape[0]
    TB = T * B
    rows, width = const.shape
    kernel = functools.partial(_assignment_kernel, layout=layout, T=T, B=B, R=R,
                               num_steps=num_steps)
    out = pl.pallas_call(
        kernel,
        out_shape=jax.ShapeDtypeStruct((P, num_steps, TB), jnp.float32),
        grid=(P,),
        in_specs=[
            # constants slab: same block for every problem -> stays resident.
            pl.BlockSpec((rows, width), lambda p: (0, 0)),
            # per-problem data slab.
            pl.BlockSpec((None, T + B, DATA_W), lambda p: (p, 0, 0)),
        ],
        out_specs=pl.BlockSpec((None, num_steps, TB), lambda p: (p, 0, 0)),
        compiler_params=pltpu.CompilerParams(dimension_semantics=("parallel",)),
    )(const, data)
    return out.reshape(P, num_steps, T, B)


# -----------------------------------------------------------------------------
# Public entry points.
# -----------------------------------------------------------------------------
@functools.partial(jax.jit, static_argnames=("num_steps",))
def assignment_similarity_net(track_app, current_app, track_coords,
                              current_coords, track_t, curr_t, params,
                              num_steps=NUM_STEPS):
    T, R = track_app.shape
    B = current_app.shape[0]
    const, layout = _pack_const(params, T, B)
    data = _pack_data(track_app, current_app, track_coords, current_coords,
                      track_t, curr_t)[None]           # batch of 1
    return _run(const, layout, data, T, B, R, num_steps)[0]


@functools.partial(jax.jit, static_argnames=("num_steps",))
def assignment_similarity_net_batched(track_app, current_app, track_coords,
                                      current_coords, track_t, curr_t, params,
                                      num_steps=NUM_STEPS):
    # Many independent (track-set, box-set) assignment problems behind one
    # pallas_call with a parallel grid axis (uses v7x's second TensorCore,
    # amortizes fixed call/DMA overhead everywhere).
    _, T, R = track_app.shape
    B = current_app.shape[1]
    const, layout = _pack_const(params, T, B)
    data = _pack_data(track_app, current_app, track_coords, current_coords,
                      track_t, curr_t)
    return _run(const, layout, data, T, B, R, num_steps)


# -----------------------------------------------------------------------------
# Parameter init (deterministic, synthetic) and a pure-JAX reference.
# -----------------------------------------------------------------------------
def init_params(key):
    def lin(k, fan_in, fan_out):
        kw, kb = jax.random.split(k)
        w = jax.random.normal(kw, (fan_in, fan_out), jnp.float32) / jnp.sqrt(
            jnp.float32(fan_in))
        b = jax.random.normal(kb, (1, fan_out), jnp.float32) * 0.01
        return [w, b]

    ks = jax.random.split(key, 9)
    params = []
    params += lin(ks[0], REID_DIM, NODE_DIM)                       # cnn_linear
    params += lin(ks[1], EDGES_IN_DIM, EDGE_DIM)                   # edge_in_mlp[0]
    params += lin(ks[2], EDGE_DIM, EDGE_DIM)                       # edge_in_mlp[3]
    params += lin(ks[3], 2 * NODE_DIM + 2 * EDGE_DIM, EDGE_DIM)    # edge_mlp[0]
    params += lin(ks[4], EDGE_DIM, EDGE_DIM)                       # edge_mlp[3]
    params += lin(ks[5], NODE_DIM + EDGE_DIM, NODE_DIM)            # node_mlp[0]
    params += lin(ks[6], NODE_DIM, NODE_DIM)                       # node_mlp[3]
    params += lin(ks[7], EDGE_DIM, EDGE_DIM)                       # classifier[0]
    params += lin(ks[8], EDGE_DIM, 1)                              # classifier[2]
    return params


def _reference_forward(track_app, current_app, track_coords, current_coords,
                       track_t, curr_t, params, num_steps):
    (cnn_w, cnn_b, ein_w1, ein_b1, ein_w2, ein_b2,
     em_w1, em_b1, em_w2, em_b2,
     nm_w1, nm_b1, nm_w2, nm_b2,
     cl_w1, cl_b1, cl_w2, cl_b2) = params
    relu = jax.nn.relu
    T, B = track_app.shape[0], current_app.shape[0]
    a = track_app / jnp.maximum(jnp.linalg.norm(track_app, axis=1, keepdims=True), 1e-8)
    b = current_app / jnp.maximum(jnp.linalg.norm(current_app, axis=1, keepdims=True), 1e-8)
    app = 1.0 - a @ b.T
    th = track_coords[:, 3] - track_coords[:, 1]
    tw = track_coords[:, 2] - track_coords[:, 0]
    ch = current_coords[:, 3] - current_coords[:, 1]
    cw = current_coords[:, 2] - current_coords[:, 0]
    xd = (current_coords[:, 0] + jnp.floor(cw / 2))[None, :] - (
        track_coords[:, 0] + jnp.floor(tw / 2))[:, None]
    yd = (current_coords[:, 1] + jnp.floor(ch / 2))[None, :] - (
        track_coords[:, 1] + jnp.floor(th / 2))[:, None]
    den = th[:, None] + ch[None, :]
    feats = jnp.stack([2 * xd / den, 2 * yd / den,
                       jnp.log(th[:, None] / ch[None, :]),
                       jnp.log(tw[:, None] / cw[None, :]),
                       curr_t[None, :] - track_t[:, None], app], axis=-1)
    edge = relu(relu(feats @ ein_w1 + ein_b1) @ ein_w2 + ein_b2)
    init = edge
    na = relu(track_app @ cnn_w + cnn_b)
    nb = relu(current_app @ cnn_w + cnn_b)
    outs = []
    for _ in range(num_steps):
        e_in = jnp.concatenate(
            [jnp.broadcast_to(na[:, None, :], (T, B, na.shape[1])),
             jnp.broadcast_to(nb[None, :, :], (T, B, nb.shape[1])), edge, init], axis=-1)
        edge = relu(relu(e_in @ em_w1 + em_b1) @ em_w2 + em_b2)
        a_in = jnp.concatenate([na, edge.sum(axis=1)], axis=-1)
        b_in = jnp.concatenate([nb, edge.sum(axis=0)], axis=-1)
        na = relu(relu(a_in @ nm_w1 + nm_b1) @ nm_w2 + nm_b2)
        nb = relu(relu(b_in @ nm_w1 + nm_b1) @ nm_w2 + nm_b2)
        outs.append((relu(edge @ cl_w1 + cl_b1) @ cl_w2 + cl_b2)[..., 0])
    return jax.nn.sigmoid(jnp.stack(outs))


if __name__ == "__main__":
    key = jax.random.PRNGKey(0)
    k_par, k_ta, k_ca, k_tc, k_cc, k_b = jax.random.split(key, 6)

    params = init_params(k_par)

    # TODO(synk): reid_network backbone is never called in forward() (reid
    # embeddings are given as inputs), so it is not implemented here.
    track_app = jax.random.normal(k_ta, (NUM_TRACKS, REID_DIM), jnp.float32)
    current_app = jax.random.normal(k_ca, (NUM_BOXES, REID_DIM), jnp.float32)

    def make_boxes(k, n):
        k1, k2 = jax.random.split(k)
        tl = jax.random.uniform(k1, (n, 2), jnp.float32, 0.0, 100.0)
        wh = jax.random.uniform(k2, (n, 2), jnp.float32, 10.0, 50.0)
        return jnp.concatenate([tl, tl + wh], axis=1)       # (n, 4): x1,y1,x2,y2

    track_coords = make_boxes(k_tc, NUM_TRACKS)
    current_coords = make_boxes(k_cc, NUM_BOXES)
    track_t = jnp.arange(NUM_TRACKS, dtype=jnp.float32)
    curr_t = jnp.full((NUM_BOXES,), float(NUM_TRACKS), jnp.float32)

    # single-problem forward (module semantics)
    sim = assignment_similarity_net(track_app, current_app, track_coords,
                                    current_coords, track_t, curr_t, params,
                                    num_steps=NUM_STEPS)
    sim = jax.block_until_ready(sim)
    assert sim.shape == (NUM_STEPS, NUM_TRACKS, NUM_BOXES)
    assert bool(jnp.all(jnp.isfinite(sim)))
    assert bool(jnp.all((sim > 0.0) & (sim < 1.0)))

    # pure-JAX reference check (loose tolerance: kernel uses approx reciprocals)
    ref = _reference_forward(track_app, current_app, track_coords, current_coords,
                             track_t, curr_t, params, NUM_STEPS)
    assert float(jnp.max(jnp.abs(sim - ref))) < 5e-2

    # batched demo: 4 independent assignment problems through one parallel grid
    Pb = 4
    ks = jax.random.split(k_b, 4)
    b_ta = jax.random.normal(ks[0], (Pb, NUM_TRACKS, REID_DIM), jnp.float32)
    b_ca = jax.random.normal(ks[1], (Pb, NUM_BOXES, REID_DIM), jnp.float32)
    b_tc = jnp.stack([make_boxes(k, NUM_TRACKS) for k in jax.random.split(ks[2], Pb)])
    b_cc = jnp.stack([make_boxes(k, NUM_BOXES) for k in jax.random.split(ks[3], Pb)])
    b_tt = jnp.broadcast_to(track_t, (Pb, NUM_TRACKS))
    b_ct = jnp.broadcast_to(curr_t, (Pb, NUM_BOXES))
    sim_b = assignment_similarity_net_batched(b_ta, b_ca, b_tc, b_cc, b_tt, b_ct,
                                              params, num_steps=NUM_STEPS)
    sim_b = jax.block_until_ready(sim_b)
    assert sim_b.shape == (Pb, NUM_STEPS, NUM_TRACKS, NUM_BOXES)
    assert bool(jnp.all(jnp.isfinite(sim_b)))
    # batched path must agree with the single-problem path
    sim0 = assignment_similarity_net(b_ta[0], b_ca[0], b_tc[0], b_cc[0],
                                     b_tt[0], b_ct[0], params, num_steps=NUM_STEPS)
    assert float(jnp.max(jnp.abs(sim_b[0] - sim0))) < 1e-5

    print("KERNEL_OK")
</pallas_src>

<mosaic_0001>
module attributes {stable_mosaic.version = 11 : i64} {
  func.func @_assignment_kernel(%arg0: i32, %arg1: memref<424x64xf32, #tpu.memory_space<vmem>>, %arg2: memref<1x16x40xf32, #tpu.memory_space<vmem>>, %arg3: memref<1x3x64xf32, #tpu.memory_space<vmem>>) attributes {dimension_semantics = [#tpu.dimension_semantics<parallel>], iteration_bounds = array<i64: 1>, scalar_prefetch = 0 : i64, scratch_operands = 0 : i64, tpu.core_type = #tpu.core_type<tc>, window_params = [{pipeline_mode = #tpu.pipeline_mode<synchronous>, transform_indices = @transform_0, window_bounds = array<i64: 424, 64>}, {transform_indices = @transform_1, window_bounds = array<i64: 1, 16, 40>}, {transform_indices = @transform_2, window_bounds = array<i64: 1, 3, 64>}]} {
    %c0 = arith.constant 0 : index
    %c0_0 = arith.constant 0 : index
    %0 = vector.load %arg1[%c0, %c0_0] : memref<424x64xf32, #tpu.memory_space<vmem>>, vector<64x16xf32>
    %c64 = arith.constant 64 : index
    %c0_1 = arith.constant 0 : index
    %1 = vector.load %arg1[%c64, %c0_1] : memref<424x64xf32, #tpu.memory_space<vmem>>, vector<16x64xf32>
    %c80 = arith.constant 80 : index
    %c0_2 = arith.constant 0 : index
    %2 = vector.load %arg1[%c80, %c0_2] : memref<424x64xf32, #tpu.memory_space<vmem>>, vector<32x32xf32>
    %c112 = arith.constant 112 : index
    %c0_3 = arith.constant 0 : index
    %3 = vector.load %arg1[%c112, %c0_3] : memref<424x64xf32, #tpu.memory_space<vmem>>, vector<1x32xf32>
    %c120 = arith.constant 120 : index
    %c0_4 = arith.constant 0 : index
    %4 = vector.load %arg1[%c120, %c0_4] : memref<424x64xf32, #tpu.memory_space<vmem>>, vector<6x16xf32>
    %c128 = arith.constant 128 : index
    %c0_5 = arith.constant 0 : index
    %5 = vector.load %arg1[%c128, %c0_5] : memref<424x64xf32, #tpu.memory_space<vmem>>, vector<1x16xf32>
    %c136 = arith.constant 136 : index
    %c0_6 = arith.constant 0 : index
    %6 = vector.load %arg1[%c136, %c0_6] : memref<424x64xf32, #tpu.memory_space<vmem>>, vector<16x16xf32>
    %c152 = arith.constant 152 : index
    %c0_7 = arith.constant 0 : index
    %7 = vector.load %arg1[%c152, %c0_7] : memref<424x64xf32, #tpu.memory_space<vmem>>, vector<1x16xf32>
    %c160 = arith.constant 160 : index
    %c0_8 = arith.constant 0 : index
    %8 = vector.load %arg1[%c160, %c0_8] : memref<424x64xf32, #tpu.memory_space<vmem>>, vector<32x16xf32>
    %c192 = arith.constant 192 : index
    %c0_9 = arith.constant 0 : index
    %9 = vector.load %arg1[%c192, %c0_9] : memref<424x64xf32, #tpu.memory_space<vmem>>, vector<32x16xf32>
    %c224 = arith.constant 224 : index
    %c0_10 = arith.constant 0 : index
    %10 = vector.load %arg1[%c224, %c0_10] : memref<424x64xf32, #tpu.memory_space<vmem>>, vector<16x16xf32>
    %c240 = arith.constant 240 : index
    %c0_11 = arith.constant 0 : index
    %11 = vector.load %arg1[%c240, %c0_11] : memref<424x64xf32, #tpu.memory_space<vmem>>, vector<16x16xf32>
    %c256 = arith.constant 256 : index
    %c0_12 = arith.constant 0 : index
    %12 = vector.load %arg1[%c256, %c0_12] : memref<424x64xf32, #tpu.memory_space<vmem>>, vector<1x16xf32>
    %c264 = arith.constant 264 : index
    %c0_13 = arith.constant 0 : index
    %13 = vector.load %arg1[%c264, %c0_13] : memref<424x64xf32, #tpu.memory_space<vmem>>, vector<16x16xf32>
    %c280 = arith.constant 280 : index
    %c0_14 = arith.constant 0 : index
    %14 = vector.load %arg1[%c280, %c0_14] : memref<424x64xf32, #tpu.memory_space<vmem>>, vector<1x16xf32>
    %c288 = arith.constant 288 : index
    %c0_15 = arith.constant 0 : index
    %15 = vector.load %arg1[%c288, %c0_15] : memref<424x64xf32, #tpu.memory_space<vmem>>, vector<32x32xf32>
    %c320 = arith.constant 320 : index
    %c0_16 = arith.constant 0 : index
    %16 = vector.load %arg1[%c320, %c0_16] : memref<424x64xf32, #tpu.memory_space<vmem>>, vector<16x32xf32>
    %c336 = arith.constant 336 : index
    %c0_17 = arith.constant 0 : index
    %17 = vector.load %arg1[%c336, %c0_17] : memref<424x64xf32, #tpu.memory_space<vmem>>, vector<1x32xf32>
    %c344 = arith.constant 344 : index
    %c0_18 = arith.constant 0 : index
    %18 = vector.load %arg1[%c344, %c0_18] : memref<424x64xf32, #tpu.memory_space<vmem>>, vector<32x32xf32>
    %c376 = arith.constant 376 : index
    %c0_19 = arith.constant 0 : index
    %19 = vector.load %arg1[%c376, %c0_19] : memref<424x64xf32, #tpu.memory_space<vmem>>, vector<1x32xf32>
    %c384 = arith.constant 384 : index
    %c0_20 = arith.constant 0 : index
    %20 = vector.load %arg1[%c384, %c0_20] : memref<424x64xf32, #tpu.memory_space<vmem>>, vector<16x16xf32>
    %c400 = arith.constant 400 : index
    %c0_21 = arith.constant 0 : index
    %21 = vector.load %arg1[%c400, %c0_21] : memref<424x64xf32, #tpu.memory_space<vmem>>, vector<1x16xf32>
    %c408 = arith.constant 408 : index
    %c0_22 = arith.constant 0 : index
    %22 = vector.load %arg1[%c408, %c0_22] : memref<424x64xf32, #tpu.memory_space<vmem>>, vector<1x16xf32>
    %c416 = arith.constant 416 : index
    %c0_23 = arith.constant 0 : index
    %23 = vector.load %arg1[%c416, %c0_23] : memref<424x64xf32, #tpu.memory_space<vmem>>, vector<1x1xf32>
    %c0_24 = arith.constant 0 : index
    %c0_25 = arith.constant 0 : index
    %c0_26 = arith.constant 0 : index
    %24 = vector.load %arg2[%c0_24, %c0_25, %c0_26] : memref<1x16x40xf32, #tpu.memory_space<vmem>>, vector<1x16x32xf32>
    %25 = vector.shape_cast %24 : vector<1x16x32xf32> to vector<16x32xf32>
    %c0_27 = arith.constant 0 : index
    %c0_28 = arith.constant 0 : index
    %c32 = arith.constant 32 : index
    %26 = vector.load %arg2[%c0_27, %c0_28, %c32] : memref<1x16x40xf32, #tpu.memory_space<vmem>>, vector<1x16x8xf32>
    %27 = vector.shape_cast %26 : vector<1x16x8xf32> to vector<16x8xf32>
    %28 = arith.mulf %25, %25 : vector<16x32xf32>
    %cst = arith.constant dense<0.000000e+00> : vector<16xf32>
    %29 = vector.multi_reduction <add>, %28, %cst [1] : vector<16x32xf32> to vector<16xf32>
    %30 = vector.shape_cast %29 : vector<16xf32> to vector<16x1xf32>
    %31 = math.sqrt %30 : vector<16x1xf32>
    %cst_29 = arith.constant 9.99999993E-9 : f32
    %32 = vector.broadcast %cst_29 : f32 to vector<16x1xf32>
    %33 = arith.maximumf %31, %32 : vector<16x1xf32>
    %34 = tpu.reciprocal %33 {approx = true} : vector<16x1xf32> -> vector<16x1xf32>
    %35 = vector.broadcast %34 : vector<16x1xf32> to vector<16x32xf32>
    %36 = arith.mulf %25, %35 : vector<16x32xf32>
    %37 = vector.extract_strided_slice %0 {offsets = [0, 0], sizes = [64, 8], strides = [1, 1]} : vector<64x16xf32> to vector<64x8xf32>
    %38 = vector.extract_strided_slice %36 {offsets = [0, 0], sizes = [8, 32], strides = [1, 1]} : vector<16x32xf32> to vector<8x32xf32>
    %cst_30 = arith.constant dense<0.000000e+00> : vector<64x32xf32>
    %39 = tpu.matmul %37, %38, %cst_30 {dimension_numbers = #tpu.dot_dimension_numbers<[1], [0], [0], [1], [0, 0, 1, 1], [], []>} : vector<64x8xf32>, vector<8x32xf32>, vector<64x32xf32> -> vector<64x32xf32>
    %40 = vector.extract_strided_slice %0 {offsets = [0, 8], sizes = [64, 8], strides = [1, 1]} : vector<64x16xf32> to vector<64x8xf32>
    %41 = vector.extract_strided_slice %36 {offsets = [8, 0], sizes = [8, 32], strides = [1, 1]} : vector<16x32xf32> to vector<8x32xf32>
    %cst_31 = arith.constant dense<0.000000e+00> : vector<64x32xf32>
    %42 = tpu.matmul %40, %41, %cst_31 {dimension_numbers = #tpu.dot_dimension_numbers<[1], [0], [0], [1], [0, 0, 1, 1], [], []>} : vector<64x8xf32>, vector<8x32xf32>, vector<64x32xf32> -> vector<64x32xf32>
    %43 = arith.mulf %39, %42 : vector<64x32xf32>
    %cst_32 = arith.constant dense<0.000000e+00> : vector<64xf32>
    %44 = vector.multi_reduction <add>, %43, %cst_32 [1] : vector<64x32xf32> to vector<64xf32>
    %45 = vector.shape_cast %44 : vector<64xf32> to vector<64x1xf32>
    %cst_33 = arith.constant 1.000000e+00 : f32
    %46 = vector.broadcast %cst_33 : f32 to vector<64x1xf32>
    %47 = arith.subf %46, %45 : vector<64x1xf32>
    %48 = vector.extract_strided_slice %27 {offsets = [0, 0], sizes = [16, 1], strides = [1, 1]} : vector<16x8xf32> to vector<16x1xf32>
    %49 = vector.extract_strided_slice %27 {offsets = [0, 1], sizes = [16, 1], strides = [1, 1]} : vector<16x8xf32> to vector<16x1xf32>
    %50 = vector.extract_strided_slice %27 {offsets = [0, 2], sizes = [16, 1], strides = [1, 1]} : vector<16x8xf32> to vector<16x1xf32>
    %51 = vector.extract_strided_slice %27 {offsets = [0, 3], sizes = [16, 1], strides = [1, 1]} : vector<16x8xf32> to vector<16x1xf32>
    %52 = vector.extract_strided_slice %27 {offsets = [0, 4], sizes = [16, 1], strides = [1, 1]} : vector<16x8xf32> to vector<16x1xf32>
    %53 = arith.subf %51, %49 : vector<16x1xf32>
    %54 = arith.subf %50, %48 : vector<16x1xf32>
    %cst_34 = arith.constant 5.000000e-01 : f32
    %55 = vector.broadcast %cst_34 : f32 to vector<16x1xf32>
    %56 = arith.mulf %54, %55 : vector<16x1xf32>
    %57 = math.floor %56 : vector<16x1xf32>
    %58 = arith.addf %48, %57 : vector<16x1xf32>
    %cst_35 = arith.constant 5.000000e-01 : f32
    %59 = vector.broadcast %cst_35 : f32 to vector<16x1xf32>
    %60 = arith.mulf %53, %59 : vector<16x1xf32>
    %61 = math.floor %60 : vector<16x1xf32>
    %62 = arith.addf %49, %61 : vector<16x1xf32>
    %63 = tpu.iota {dimensions = array<i32: 0>} : vector<16x1xi32>
    %c8_i32 = arith.constant 8 : i32
    %64 = vector.broadcast %c8_i32 : i32 to vector<16x1xi32>
    %65 = arith.cmpi slt, %63, %64 : vector<16x1xi32>
    %cst_36 = arith.constant -1.000000e+00 : f32
    %cst_37 = arith.constant 1.000000e+00 : f32
    %66 = vector.broadcast %cst_36 : f32 to vector<16x1xf32>
    %67 = vector.broadcast %cst_37 : f32 to vector<16x1xf32>
    %68 = arith.select %65, %66, %67 : vector<16x1xi1>, vector<16x1xf32>
    %69 = tpu.iota {dimensions = array<i32: 1>} : vector<16x6xi32>
    %c0_i32 = arith.constant 0 : i32
    %70 = vector.broadcast %c0_i32 : i32 to vector<16x6xi32>
    %71 = arith.cmpi eq, %69, %70 : vector<16x6xi32>
    %72 = arith.mulf %68, %58 : vector<16x1xf32>
    %cst_38 = arith.constant 0.000000e+00 : f32
    %73 = vector.shape_cast %72 : vector<16x1xf32> to vector<16x1xf32>
    %74 = vector.broadcast %73 : vector<16x1xf32> to vector<16x6xf32>
    %75 = vector.broadcast %cst_38 : f32 to vector<16x6xf32>
    %76 = arith.select %71, %74, %75 : vector<16x6xi1>, vector<16x6xf32>
    %c1_i32 = arith.constant 1 : i32
    %77 = vector.broadcast %c1_i32 : i32 to vector<16x6xi32>
    %78 = arith.cmpi eq, %69, %77 : vector<16x6xi32>
    %79 = arith.mulf %68, %62 : vector<16x1xf32>
    %cst_39 = arith.constant 0.000000e+00 : f32
    %80 = vector.shape_cast %79 : vector<16x1xf32> to vector<16x1xf32>
    %81 = vector.broadcast %80 : vector<16x1xf32> to vector<16x6xf32>
    %82 = vector.broadcast %cst_39 : f32 to vector<16x6xf32>
    %83 = arith.select %78, %81, %82 : vector<16x6xi1>, vector<16x6xf32>
    %84 = arith.addf %76, %83 : vector<16x6xf32>
    %c2_i32 = arith.constant 2 : i32
    %85 = vector.broadcast %c2_i32 : i32 to vector<16x6xi32>
    %86 = arith.cmpi eq, %69, %85 : vector<16x6xi32>
    %cst_40 = arith.constant 0.000000e+00 : f32
    %87 = vector.broadcast %cst_40 : f32 to vector<16x1xf32>
    %88 = arith.subf %87, %68 : vector<16x1xf32>
    %89 = math.log %53 : vector<16x1xf32>
    %90 = arith.mulf %88, %89 : vector<16x1xf32>
    %cst_41 = arith.constant 0.000000e+00 : f32
    %91 = vector.shape_cast %90 : vector<16x1xf32> to vector<16x1xf32>
    %92 = vector.broadcast %91 : vector<16x1xf32> to vector<16x6xf32>
    %93 = vector.broadcast %cst_41 : f32 to vector<16x6xf32>
    %94 = arith.select %86, %92, %93 : vector<16x6xi1>, vector<16x6xf32>
    %95 = arith.addf %84, %94 : vector<16x6xf32>
    %c3_i32 = arith.constant 3 : i32
    %96 = vector.broadcast %c3_i32 : i32 to vector<16x6xi32>
    %97 = arith.cmpi eq, %69, %96 : vector<16x6xi32>
    %cst_42 = arith.constant 0.000000e+00 : f32
    %98 = vector.broadcast %cst_42 : f32 to vector<16x1xf32>
    %99 = arith.subf %98, %68 : vector<16x1xf32>
    %100 = math.log %54 : vector<16x1xf32>
    %101 = arith.mulf %99, %100 : vector<16x1xf32>
    %cst_43 = arith.constant 0.000000e+00 : f32
    %102 = vector.shape_cast %101 : vector<16x1xf32> to vector<16x1xf32>
    %103 = vector.broadcast %102 : vector<16x1xf32> to vector<16x6xf32>
    %104 = vector.broadcast %cst_43 : f32 to vector<16x6xf32>
    %105 = arith.select %97, %103, %104 : vector<16x6xi1>, vector<16x6xf32>
    %106 = arith.addf %95, %105 : vector<16x6xf32>
    %c4_i32 = arith.constant 4 : i32
    %107 = vector.broadcast %c4_i32 : i32 to vector<16x6xi32>
    %108 = arith.cmpi eq, %69, %107 : vector<16x6xi32>
    %109 = arith.mulf %68, %52 : vector<16x1xf32>
    %cst_44 = arith.constant 0.000000e+00 : f32
    %110 = vector.shape_cast %109 : vector<16x1xf32> to vector<16x1xf32>
    %111 = vector.broadcast %110 : vector<16x1xf32> to vector<16x6xf32>
    %112 = vector.broadcast %cst_44 : f32 to vector<16x6xf32>
    %113 = arith.select %108, %111, %112 : vector<16x6xi1>, vector<16x6xf32>
    %114 = arith.addf %106, %113 : vector<16x6xf32>
    %c5_i32 = arith.constant 5 : i32
    %115 = vector.broadcast %c5_i32 : i32 to vector<16x6xi32>
    %116 = arith.cmpi eq, %69, %115 : vector<16x6xi32>
    %cst_45 = arith.constant 0.000000e+00 : f32
    %117 = vector.shape_cast %53 : vector<16x1xf32> to vector<16x1xf32>
    %118 = vector.broadcast %117 : vector<16x1xf32> to vector<16x6xf32>
    %119 = vector.broadcast %cst_45 : f32 to vector<16x6xf32>
    %120 = arith.select %116, %118, %119 : vector<16x6xi1>, vector<16x6xf32>
    %121 = arith.addf %114, %120 : vector<16x6xf32>
    %cst_46 = arith.constant dense<0.000000e+00> : vector<64x6xf32>
    %122 = tpu.matmul %0, %121, %cst_46 {dimension_numbers = #tpu.dot_dimension_numbers<[1], [0], [0], [1], [0, 0, 1, 1], [], []>} : vector<64x16xf32>, vector<16x6xf32>, vector<64x6xf32> -> vector<64x6xf32>
    %123 = vector.extract_strided_slice %122 {offsets = [0, 5], sizes = [64, 1], strides = [1, 1]} : vector<64x6xf32> to vector<64x1xf32>
    %124 = tpu.reciprocal %123 {approx = true} : vector<64x1xf32> -> vector<64x1xf32>
    %125 = tpu.iota {dimensions = array<i32: 1>} : vector<64x6xi32>
    %c2_i32_47 = arith.constant 2 : i32
    %126 = vector.broadcast %c2_i32_47 : i32 to vector<64x6xi32>
    %127 = arith.cmpi slt, %125, %126 : vector<64x6xi32>
    %cst_48 = arith.constant 2.000000e+00 : f32
    %128 = vector.broadcast %cst_48 : f32 to vector<64x1xf32>
    %129 = arith.mulf %128, %124 : vector<64x1xf32>
    %130 = vector.broadcast %129 : vector<64x1xf32> to vector<64x6xf32>
    %131 = arith.mulf %130, %122 : vector<64x6xf32>
    %132 = arith.select %127, %131, %122 : vector<64x6xi1>, vector<64x6xf32>
    %c5_i32_49 = arith.constant 5 : i32
    %133 = vector.broadcast %c5_i32_49 : i32 to vector<64x6xi32>
    %134 = arith.cmpi eq, %125, %133 : vector<64x6xi32>
    %135 = vector.shape_cast %47 : vector<64x1xf32> to vector<64x1xf32>
    %136 = vector.broadcast %135 : vector<64x1xf32> to vector<64x6xf32>
    %137 = arith.select %134, %136, %132 : vector<64x6xi1>, vector<64x6xf32>
    %cst_50 = arith.constant dense<0.000000e+00> : vector<64x16xf32>
    %138 = tpu.matmul %137, %4, %cst_50 {dimension_numbers = #tpu.dot_dimension_numbers<[1], [0], [0], [1], [0, 0, 1, 1], [], []>} : vector<64x6xf32>, vector<6x16xf32>, vector<64x16xf32> -> vector<64x16xf32>
    %139 = vector.broadcast %5 : vector<1x16xf32> to vector<64x16xf32>
    %140 = arith.addf %138, %139 : vector<64x16xf32>
    %cst_51 = arith.constant 0.000000e+00 : f32
    %141 = vector.broadcast %cst_51 : f32 to vector<64x16xf32>
    %142 = arith.maximumf %140, %141 : vector<64x16xf32>
    %cst_52 = arith.constant dense<0.000000e+00> : vector<64x16xf32>
    %143 = tpu.matmul %142, %6, %cst_52 {dimension_numbers = #tpu.dot_dimension_numbers<[1], [0], [0], [1], [0, 0, 1, 1], [], []>} : vector<64x16xf32>, vector<16x16xf32>, vector<64x16xf32> -> vector<64x16xf32>
    %144 = vector.broadcast %7 : vector<1x16xf32> to vector<64x16xf32>
    %145 = arith.addf %143, %144 : vector<64x16xf32>
    %cst_53 = arith.constant 0.000000e+00 : f32
    %146 = vector.broadcast %cst_53 : f32 to vector<64x16xf32>
    %147 = arith.maximumf %145, %146 : vector<64x16xf32>
    %cst_54 = arith.constant dense<0.000000e+00> : vector<16x32xf32>
    %148 = tpu.matmul %25, %2, %cst_54 {dimension_numbers = #tpu.dot_dimension_numbers<[1], [0], [0], [1], [0, 0, 1, 1], [], []>} : vector<16x32xf32>, vector<32x32xf32>, vector<16x32xf32> -> vector<16x32xf32>
    %149 = vector.broadcast %3 : vector<1x32xf32> to vector<16x32xf32>
    %150 = arith.addf %148, %149 : vector<16x32xf32>
    %cst_55 = arith.constant 0.000000e+00 : f32
    %151 = vector.broadcast %cst_55 : f32 to vector<16x32xf32>
    %152 = arith.maximumf %150, %151 : vector<16x32xf32>
    %cst_56 = arith.constant dense<0.000000e+00> : vector<64x16xf32>
    %153 = tpu.matmul %147, %11, %cst_56 {dimension_numbers = #tpu.dot_dimension_numbers<[1], [0], [0], [1], [0, 0, 1, 1], [], []>} : vector<64x16xf32>, vector<16x16xf32>, vector<64x16xf32> -> vector<64x16xf32>
    %154 = vector.broadcast %12 : vector<1x16xf32> to vector<64x16xf32>
    %155 = arith.addf %153, %154 : vector<64x16xf32>
    %c8_i32_57 = arith.constant 8 : i32
    %156 = vector.broadcast %c8_i32_57 : i32 to vector<16x1xi32>
    %157 = arith.cmpi slt, %63, %156 : vector<16x1xi32>
    %cst_58 = arith.constant 1.000000e+00 : f32
    %cst_59 = arith.constant 0.000000e+00 : f32
    %158 = vector.broadcast %cst_58 : f32 to vector<16x1xf32>
    %159 = vector.broadcast %cst_59 : f32 to vector<16x1xf32>
    %160 = arith.select %157, %158, %159 : vector<16x1xi1>, vector<16x1xf32>
    %161 = vector.broadcast %160 : vector<16x1xf32> to vector<16x32xf32>
    %162 = arith.mulf %152, %161 : vector<16x32xf32>
    %cst_60 = arith.constant dense<0.000000e+00> : vector<16x16xf32>
    %163 = tpu.matmul %162, %8, %cst_60 {dimension_numbers = #tpu.dot_dimension_numbers<[1], [0], [0], [1], [0, 0, 1, 1], [], []>} : vector<16x32xf32>, vector<32x16xf32>, vector<16x16xf32> -> vector<16x16xf32>
    %164 = arith.subf %152, %162 : vector<16x32xf32>
    %cst_61 = arith.constant dense<0.000000e+00> : vector<16x16xf32>
    %165 = tpu.matmul %164, %9, %cst_61 {dimension_numbers = #tpu.dot_dimension_numbers<[1], [0], [0], [1], [0, 0, 1, 1], [], []>} : vector<16x32xf32>, vector<32x16xf32>, vector<16x16xf32> -> vector<16x16xf32>
    %166 = arith.addf %163, %165 : vector<16x16xf32>
    %cst_62 = arith.constant dense<0.000000e+00> : vector<64x16xf32>
    %167 = tpu.matmul %0, %166, %cst_62 {dimension_numbers = #tpu.dot_dimension_numbers<[1], [0], [0], [1], [0, 0, 1, 1], [], []>} : vector<64x16xf32>, vector<16x16xf32>, vector<64x16xf32> -> vector<64x16xf32>
    %cst_63 = arith.constant dense<0.000000e+00> : vector<64x16xf32>
    %168 = tpu.matmul %147, %10, %cst_63 {dimension_numbers = #tpu.dot_dimension_numbers<[1], [0], [0], [1], [0, 0, 1, 1], [], []>} : vector<64x16xf32>, vector<16x16xf32>, vector<64x16xf32> -> vector<64x16xf32>
    %169 = arith.addf %167, %168 : vector<64x16xf32>
    %170 = arith.addf %169, %155 : vector<64x16xf32>
    %cst_64 = arith.constant 0.000000e+00 : f32
    %171 = vector.broadcast %cst_64 : f32 to vector<64x16xf32>
    %172 = arith.maximumf %170, %171 : vector<64x16xf32>
    %cst_65 = arith.constant dense<0.000000e+00> : vector<64x16xf32>
    %173 = tpu.matmul %172, %13, %cst_65 {dimension_numbers = #tpu.dot_dimension_numbers<[1], [0], [0], [1], [0, 0, 1, 1], [], []>} : vector<64x16xf32>, vector<16x16xf32>, vector<64x16xf32> -> vector<64x16xf32>
    %174 = vector.broadcast %14 : vector<1x16xf32> to vector<64x16xf32>
    %175 = arith.addf %173, %174 : vector<64x16xf32>
    %cst_66 = arith.constant 0.000000e+00 : f32
    %176 = vector.broadcast %cst_66 : f32 to vector<64x16xf32>
    %177 = arith.maximumf %175, %176 : vector<64x16xf32>
    %cst_67 = arith.constant dense<0.000000e+00> : vector<16x16xf32>
    %178 = tpu.matmul %1, %177, %cst_67 {dimension_numbers = #tpu.dot_dimension_numbers<[1], [0], [0], [1], [0, 0, 1, 1], [], []>} : vector<16x64xf32>, vector<64x16xf32>, vector<16x16xf32> -> vector<16x16xf32>
    %cst_68 = arith.constant dense<0.000000e+00> : vector<16x32xf32>
    %179 = tpu.matmul %152, %15, %cst_68 {dimension_numbers = #tpu.dot_dimension_numbers<[1], [0], [0], [1], [0, 0, 1, 1], [], []>} : vector<16x32xf32>, vector<32x32xf32>, vector<16x32xf32> -> vector<16x32xf32>
    %cst_69 = arith.constant dense<0.000000e+00> : vector<16x32xf32>
    %180 = tpu.matmul %178, %16, %cst_69 {dimension_numbers = #tpu.dot_dimension_numbers<[1], [0], [0], [1], [0, 0, 1, 1], [], []>} : vector<16x16xf32>, vector<16x32xf32>, vector<16x32xf32> -> vector<16x32xf32>
    %181 = arith.addf %179, %180 : vector<16x32xf32>
    %182 = vector.broadcast %17 : vector<1x32xf32> to vector<16x32xf32>
    %183 = arith.addf %181, %182 : vector<16x32xf32>
    %cst_70 = arith.constant 0.000000e+00 : f32
    %184 = vector.broadcast %cst_70 : f32 to vector<16x32xf32>
    %185 = arith.maximumf %183, %184 : vector<16x32xf32>
    %cst_71 = arith.constant dense<0.000000e+00> : vector<16x32xf32>
    %186 = tpu.matmul %185, %18, %cst_71 {dimension_numbers = #tpu.dot_dimension_numbers<[1], [0], [0], [1], [0, 0, 1, 1], [], []>} : vector<16x32xf32>, vector<32x32xf32>, vector<16x32xf32> -> vector<16x32xf32>
    %187 = vector.broadcast %19 : vector<1x32xf32> to vector<16x32xf32>
    %188 = arith.addf %186, %187 : vector<16x32xf32>
    %cst_72 = arith.constant 0.000000e+00 : f32
    %189 = vector.broadcast %cst_72 : f32 to vector<16x32xf32>
    %190 = arith.maximumf %188, %189 : vector<16x32xf32>
    %cst_73 = arith.constant dense<0.000000e+00> : vector<64x16xf32>
    %191 = tpu.matmul %177, %20, %cst_73 {dimension_numbers = #tpu.dot_dimension_numbers<[1], [0], [0], [1], [0, 0, 1, 1], [], []>} : vector<64x16xf32>, vector<16x16xf32>, vector<64x16xf32> -> vector<64x16xf32>
    %192 = vector.broadcast %21 : vector<1x16xf32> to vector<64x16xf32>
    %193 = arith.addf %191, %192 : vector<64x16xf32>
    %cst_74 = arith.constant 0.000000e+00 : f32
    %194 = vector.broadcast %cst_74 : f32 to vector<64x16xf32>
    %195 = arith.maximumf %193, %194 : vector<64x16xf32>
    %cst_75 = arith.constant dense<0.000000e+00> : vector<1x64xf32>
    %196 = tpu.matmul %22, %195, %cst_75 {dimension_numbers = #tpu.dot_dimension_numbers<[1], [1], [0], [0], [0, 0, 1, 0], [], []>} : vector<1x16xf32>, vector<64x16xf32>, vector<1x64xf32> -> vector<1x64xf32>
    %197 = vector.broadcast %23 : vector<1x1xf32> to vector<1x64xf32>
    %198 = arith.addf %196, %197 : vector<1x64xf32>
    %199 = arith.negf %198 : vector<1x64xf32>
    %200 = math.exp %199 : vector<1x64xf32>
    %cst_76 = arith.constant 1.000000e+00 : f32
    %201 = vector.broadcast %cst_76 : f32 to vector<1x64xf32>
    %202 = arith.addf %201, %200 : vector<1x64xf32>
    %203 = arith.divf %201, %202 : vector<1x64xf32>
    %c0_77 = arith.constant 0 : index
    %c0_78 = arith.constant 0 : index
    %c0_79 = arith.constant 0 : index
    %204 = vector.load %arg3[%c0_77, %c0_78, %c0_79] : memref<1x3x64xf32, #tpu.memory_space<vmem>>, vector<1x1x64xf32>
    %205 = vector.shape_cast %204 : vector<1x1x64xf32> to vector<1x64xf32>
    %206 = vector.shape_cast %203 : vector<1x64xf32> to vector<1x1x64xf32>
    tpu.vector_store %arg3[%c0_77, %c0_78, %c0_79], %206 {strides = array<i32>} : memref<1x3x64xf32, #tpu.memory_space<vmem>>, vector<1x1x64xf32>,
    %207 = vector.broadcast %160 : vector<16x1xf32> to vector<16x32xf32>
    %208 = arith.mulf %190, %207 : vector<16x32xf32>
    %cst_80 = arith.constant dense<0.000000e+00> : vector<16x16xf32>
    %209 = tpu.matmul %208, %8, %cst_80 {dimension_numbers = #tpu.dot_dimension_numbers<[1], [0], [0], [1], [0, 0, 1, 1], [], []>} : vector<16x32xf32>, vector<32x16xf32>, vector<16x16xf32> -> vector<16x16xf32>
    %210 = arith.subf %190, %208 : vector<16x32xf32>
    %cst_81 = arith.constant dense<0.000000e+00> : vector<16x16xf32>
    %211 = tpu.matmul %210, %9, %cst_81 {dimension_numbers = #tpu.dot_dimension_numbers<[1], [0], [0], [1], [0, 0, 1, 1], [], []>} : vector<16x32xf32>, vector<32x16xf32>, vector<16x16xf32> -> vector<16x16xf32>
    %212 = arith.addf %209, %211 : vector<16x16xf32>
    %cst_82 = arith.constant dense<0.000000e+00> : vector<64x16xf32>
    %213 = tpu.matmul %0, %212, %cst_82 {dimension_numbers = #tpu.dot_dimension_numbers<[1], [0], [0], [1], [0, 0, 1, 1], [], []>} : vector<64x16xf32>, vector<16x16xf32>, vector<64x16xf32> -> vector<64x16xf32>
    %cst_83 = arith.constant dense<0.000000e+00> : vector<64x16xf32>
    %214 = tpu.matmul %177, %10, %cst_83 {dimension_numbers = #tpu.dot_dimension_numbers<[1], [0], [0], [1], [0, 0, 1, 1], [], []>} : vector<64x16xf32>, vector<16x16xf32>, vector<64x16xf32> -> vector<64x16xf32>
    %215 = arith.addf %213, %214 : vector<64x16xf32>
    %216 = arith.addf %215, %155 : vector<64x16xf32>
    %cst_84 = arith.constant 0.000000e+00 : f32
    %217 = vector.broadcast %cst_84 : f32 to vector<64x16xf32>
    %218 = arith.maximumf %216, %217 : vector<64x16xf32>
    %cst_85 = arith.constant dense<0.000000e+00> : vector<64x16xf32>
    %219 = tpu.matmul %218, %13, %cst_85 {dimension_numbers = #tpu.dot_dimension_numbers<[1], [0], [0], [1], [0, 0, 1, 1], [], []>} : vector<64x16xf32>, vector<16x16xf32>, vector<64x16xf32> -> vector<64x16xf32>
    %220 = vector.broadcast %14 : vector<1x16xf32> to vector<64x16xf32>
    %221 = arith.addf %219, %220 : vector<64x16xf32>
    %cst_86 = arith.constant 0.000000e+00 : f32
    %222 = vector.broadcast %cst_86 : f32 to vector<64x16xf32>
    %223 = arith.maximumf %221, %222 : vector<64x16xf32>
    %cst_87 = arith.constant dense<0.000000e+00> : vector<16x16xf32>
    %224 = tpu.matmul %1, %223, %cst_87 {dimension_numbers = #tpu.dot_dimension_numbers<[1], [0], [0], [1], [0, 0, 1, 1], [], []>} : vector<16x64xf32>, vector<64x16xf32>, vector<16x16xf32> -> vector<16x16xf32>
    %cst_88 = arith.constant dense<0.000000e+00> : vector<16x32xf32>
    %225 = tpu.matmul %190, %15, %cst_88 {dimension_numbers = #tpu.dot_dimension_numbers<[1], [0], [0], [1], [0, 0, 1, 1], [], []>} : vector<16x32xf32>, vector<32x32xf32>, vector<16x32xf32> -> vector<16x32xf32>
    %cst_89 = arith.constant dense<0.000000e+00> : vector<16x32xf32>
    %226 = tpu.matmul %224, %16, %cst_89 {dimension_numbers = #tpu.dot_dimension_numbers<[1], [0], [0], [1], [0, 0, 1, 1], [], []>} : vector<16x16xf32>, vector<16x32xf32>, vector<16x32xf32> -> vector<16x32xf32>
    %227 = arith.addf %225, %226 : vector<16x32xf32>
    %228 = vector.broadcast %17 : vector<1x32xf32> to vector<16x32xf32>
    %229 = arith.addf %227, %228 : vector<16x32xf32>
    %cst_90 = arith.constant 0.000000e+00 : f32
    %230 = vector.broadcast %cst_90 : f32 to vector<16x32xf32>
    %231 = arith.maximumf %229, %230 : vector<16x32xf32>
    %cst_91 = arith.constant dense<0.000000e+00> : vector<16x32xf32>
    %232 = tpu.matmul %231, %18, %cst_91 {dimension_numbers = #tpu.dot_dimension_numbers<[1], [0], [0], [1], [0, 0, 1, 1], [], []>} : vector<16x32xf32>, vector<32x32xf32>, vector<16x32xf32> -> vector<16x32xf32>
    %233 = vector.broadcast %19 : vector<1x32xf32> to vector<16x32xf32>
    %234 = arith.addf %232, %233 : vector<16x32xf32>
    %cst_92 = arith.constant 0.000000e+00 : f32
    %235 = vector.broadcast %cst_92 : f32 to vector<16x32xf32>
    %236 = arith.maximumf %234, %235 : vector<16x32xf32>
    %cst_93 = arith.constant dense<0.000000e+00> : vector<64x16xf32>
    %237 = tpu.matmul %223, %20, %cst_93 {dimension_numbers = #tpu.dot_dimension_numbers<[1], [0], [0], [1], [0, 0, 1, 1], [], []>} : vector<64x16xf32>, vector<16x16xf32>, vector<64x16xf32> -> vector<64x16xf32>
    %238 = vector.broadcast %21 : vector<1x16xf32> to vector<64x16xf32>
    %239 = arith.addf %237, %238 : vector<64x16xf32>
    %cst_94 = arith.constant 0.000000e+00 : f32
    %240 = vector.broadcast %cst_94 : f32 to vector<64x16xf32>
    %241 = arith.maximumf %239, %240 : vector<64x16xf32>
    %cst_95 = arith.constant dense<0.000000e+00> : vector<1x64xf32>
    %242 = tpu.matmul %22, %241, %cst_95 {dimension_numbers = #tpu.dot_dimension_numbers<[1], [1], [0], [0], [0, 0, 1, 0], [], []>} : vector<1x16xf32>, vector<64x16xf32>, vector<1x64xf32> -> vector<1x64xf32>
    %243 = vector.broadcast %23 : vector<1x1xf32> to vector<1x64xf32>
    %244 = arith.addf %242, %243 : vector<1x64xf32>
    %245 = arith.negf %244 : vector<1x64xf32>
    %246 = math.exp %245 : vector<1x64xf32>
    %cst_96 = arith.constant 1.000000e+00 : f32
    %247 = vector.broadcast %cst_96 : f32 to vector<1x64xf32>
    %248 = arith.addf %247, %246 : vector<1x64xf32>
    %249 = arith.divf %247, %248 : vector<1x64xf32>
    %c0_97 = arith.constant 0 : index
    %c1 = arith.constant 1 : index
    %c0_98 = arith.constant 0 : index
    %250 = vector.load %arg3[%c0_97, %c1, %c0_98] : memref<1x3x64xf32, #tpu.memory_space<vmem>>, vector<1x1x64xf32>
    %251 = vector.shape_cast %250 : vector<1x1x64xf32> to vector<1x64xf32>
    %252 = vector.shape_cast %249 : vector<1x64xf32> to vector<1x1x64xf32>
    tpu.vector_store %arg3[%c0_97, %c1, %c0_98], %252 {strides = array<i32>} : memref<1x3x64xf32, #tpu.memory_space<vmem>>, vector<1x1x64xf32>,
    %253 = vector.broadcast %160 : vector<16x1xf32> to vector<16x32xf32>
    %254 = arith.mulf %236, %253 : vector<16x32xf32>
    %cst_99 = arith.constant dense<0.000000e+00> : vector<16x16xf32>
    %255 = tpu.matmul %254, %8, %cst_99 {dimension_numbers = #tpu.dot_dimension_numbers<[1], [0], [0], [1], [0, 0, 1, 1], [], []>} : vector<16x32xf32>, vector<32x16xf32>, vector<16x16xf32> -> vector<16x16xf32>
    %256 = arith.subf %236, %254 : vector<16x32xf32>
    %cst_100 = arith.constant dense<0.000000e+00> : vector<16x16xf32>
    %257 = tpu.matmul %256, %9, %cst_100 {dimension_numbers = #tpu.dot_dimension_numbers<[1], [0], [0], [1], [0, 0, 1, 1], [], []>} : vector<16x32xf32>, vector<32x16xf32>, vector<16x16xf32> -> vector<16x16xf32>
    %258 = arith.addf %255, %257 : vector<16x16xf32>
    %cst_101 = arith.constant dense<0.000000e+00> : vector<64x16xf32>
    %259 = tpu.matmul %0, %258, %cst_101 {dimension_numbers = #tpu.dot_dimension_numbers<[1], [0], [0], [1], [0, 0, 1, 1], [], []>} : vector<64x16xf32>, vector<16x16xf32>, vector<64x16xf32> -> vector<64x16xf32>
    %cst_102 = arith.constant dense<0.000000e+00> : vector<64x16xf32>
    %260 = tpu.matmul %223, %10, %cst_102 {dimension_numbers = #tpu.dot_dimension_numbers<[1], [0], [0], [1], [0, 0, 1, 1], [], []>} : vector<64x16xf32>, vector<16x16xf32>, vector<64x16xf32> -> vector<64x16xf32>
    %261 = arith.addf %259, %260 : vector<64x16xf32>
    %262 = arith.addf %261, %155 : vector<64x16xf32>
    %cst_103 = arith.constant 0.000000e+00 : f32
    %263 = vector.broadcast %cst_103 : f32 to vector<64x16xf32>
    %264 = arith.maximumf %262, %263 : vector<64x16xf32>
    %cst_104 = arith.constant dense<0.000000e+00> : vector<64x16xf32>
    %265 = tpu.matmul %264, %13, %cst_104 {dimension_numbers = #tpu.dot_dimension_numbers<[1], [0], [0], [1], [0, 0, 1, 1], [], []>} : vector<64x16xf32>, vector<16x16xf32>, vector<64x16xf32> -> vector<64x16xf32>
    %266 = vector.broadcast %14 : vector<1x16xf32> to vector<64x16xf32>
    %267 = arith.addf %265, %266 : vector<64x16xf32>
    %cst_105 = arith.constant 0.000000e+00 : f32
    %268 = vector.broadcast %cst_105 : f32 to vector<64x16xf32>
    %269 = arith.maximumf %267, %268 : vector<64x16xf32>
    %cst_106 = arith.constant dense<0.000000e+00> : vector<64x16xf32>
    %270 = tpu.matmul %269, %20, %cst_106 {dimension_numbers = #tpu.dot_dimension_numbers<[1], [0], [0], [1], [0, 0, 1, 1], [], []>} : vector<64x16xf32>, vector<16x16xf32>, vector<64x16xf32> -> vector<64x16xf32>
    %271 = vector.broadcast %21 : vector<1x16xf32> to vector<64x16xf32>
    %272 = arith.addf %270, %271 : vector<64x16xf32>
    %cst_107 = arith.constant 0.000000e+00 : f32
    %273 = vector.broadcast %cst_107 : f32 to vector<64x16xf32>
    %274 = arith.maximumf %272, %273 : vector<64x16xf32>
    %cst_108 = arith.constant dense<0.000000e+00> : vector<1x64xf32>
    %275 = tpu.matmul %22, %274, %cst_108 {dimension_numbers = #tpu.dot_dimension_numbers<[1], [1], [0], [0], [0, 0, 1, 0], [], []>} : vector<1x16xf32>, vector<64x16xf32>, vector<1x64xf32> -> vector<1x64xf32>
    %276 = vector.broadcast %23 : vector<1x1xf32> to vector<1x64xf32>
    %277 = arith.addf %275, %276 : vector<1x64xf32>
    %278 = arith.negf %277 : vector<1x64xf32>
    %279 = math.exp %278 : vector<1x64xf32>
    %cst_109 = arith.constant 1.000000e+00 : f32
    %280 = vector.broadcast %cst_109 : f32 to vector<1x64xf32>
    %281 = arith.addf %280, %279 : vector<1x64xf32>
    %282 = arith.divf %280, %281 : vector<1x64xf32>
    %c0_110 = arith.constant 0 : index
    %c2 = arith.constant 2 : index
    %c0_111 = arith.constant 0 : index
    %283 = vector.load %arg3[%c0_110, %c2, %c0_111] : memref<1x3x64xf32, #tpu.memory_space<vmem>>, vector<1x1x64xf32>
    %284 = vector.shape_cast %283 : vector<1x1x64xf32> to vector<1x64xf32>
    %285 = vector.shape_cast %282 : vector<1x64xf32> to vector<1x1x64xf32>
    tpu.vector_store %arg3[%c0_110, %c2, %c0_111], %285 {strides = array<i32>} : memref<1x3x64xf32, #tpu.memory_space<vmem>>, vector<1x1x64xf32>,
    return
  }
  func.func @transform_0(%arg0: i32) -> (i32, i32) {
    %c0_i32 = arith.constant 0 : i32
    %c0_i32_0 = arith.constant 0 : i32
    %c0_i32_1 = arith.constant 0 : i32
    return %c0_i32, %c0_i32_0 : i32, i32
  }
  func.func @transform_1(%arg0: i32) -> (i32, i32, i32) {
    %c0_i32 = arith.constant 0 : i32
    %c0_i32_0 = arith.constant 0 : i32
    %c0_i32_1 = arith.constant 0 : i32
    return %arg0, %c0_i32, %c0_i32_0 : i32, i32, i32
  }
  func.func @transform_2(%arg0: i32) -> (i32, i32, i32) {
    %c0_i32 = arith.constant 0 : i32
    %c0_i32_0 = arith.constant 0 : i32
    %c0_i32_1 = arith.constant 0 : i32
    return %arg0, %c0_i32, %c0_i32_0 : i32, i32, i32
  }
}

</mosaic_0001>

<llo_original>
// kernel: assignment_similarity_net.1
$region0: #{assignment_similarity_net.1}
  #allocation0 [shape = 'u32[]', space=smem, size = 0x4, offset = 0x4, fixed_abs, tag = 'smem constant byte address 0x4 - core index']
  #allocation1 [shape = 'u32[144,128]{1,0:T(1,128)}', space=vmem, size = 0x12000, scoped, tag = 'internal scratch']
  %s0 = inlined_call_operand.vmem [shape: f32[424,64], index: 0, kind: input, shape index: {}]
  %s1 = inlined_call_operand.vmem [shape: f32[1,16,40], index: 1, kind: input, shape index: {}]
  %s2 = inlined_call_operand.vmem [shape: f32[1,3,64], index: 2, kind: output, shape index: {}]
  %s3 = sld [smem:[#allocation0]]
  $region18: #{assignment_similarity_net.1} parent=0
    _
  %s5 = ssub.s32 1, %s3
  %s6 = scalar_select 0, %s5, %s3
  // Predicated region
  $region2: #{assignment_similarity_net.1} parent=0 // pred_check
    _
  $region3: #{assignment_similarity_net.1} parent=0 // pred_check_branch
    %8 = sbr.rel (0) target = $region5
  $region4: #{assignment_similarity_net.1} parent=0 // pred_region
    _
  $region5: #{assignment_similarity_net.1} parent=0 // pred_fallthru
    _
  // Predicated region
  $region6: #{assignment_similarity_net.1} parent=0 // pred_check
    _
  $region7: #{assignment_similarity_net.1} parent=0 // pred_check_branch
    %10 = sbr.rel (0) target = $region9
  $region8: #{assignment_similarity_net.1} parent=0 // pred_region
    _
  $region9: #{assignment_similarity_net.1} parent=0 // pred_fallthru
    _
  %v11 = vld [vmem:[%s0] sm:$0xff]
  %v12 = vld [vmem:[%s0 + $0x8] sm:$0xff]
  %v13 = vld [vmem:[%s0 + $0x10] sm:$0xff]
  %v14 = vld [vmem:[%s0 + $0x18] sm:$0xff]
  %v15 = vld [vmem:[%s0 + $0x20] sm:$0xff]
  %v16 = vld [vmem:[%s0 + $0x28] sm:$0xff]
  %v17 = vld [vmem:[%s0 + $0x30] sm:$0xff]
  %v18 = vld [vmem:[%s0 + $0x38] sm:$0xff]
  %v19 = vld [vmem:[%s0 + $0x40] sm:$0xff]
  %v20 = vld [vmem:[%s0 + $0x48] sm:$0xff]
  %v21 = vld [vmem:[%s0 + $0x50] sm:$0xff]
  %v22 = vld [vmem:[%s0 + $0x58] sm:$0xff]
  %v23 = vld [vmem:[%s0 + $0x60] sm:$0xff]
  %v24 = vld [vmem:[%s0 + $0x68] sm:$0xff]
  %v25 = vld [vmem:[%s0 + $0x70] sm:$0x1]
  %v26 = vld [vmem:[%s0 + $0x78] sm:$0x3f]
  %v27 = vld [vmem:[%s0 + $0x80] sm:$0x1]
  %v28 = vld [vmem:[%s0 + $0x88] sm:$0xff]
  %v29 = vld [vmem:[%s0 + $0x90] sm:$0xff]
  %v30 = vld [vmem:[%s0 + $0x98] sm:$0x1]
  %v31 = vld [vmem:[%s0 + $0xa0] sm:$0xff]
  %v32 = vld [vmem:[%s0 + $0xa8] sm:$0xff]
  %v33 = vld [vmem:[%s0 + $0xb0] sm:$0xff]
  %v34 = vld [vmem:[%s0 + $0xb8] sm:$0xff]
  %v35 = vld [vmem:[%s0 + $0xc0] sm:$0xff]
  %v36 = vld [vmem:[%s0 + $0xc8] sm:$0xff]
  %v37 = vld [vmem:[%s0 + $0xd0] sm:$0xff]
  %v38 = vld [vmem:[%s0 + $0xd8] sm:$0xff]
  %v39 = vld [vmem:[%s0 + $0xe0] sm:$0xff]
  %v40 = vld [vmem:[%s0 + $0xe8] sm:$0xff]
  %v41 = vld [vmem:[%s0 + $0xf0] sm:$0xff]
  %v42 = vld [vmem:[%s0 + $0xf8] sm:$0xff]
  %v43 = vld [vmem:[%s0 + $0x100] sm:$0x1]
  %v44 = vld [vmem:[%s0 + $0x108] sm:$0xff]
  %v45 = vld [vmem:[%s0 + $0x110] sm:$0xff]
  %v46 = vld [vmem:[%s0 + $0x118] sm:$0x1]
  %v47 = vld [vmem:[%s0 + $0x120] sm:$0xff]
  %v48 = vld [vmem:[%s0 + $0x128] sm:$0xff]
  %v49 = vld [vmem:[%s0 + $0x130] sm:$0xff]
  %v50 = vld [vmem:[%s0 + $0x138] sm:$0xff]
  %v51 = vld [vmem:[%s0 + $0x140] sm:$0xff]
  %v52 = vld [vmem:[%s0 + $0x148] sm:$0xff]
  %v53 = vld [vmem:[%s0 + $0x150] sm:$0x1]
  %v54 = vld [vmem:[%s0 + $0x158] sm:$0xff]
  %v55 = vld [vmem:[%s0 + $0x160] sm:$0xff]
  %v56 = vld [vmem:[%s0 + $0x168] sm:$0xff]
  %v57 = vld [vmem:[%s0 + $0x170] sm:$0xff]
  %v58 = vld [vmem:[%s0 + $0x178] sm:$0x1]
  %v59 = vld [vmem:[%s0 + $0x180] sm:$0xff]
  %v60 = vld [vmem:[%s0 + $0x188] sm:$0xff]
  %v61 = vld [vmem:[%s0 + $0x190] sm:$0x1]
  %v62 = vld [vmem:[%s0 + $0x198] sm:$0x1]
  %v63 = vld [vmem:[%s0 + $0x1a0] sm:$0x1]
  %v64 = vld [vmem:[%s1] sm:$0xff]
  %v65 = vld [vmem:[%s1 + $0x8] sm:$0xff]
  %v66 = vmul.f32 %v64, %v64
  %v67 = vmul.f32 %v65, %v65
  %vm68 = vcmask 261120
  %v69 = vsel %vm68, %v66, 0.0
  %70 = vadd.xlane.f32.xlu0 %v69
  %v71 = vpop.xlane.xlu0 %70
  %v72 = vsel %vm68, %v67, 0.0
  %73 = vadd.xlane.f32.xlu0 %v72
  %v74 = vpop.xlane.xlu0 %73
  %v75 = vrsqrt.pop %v71
  %v76 = vmul.f32 %v71, %v75
  %vm77 = vcmp.eq.f32.partialorder %v71, inf
  %v78 = vsel %vm77, %v71, %v76
  %vm79 = vcmp.eq.f32.partialorder %v71, 0.0
  %v80 = vand.u32 %v71, 2147483648
  %v81 = vsel %vm79, %v80, %v78
  %v82 = vrsqrt.pop %v74
  %v83 = vmul.f32 %v74, %v82
  %vm84 = vcmp.eq.f32.partialorder %v74, inf
  %v85 = vsel %vm84, %v74, %v83
  %vm86 = vcmp.eq.f32.partialorder %v74, 0.0
  %v87 = vand.u32 %v74, 2147483648
  %v88 = vsel %vm86, %v87, %v85
  %v89 = vmax.f32 %v81, 1e-08
  %v90 = vmax.f32 %v88, 1e-08
  %v91 = vrcp.pop %v89
  %v92 = vrcp.pop %v90
  %v93 = vmul.f32 %v64, %v91
  %v94 = vmul.f32 %v65, %v92
  %vm95 = vcmask 64512
  %v97 = vsel %vm95, %v11, 0
  %v100 = vsel %vm95, %v12, 0
  %v103 = vsel %vm95, %v13, 0
  %v106 = vsel %vm95, %v14, 0
  %v109 = vsel %vm95, %v15, 0
  %v112 = vsel %vm95, %v16, 0
  %v115 = vsel %vm95, %v17, 0
  %v118 = vsel %vm95, %v18, 0
  %120 = vmatprep.subr.mxu0 0.0
  %121 = vmatpush1.msra.mxu0 %v93
  %122 = vmatprep.subr.mxu0 0.0
  %123 = vmatpush1.msra.mxu0 0.0
  %124 = vmatprep.subr.mxu0 0.0
  %125 = vmatpush1.msra.mxu0 0.0
  %126 = vmatprep.subr.mxu0 0.0
  %127 = vmatpush1.msra.mxu0 0.0
  %128 = vmatprep.subr.mxu0 0.0
  %129 = vmatpush1.msra.mxu0 0.0
  %130 = vmatprep.subr.mxu0 0.0
  %131 = vmatpush1.msra.mxu0 0.0
  %132 = vmatprep.subr.mxu0 0.0
  %133 = vmatpush1.msra.mxu0 0.0
  %134 = vmatprep.subr.mxu0 0.0
  %135 = vmatpush1.msra.mxu0 0.0
  %136 = vmatprep.subr.mxu0 0.0
  %137 = vmatpush1.msra.mxu0 0.0
  %138 = vmatprep.subr.mxu0 0.0
  %139 = vmatpush1.msra.mxu0 0.0
  %140 = vmatprep.subr.mxu0 0.0
  %141 = vmatpush1.msra.mxu0 0.0
  %142 = vmatprep.subr.mxu0 0.0
  %143 = vmatpush1.msra.mxu0 0.0
  %144 = vmatprep.subr.mxu0 0.0
  %145 = vmatpush1.msra.mxu0 0.0
  %146 = vmatprep.subr.mxu0 0.0
  %147 = vmatpush1.msra.mxu0 0.0
  %148 = vmatprep.subr.mxu0 0.0
  %149 = vmatpush1.msra.mxu0 0.0
  %150 = vmatprep.subr.mxu0 0.0
  %151 = vmatpush1.msra.mxu0 0.0
  %152 = vmatprep.subr.mxu0 0.0
  %153 = vmatpush1.msra.mxu0 0.0
  %154 = vmatprep.subr.mxu0 0.0
  %155 = vmatpush1.msra.mxu0 0.0
  %156 = vmatprep.subr.mxu0 0.0
  %157 = vmatpush1.msra.mxu0 0.0
  %158 = vmatprep.subr.mxu0 0.0
  %159 = vmatpush1.msra.mxu0 0.0
  %160 = vmatprep.subr.mxu0 0.0
  %161 = vmatpush1.msra.mxu0 0.0
  %162 = vmatprep.subr.mxu0 0.0
  %163 = vmatpush1.msra.mxu0 0.0
  %164 = vmatprep.subr.mxu0 0.0
  %165 = vmatpush1.msra.mxu0 0.0
  %166 = vmatprep.subr.mxu0 0.0
  %167 = vmatpush1.msra.mxu0 0.0
  %168 = vmatprep.subr.mxu0 0.0
  %169 = vmatpush1.msra.mxu0 0.0
  %170 = vmatprep.subr.mxu0 0.0
  %171 = vmatpush1.msra.mxu0 0.0
  %172 = vmatprep.subr.mxu0 0.0
  %173 = vmatpush1.msra.mxu0 0.0
  %174 = vmatprep.subr.mxu0 0.0
  %175 = vmatpush1.msra.mxu0 0.0
  %176 = vmatprep.subr.mxu0 0.0
  %177 = vmatpush1.msra.mxu0 0.0
  %178 = vmatprep.subr.mxu0 0.0
  %179 = vmatpush1.msra.mxu0 0.0
  %180 = vmatprep.subr.mxu0 0.0
  %181 = vmatpush1.msra.mxu0 0.0
  %182 = vmatprep.subr.mxu0 0.0
  %183 = vmatpush1.msra.mxu0 0.0
  %184 = vmatprep.mubr.f32.mxu0 0.0
  %185 = vmatmul.mubr.f32.gmra.mrb[0].mxu0 %v97
  %v186 = vpop.f32.mrb[0].mxu0
  %v187 = vadd.f32 0.0, %v186
  %v188 = vpop.f32.mrb[0].mxu0
  %189 = vmatprep.mubr.f32.mxu0 0.0
  %190 = vmatmul.mubr.f32.gmra.mrb[0].mxu0 %v100
  %v191 = vpop.f32.mrb[0].mxu0
  %v192 = vadd.f32 0.0, %v191
  %v193 = vpop.f32.mrb[0].mxu0
  %194 = vmatprep.mubr.f32.mxu0 0.0
  %195 = vmatmul.mubr.f32.gmra.mrb[0].mxu0 %v103
  %v196 = vpop.f32.mrb[0].mxu0
  %v197 = vadd.f32 0.0, %v196
  %v198 = vpop.f32.mrb[0].mxu0
  %199 = vmatprep.mubr.f32.mxu0 0.0
  %200 = vmatmul.mubr.f32.gmra.mrb[0].mxu0 %v106
  %v201 = vpop.f32.mrb[0].mxu0
  %v202 = vadd.f32 0.0, %v201
  %v203 = vpop.f32.mrb[0].mxu0
  %204 = vmatprep.mubr.f32.mxu0 0.0
  %205 = vmatmul.mubr.f32.gmra.mrb[0].mxu0 %v109
  %v206 = vpop.f32.mrb[0].mxu0
  %v207 = vadd.f32 0.0, %v206
  %v208 = vpop.f32.mrb[0].mxu0
  %209 = vmatprep.mubr.f32.mxu0 0.0
  %210 = vmatmul.mubr.f32.gmra.mrb[0].mxu0 %v112
  %v211 = vpop.f32.mrb[0].mxu0
  %v212 = vadd.f32 0.0, %v211
  %v213 = vpop.f32.mrb[0].mxu0
  %214 = vmatprep.mubr.f32.mxu0 0.0
  %215 = vmatmul.mubr.f32.gmra.mrb[0].mxu0 %v115
  %v216 = vpop.f32.mrb[0].mxu0
  %v217 = vadd.f32 0.0, %v216
  %v218 = vpop.f32.mrb[0].mxu0
  %219 = vmatprep.mubr.f32.mxu0 0.0
  %220 = vmatmul.mubr.f32.gmra.mrb[0].mxu0 %v118
  %v221 = vpop.f32.mrb[0].mxu0
  %v222 = vadd.f32 0.0, %v221
  %v223 = vpop.f32.mrb[0].mxu0
  %224 = vdwg.mxu0
  %225 = vrot.lane.b32.xlu0 %v11, 120
  %v226 = vpop.permute.xlu0 %225
  %227 = vrot.lane.b32.xlu0 %v12, 120
  %v228 = vpop.permute.xlu0 %227
  %229 = vrot.lane.b32.xlu0 %v13, 120
  %v230 = vpop.permute.xlu0 %229
  %231 = vrot.lane.b32.xlu0 %v14, 120
  %v232 = vpop.permute.xlu0 %231
  %233 = vrot.lane.b32.xlu0 %v15, 120
  %v234 = vpop.permute.xlu0 %233
  %235 = vrot.lane.b32.xlu0 %v16, 120
  %v236 = vpop.permute.xlu0 %235
  %237 = vrot.lane.b32.xlu0 %v17, 120
  %v238 = vpop.permute.xlu0 %237
  %239 = vrot.lane.b32.xlu0 %v18, 120
  %v240 = vpop.permute.xlu0 %239
  %v241 = vsel %vm95, %v226, 0
  %v243 = vsel %vm95, %v228, 0
  %v245 = vsel %vm95, %v230, 0
  %v247 = vsel %vm95, %v232, 0
  %v249 = vsel %vm95, %v234, 0
  %v251 = vsel %vm95, %v236, 0
  %v253 = vsel %vm95, %v238, 0
  %v255 = vsel %vm95, %v240, 0
  %257 = vmatprep.subr.mxu0 0.0
  %258 = vmatpush1.msra.mxu0 %v94
  %259 = vmatprep.subr.mxu0 0.0
  %260 = vmatpush1.msra.mxu0 0.0
  %261 = vmatprep.subr.mxu0 0.0
  %262 = vmatpush1.msra.mxu0 0.0
  %263 = vmatprep.subr.mxu0 0.0
  %264 = vmatpush1.msra.mxu0 0.0
  %265 = vmatprep.subr.mxu0 0.0
  %266 = vmatpush1.msra.mxu0 0.0
  %267 = vmatprep.subr.mxu0 0.0
  %268 = vmatpush1.msra.mxu0 0.0
  %269 = vmatprep.subr.mxu0 0.0
  %270 = vmatpush1.msra.mxu0 0.0
  %271 = vmatprep.subr.mxu0 0.0
  %272 = vmatpush1.msra.mxu0 0.0
  %273 = vmatprep.subr.mxu0 0.0
  %274 = vmatpush1.msra.mxu0 0.0
  %275 = vmatprep.subr.mxu0 0.0
  %276 = vmatpush1.msra.mxu0 0.0
  %277 = vmatprep.subr.mxu0 0.0
  %278 = vmatpush1.msra.mxu0 0.0
  %279 = vmatprep.subr.mxu0 0.0
  %280 = vmatpush1.msra.mxu0 0.0
  %281 = vmatprep.subr.mxu0 0.0
  %282 = vmatpush1.msra.mxu0 0.0
  %283 = vmatprep.subr.mxu0 0.0
  %284 = vmatpush1.msra.mxu0 0.0
  %285 = vmatprep.subr.mxu0 0.0
  %286 = vmatpush1.msra.mxu0 0.0
  %287 = vmatprep.subr.mxu0 0.0
  %288 = vmatpush1.msra.mxu0 0.0
  %289 = vmatprep.subr.mxu0 0.0
  %290 = vmatpush1.msra.mxu0 0.0
  %291 = vmatprep.subr.mxu0 0.0
  %292 = vmatpush1.msra.mxu0 0.0
  %293 = vmatprep.subr.mxu0 0.0
  %294 = vmatpush1.msra.mxu0 0.0
  %295 = vmatprep.subr.mxu0 0.0
  %296 = vmatpush1.msra.mxu0 0.0
  %297 = vmatprep.subr.mxu0 0.0
  %298 = vmatpush1.msra.mxu0 0.0
  %299 = vmatprep.subr.mxu0 0.0
  %300 = vmatpush1.msra.mxu0 0.0
  %301 = vmatprep.subr.mxu0 0.0
  %302 = vmatpush1.msra.mxu0 0.0
  %303 = vmatprep.subr.mxu0 0.0
  %304 = vmatpush1.msra.mxu0 0.0
  %305 = vmatprep.subr.mxu0 0.0
  %306 = vmatpush1.msra.mxu0 0.0
  %307 = vmatprep.subr.mxu0 0.0
  %308 = vmatpush1.msra.mxu0 0.0
  %309 = vmatprep.subr.mxu0 0.0
  %310 = vmatpush1.msra.mxu0 0.0
  %311 = vmatprep.subr.mxu0 0.0
  %312 = vmatpush1.msra.mxu0 0.0
  %313 = vmatprep.subr.mxu0 0.0
  %314 = vmatpush1.msra.mxu0 0.0
  %315 = vmatprep.subr.mxu0 0.0
  %316 = vmatpush1.msra.mxu0 0.0
  %317 = vmatprep.subr.mxu0 0.0
  %318 = vmatpush1.msra.mxu0 0.0
  %319 = vmatprep.subr.mxu0 0.0
  %320 = vmatpush1.msra.mxu0 0.0
  %321 = vmatprep.mubr.f32.mxu0 0.0
  %322 = vmatmul.mubr.f32.gmra.mrb[0].mxu0 %v241
  %v323 = vpop.f32.mrb[0].mxu0
  %v324 = vadd.f32 0.0, %v323
  %v325 = vpop.f32.mrb[0].mxu0
  %326 = vmatprep.mubr.f32.mxu0 0.0
  %327 = vmatmul.mubr.f32.gmra.mrb[0].mxu0 %v243
  %v328 = vpop.f32.mrb[0].mxu0
  %v329 = vadd.f32 0.0, %v328
  %v330 = vpop.f32.mrb[0].mxu0
  %331 = vmatprep.mubr.f32.mxu0 0.0
  %332 = vmatmul.mubr.f32.gmra.mrb[0].mxu0 %v245
  %v333 = vpop.f32.mrb[0].mxu0
  %v334 = vadd.f32 0.0, %v333
  %v335 = vpop.f32.mrb[0].mxu0
  %336 = vmatprep.mubr.f32.mxu0 0.0
  %337 = vmatmul.mubr.f32.gmra.mrb[0].mxu0 %v247
  %v338 = vpop.f32.mrb[0].mxu0
  %v339 = vadd.f32 0.0, %v338
  %v340 = vpop.f32.mrb[0].mxu0
  %341 = vmatprep.mubr.f32.mxu0 0.0
  %342 = vmatmul.mubr.f32.gmra.mrb[0].mxu0 %v249
  %v343 = vpop.f32.mrb[0].mxu0
  %v344 = vadd.f32 0.0, %v343
  %v345 = vpop.f32.mrb[0].mxu0
  %346 = vmatprep.mubr.f32.mxu0 0.0
  %347 = vmatmul.mubr.f32.gmra.mrb[0].mxu0 %v251
  %v348 = vpop.f32.mrb[0].mxu0
  %v349 = vadd.f32 0.0, %v348
  %v350 = vpop.f32.mrb[0].mxu0
  %351 = vmatprep.mubr.f32.mxu0 0.0
  %352 = vmatmul.mubr.f32.gmra.mrb[0].mxu0 %v253
  %v353 = vpop.f32.mrb[0].mxu0
  %v354 = vadd.f32 0.0, %v353
  %v355 = vpop.f32.mrb[0].mxu0
  %356 = vmatprep.mubr.f32.mxu0 0.0
  %357 = vmatmul.mubr.f32.gmra.mrb[0].mxu0 %v255
  %v358 = vpop.f32.mrb[0].mxu0
  %v359 = vadd.f32 0.0, %v358
  %v360 = vpop.f32.mrb[0].mxu0
  %361 = vdwg.mxu0
  %v362 = vmul.f32 %v187, %v324
  %v363 = vmul.f32 %v192, %v329
  %v364 = vmul.f32 %v197, %v334
  %v365 = vmul.f32 %v202, %v339
  %v366 = vmul.f32 %v207, %v344
  %v367 = vmul.f32 %v212, %v349
  %v368 = vmul.f32 %v217, %v354
  %v369 = vmul.f32 %v222, %v359
  %v370 = vsel %vm68, %v362, 0.0
  %371 = vadd.xlane.f32.xlu0 %v370
  %v372 = vpop.xlane.xlu0 %371
  %v373 = vsel %vm68, %v363, 0.0
  %374 = vadd.xlane.f32.xlu0 %v373
  %v375 = vpop.xlane.xlu0 %374
  %v376 = vsel %vm68, %v364, 0.0
  %377 = vadd.xlane.f32.xlu0 %v376
  %v378 = vpop.xlane.xlu0 %377
  %v379 = vsel %vm68, %v365, 0.0
  %380 = vadd.xlane.f32.xlu0 %v379
  %v381 = vpop.xlane.xlu0 %380
  %v382 = vsel %vm68, %v366, 0.0
  %383 = vadd.xlane.f32.xlu0 %v382
  %v384 = vpop.xlane.xlu0 %383
  %v385 = vsel %vm68, %v367, 0.0
  %386 = vadd.xlane.f32.xlu0 %v385
  %v387 = vpop.xlane.xlu0 %386
  %v388 = vsel %vm68, %v368, 0.0
  %389 = vadd.xlane.f32.xlu0 %v388
  %v390 = vpop.xlane.xlu0 %389
  %v391 = vsel %vm68, %v369, 0.0
  %392 = vadd.xlane.f32.xlu0 %v391
  %v393 = vpop.xlane.xlu0 %392
  %v394 = vsub.f32 1.0, %v372
  %v395 = vsub.f32 1.0, %v375
  %v396 = vsub.f32 1.0, %v378
  %v397 = vsub.f32 1.0, %v381
  %v398 = vsub.f32 1.0, %v384
  %v399 = vsub.f32 1.0, %v387
  %v400 = vsub.f32 1.0, %v390
  %v401 = vsub.f32 1.0, %v393
  %404 = vrot.lane.b32.xlu0 %v64, 2
  %v405 = vpop.permute.xlu0 %404
  %406 = vrot.lane.b32.xlu0 %v65, 2
  %v407 = vpop.permute.xlu0 %406
  %v410 = vsub.f32 %v64, %v405
  %v411 = vsub.f32 %v65, %v407
  %v412 = vmul.f32 %v410, 0.5
  %v413 = vmul.f32 %v411, 0.5
  %v414 = vfloor.f32 %v412
  %v415 = vfloor.f32 %v413
  %418 = vrot.lane.b32.xlu0 %v414, 126
  %v419 = vpop.permute.xlu0 %418
  %420 = vrot.lane.b32.xlu0 %v415, 126
  %v421 = vpop.permute.xlu0 %420
  %v424 = vadd.f32 %v64, %v419
  %v425 = vadd.f32 %v65, %v421
  %v426 = vlaneseq
  %v427 = vshrl.u32 %v426, 7
  %v428 = vadd.s32 %v427, 8
  %vm429 = vcmp.lt.s32.totalorder %v427, 8
  %vm430 = vcmp.lt.s32.totalorder %v428, 8
  %v431 = vsel %vm429, -1.0, 1.0
  %v432 = vsel %vm430, -1.0, 1.0
  %v433 = vlaneseq
  %v434 = vand.u32 %v433, 127
  %vm435 = vcmp.eq.s32.totalorder %v434, 0
  %v436 = vmul.f32 %v431, %v424
  %v437 = vmul.f32 %v432, %v425
  %439 = vset.pattern.permute.xlu0 32
  %440 = vperm.xlu0 %439, %v436
  %v441 = vpop.permute.xlu0 %440
  %444 = vset.pattern.permute.xlu0 32
  %445 = vperm.xlu0 %444, %v437
  %v446 = vpop.permute.xlu0 %445
  %v448 = vsel %vm435, %v441, 0.0
  %v449 = vsel %vm435, %v446, 0.0
  %vm450 = vcmp.eq.s32.totalorder %v434, 1
  %451 = vset.pattern.permute.xlu0 33
  %452 = vperm.xlu0 %451, %v436
  %v453 = vpop.permute.xlu0 %452
  %455 = vset.pattern.permute.xlu0 33
  %456 = vperm.xlu0 %455, %v437
  %v457 = vpop.permute.xlu0 %456
  %v459 = vsel %vm450, %v453, 0.0
  %v460 = vsel %vm450, %v457, 0.0
  %v461 = vadd.f32 %v448, %v459
  %v462 = vadd.f32 %v449, %v460
  %vm463 = vcmp.eq.s32.totalorder %v434, 2
  %v464 = vsub.f32 0.0, %v431
  %v465 = vsub.f32 0.0, %v432
  %v466 = vlog2.pop %v410
  %v467 = vmul.f32 %v466, 0.6931472
  %v468 = vlog2.pop %v411
  %v469 = vmul.f32 %v468, 0.6931472
  %v470 = vmul.f32 %v464, %v467
  %v471 = vmul.f32 %v465, %v469
  %473 = vset.pattern.permute.xlu0 35
  %474 = vperm.xlu0 %473, %v470
  %v475 = vpop.permute.xlu0 %474
  %478 = vset.pattern.permute.xlu0 35
  %479 = vperm.xlu0 %478, %v471
  %v480 = vpop.permute.xlu0 %479
  %v482 = vsel %vm463, %v475, 0.0
  %v483 = vsel %vm463, %v480, 0.0
  %v484 = vadd.f32 %v461, %v482
  %v485 = vadd.f32 %v462, %v483
  %vm486 = vcmp.eq.s32.totalorder %v434, 3
  %487 = vset.pattern.permute.xlu0 34
  %488 = vperm.xlu0 %487, %v470
  %v489 = vpop.permute.xlu0 %488
  %491 = vset.pattern.permute.xlu0 34
  %492 = vperm.xlu0 %491, %v471
  %v493 = vpop.permute.xlu0 %492
  %v495 = vsel %vm486, %v489, 0.0
  %v496 = vsel %vm486, %v493, 0.0
  %v497 = vadd.f32 %v484, %v495
  %v498 = vadd.f32 %v485, %v496
  %vm499 = vcmp.eq.s32.totalorder %v434, 4
  %v500 = vmul.f32 %v431, %v64
  %v501 = vmul.f32 %v432, %v65
  %503 = vset.pattern.permute.xlu0 36
  %504 = vperm.xlu0 %503, %v500
  %v505 = vpop.permute.xlu0 %504
  %508 = vset.pattern.permute.xlu0 36
  %509 = vperm.xlu0 %508, %v501
  %v510 = vpop.permute.xlu0 %509
  %v512 = vsel %vm499, %v505, 0.0
  %v513 = vsel %vm499, %v510, 0.0
  %v514 = vadd.f32 %v497, %v512
  %v515 = vadd.f32 %v498, %v513
  %vm516 = vcmp.eq.s32.totalorder %v434, 5
  %518 = vset.pattern.permute.xlu0 35
  %519 = vperm.xlu0 %518, %v410
  %v520 = vpop.permute.xlu0 %519
  %523 = vset.pattern.permute.xlu0 35
  %524 = vperm.xlu0 %523, %v411
  %v525 = vpop.permute.xlu0 %524
  %v527 = vsel %vm516, %v520, 0.0
  %v528 = vsel %vm516, %v525, 0.0
  %v529 = vadd.f32 %v514, %v527
  %v530 = vadd.f32 %v515, %v528
  %vm531 = vcmask 130048
  %v532 = vsel %vm531, %v11, 0
  %v534 = vsel %vm531, %v12, 0
  %v536 = vsel %vm531, %v13, 0
  %v538 = vsel %vm531, %v14, 0
  %v540 = vsel %vm531, %v15, 0
  %v542 = vsel %vm531, %v16, 0
  %v544 = vsel %vm531, %v17, 0
  %v546 = vsel %vm531, %v18, 0
  %548 = vmatprep.subr.mxu0 0.0
  %549 = vmatpush1.msra.mxu0 %v529
  %550 = vmatprep.subr.mxu0 0.0
  %551 = vmatpush1.msra.mxu0 %v530
  %552 = vmatprep.subr.mxu0 0.0
  %553 = vmatpush1.msra.mxu0 0.0
  %554 = vmatprep.subr.mxu0 0.0
  %555 = vmatpush1.msra.mxu0 0.0
  %556 = vmatprep.subr.mxu0 0.0
  %557 = vmatpush1.msra.mxu0 0.0
  %558 = vmatprep.subr.mxu0 0.0
  %559 = vmatpush1.msra.mxu0 0.0
  %560 = vmatprep.subr.mxu0 0.0
  %561 = vmatpush1.msra.mxu0 0.0
  %562 = vmatprep.subr.mxu0 0.0
  %563 = vmatpush1.msra.mxu0 0.0
  %564 = vmatprep.subr.mxu0 0.0
  %565 = vmatpush1.msra.mxu0 0.0
  %566 = vmatprep.subr.mxu0 0.0
  %567 = vmatpush1.msra.mxu0 0.0
  %568 = vmatprep.subr.mxu0 0.0
  %569 = vmatpush1.msra.mxu0 0.0
  %570 = vmatprep.subr.mxu0 0.0
  %571 = vmatpush1.msra.mxu0 0.0
  %572 = vmatprep.subr.mxu0 0.0
  %573 = vmatpush1.msra.mxu0 0.0
  %574 = vmatprep.subr.mxu0 0.0
  %575 = vmatpush1.msra.mxu0 0.0
  %576 = vmatprep.subr.mxu0 0.0
  %577 = vmatpush1.msra.mxu0 0.0
  %578 = vmatprep.subr.mxu0 0.0
  %579 = vmatpush1.msra.mxu0 0.0
  %580 = vmatprep.subr.mxu0 0.0
  %581 = vmatpush1.msra.mxu0 0.0
  %582 = vmatprep.subr.mxu0 0.0
  %583 = vmatpush1.msra.mxu0 0.0
  %584 = vmatprep.subr.mxu0 0.0
  %585 = vmatpush1.msra.mxu0 0.0
  %586 = vmatprep.subr.mxu0 0.0
  %587 = vmatpush1.msra.mxu0 0.0
  %588 = vmatprep.subr.mxu0 0.0
  %589 = vmatpush1.msra.mxu0 0.0
  %590 = vmatprep.subr.mxu0 0.0
  %591 = vmatpush1.msra.mxu0 0.0
  %592 = vmatprep.subr.mxu0 0.0
  %593 = vmatpush1.msra.mxu0 0.0
  %594 = vmatprep.subr.mxu0 0.0
  %595 = vmatpush1.msra.mxu0 0.0
  %596 = vmatprep.subr.mxu0 0.0
  %597 = vmatpush1.msra.mxu0 0.0
  %598 = vmatprep.subr.mxu0 0.0
  %599 = vmatpush1.msra.mxu0 0.0
  %600 = vmatprep.subr.mxu0 0.0
  %601 = vmatpush1.msra.mxu0 0.0
  %602 = vmatprep.subr.mxu0 0.0
  %603 = vmatpush1.msra.mxu0 0.0
  %604 = vmatprep.subr.mxu0 0.0
  %605 = vmatpush1.msra.mxu0 0.0
  %606 = vmatprep.subr.mxu0 0.0
  %607 = vmatpush1.msra.mxu0 0.0
  %608 = vmatprep.subr.mxu0 0.0
  %609 = vmatpush1.msra.mxu0 0.0
  %610 = vmatprep.subr.mxu0 0.0
  %611 = vmatpush1.msra.mxu0 0.0
  %612 = vmatprep.mubr.f32.mxu0 0.0
  %613 = vmatmul.mubr.f32.gmra.mrb[0].mxu0 %v532
  %v614 = vpop.f32.mrb[0].mxu0
  %v615 = vadd.f32 0.0, %v614
  %v616 = vpop.f32.mrb[0].mxu0
  %617 = vmatprep.mubr.f32.mxu0 0.0
  %618 = vmatmul.mubr.f32.gmra.mrb[0].mxu0 %v534
  %v619 = vpop.f32.mrb[0].mxu0
  %v620 = vadd.f32 0.0, %v619
  %v621 = vpop.f32.mrb[0].mxu0
  %622 = vmatprep.mubr.f32.mxu0 0.0
  %623 = vmatmul.mubr.f32.gmra.mrb[0].mxu0 %v536
  %v624 = vpop.f32.mrb[0].mxu0
  %v625 = vadd.f32 0.0, %v624
  %v626 = vpop.f32.mrb[0].mxu0
  %627 = vmatprep.mubr.f32.mxu0 0.0
  %628 = vmatmul.mubr.f32.gmra.mrb[0].mxu0 %v538
  %v629 = vpop.f32.mrb[0].mxu0
  %v630 = vadd.f32 0.0, %v629
  %v631 = vpop.f32.mrb[0].mxu0
  %632 = vmatprep.mubr.f32.mxu0 0.0
  %633 = vmatmul.mubr.f32.gmra.mrb[0].mxu0 %v540
  %v634 = vpop.f32.mrb[0].mxu0
  %v635 = vadd.f32 0.0, %v634
  %v636 = vpop.f32.mrb[0].mxu0
  %637 = vmatprep.mubr.f32.mxu0 0.0
  %638 = vmatmul.mubr.f32.gmra.mrb[0].mxu0 %v542
  %v639 = vpop.f32.mrb[0].mxu0
  %v640 = vadd.f32 0.0, %v639
  %v641 = vpop.f32.mrb[0].mxu0
  %642 = vmatprep.mubr.f32.mxu0 0.0
  %643 = vmatmul.mubr.f32.gmra.mrb[0].mxu0 %v544
  %v644 = vpop.f32.mrb[0].mxu0
  %v645 = vadd.f32 0.0, %v644
  %v646 = vpop.f32.mrb[0].mxu0
  %647 = vmatprep.mubr.f32.mxu0 0.0
  %648 = vmatmul.mubr.f32.gmra.mrb[0].mxu0 %v546
  %v649 = vpop.f32.mrb[0].mxu0
  %v650 = vadd.f32 0.0, %v649
  %v651 = vpop.f32.mrb[0].mxu0
  %652 = vdwg.mxu0
  %v653 = vrcp.pop %v615
  %v654 = vrcp.pop %v620
  %v655 = vrcp.pop %v625
  %v656 = vrcp.pop %v630
  %v657 = vrcp.pop %v635
  %v658 = vrcp.pop %v640
  %v659 = vrcp.pop %v645
  %v660 = vrcp.pop %v650
  %vm661 = vcmp.lt.s32.totalorder %v434, 2
  %v662 = vmul.f32 %v653, 2.0
  %v663 = vmul.f32 %v654, 2.0
  %v664 = vmul.f32 %v655, 2.0
  %v665 = vmul.f32 %v656, 2.0
  %v666 = vmul.f32 %v657, 2.0
  %v667 = vmul.f32 %v658, 2.0
  %v668 = vmul.f32 %v659, 2.0
  %v669 = vmul.f32 %v660, 2.0
  %671 = vset.pattern.permute.xlu0 5
  %672 = vperm.xlu0 %671, %v662
  %v673 = vpop.permute.xlu0 %672
  %676 = vset.pattern.permute.xlu0 5
  %677 = vperm.xlu0 %676, %v663
  %v678 = vpop.permute.xlu0 %677
  %681 = vset.pattern.permute.xlu0 5
  %682 = vperm.xlu0 %681, %v664
  %v683 = vpop.permute.xlu0 %682
  %686 = vset.pattern.permute.xlu0 5
  %687 = vperm.xlu0 %686, %v665
  %v688 = vpop.permute.xlu0 %687
  %691 = vset.pattern.permute.xlu0 5
  %692 = vperm.xlu0 %691, %v666
  %v693 = vpop.permute.xlu0 %692
  %696 = vset.pattern.permute.xlu0 5
  %697 = vperm.xlu0 %696, %v667
  %v698 = vpop.permute.xlu0 %697
  %701 = vset.pattern.permute.xlu0 5
  %702 = vperm.xlu0 %701, %v668
  %v703 = vpop.permute.xlu0 %702
  %706 = vset.pattern.permute.xlu0 5
  %707 = vperm.xlu0 %706, %v669
  %v708 = vpop.permute.xlu0 %707
  %v710 = vmul.f32 %v673, %v615
  %v711 = vmul.f32 %v678, %v620
  %v712 = vmul.f32 %v683, %v625
  %v713 = vmul.f32 %v688, %v630
  %v714 = vmul.f32 %v693, %v635
  %v715 = vmul.f32 %v698, %v640
  %v716 = vmul.f32 %v703, %v645
  %v717 = vmul.f32 %v708, %v650
  %v718 = vsel %vm661, %v710, %v615
  %v719 = vsel %vm661, %v711, %v620
  %v720 = vsel %vm661, %v712, %v625
  %v721 = vsel %vm661, %v713, %v630
  %v722 = vsel %vm661, %v714, %v635
  %v723 = vsel %vm661, %v715, %v640
  %v724 = vsel %vm661, %v716, %v645
  %v725 = vsel %vm661, %v717, %v650
  %v726 = vsel %vm516, %v394, %v718
  %v727 = vsel %vm516, %v395, %v719
  %v728 = vsel %vm516, %v396, %v720
  %v729 = vsel %vm516, %v397, %v721
  %v730 = vsel %vm516, %v398, %v722
  %v731 = vsel %vm516, %v399, %v723
  %v732 = vsel %vm516, %v400, %v724
  %v733 = vsel %vm516, %v401, %v725
  %v734 = vlaneseq
  %v735 = vshrl.u32 %v734, 7
  %v736 = vsub.s32 0, %v735
  %v737 = vrot.slane %v27, %v736
  %vm738 = vcmask 48128
  %v740 = vsel %vm738, %v726, 0
  %v743 = vsel %vm738, %v727, 0
  %v746 = vsel %vm738, %v728, 0
  %v749 = vsel %vm738, %v729, 0
  %v752 = vsel %vm738, %v730, 0
  %v755 = vsel %vm738, %v731, 0
  %v758 = vsel %vm738, %v732, 0
  %v761 = vsel %vm738, %v733, 0
  %vm763 = vcmask 1045504
  %v765 = vsel %vm763, %v26, 0
  %767 = vmatprep.subr.mxu0 0.0
  %768 = vmatpush1.msra.mxu0 %v765
  %769 = vmatprep.subr.mxu0 0.0
  %770 = vmatpush1.msra.mxu0 0.0
  %771 = vmatprep.subr.mxu0 0.0
  %772 = vmatpush1.msra.mxu0 0.0
  %773 = vmatprep.subr.mxu0 0.0
  %774 = vmatpush1.msra.mxu0 0.0
  %775 = vmatprep.subr.mxu0 0.0
  %776 = vmatpush1.msra.mxu0 0.0
  %777 = vmatprep.subr.mxu0 0.0
  %778 = vmatpush1.msra.mxu0 0.0
  %779 = vmatprep.subr.mxu0 0.0
  %780 = vmatpush1.msra.mxu0 0.0
  %781 = vmatprep.subr.mxu0 0.0
  %782 = vmatpush1.msra.mxu0 0.0
  %783 = vmatprep.subr.mxu0 0.0
  %784 = vmatpush1.msra.mxu0 0.0
  %785 = vmatprep.subr.mxu0 0.0
  %786 = vmatpush1.msra.mxu0 0.0
  %787 = vmatprep.subr.mxu0 0.0
  %788 = vmatpush1.msra.mxu0 0.0
  %789 = vmatprep.subr.mxu0 0.0
  %790 = vmatpush1.msra.mxu0 0.0
  %791 = vmatprep.subr.mxu0 0.0
  %792 = vmatpush1.msra.mxu0 0.0
  %793 = vmatprep.subr.mxu0 0.0
  %794 = vmatpush1.msra.mxu0 0.0
  %795 = vmatprep.subr.mxu0 0.0
  %796 = vmatpush1.msra.mxu0 0.0
  %797 = vmatprep.subr.mxu0 0.0
  %798 = vmatpush1.msra.mxu0 0.0
  %799 = vmatprep.subr.mxu0 0.0
  %800 = vmatpush1.msra.mxu0 0.0
  %801 = vmatprep.subr.mxu0 0.0
  %802 = vmatpush1.msra.mxu0 0.0
  %803 = vmatprep.subr.mxu0 0.0
  %804 = vmatpush1.msra.mxu0 0.0
  %805 = vmatprep.subr.mxu0 0.0
  %806 = vmatpush1.msra.mxu0 0.0
  %807 = vmatprep.subr.mxu0 0.0
  %808 = vmatpush1.msra.mxu0 0.0
  %809 = vmatprep.subr.mxu0 0.0
  %810 = vmatpush1.msra.mxu0 0.0
  %811 = vmatprep.subr.mxu0 0.0
  %812 = vmatpush1.msra.mxu0 0.0
  %813 = vmatprep.subr.mxu0 0.0
  %814 = vmatpush1.msra.mxu0 0.0
  %815 = vmatprep.subr.mxu0 0.0
  %816 = vmatpush1.msra.mxu0 0.0
  %817 = vmatprep.subr.mxu0 0.0
  %818 = vmatpush1.msra.mxu0 0.0
  %819 = vmatprep.subr.mxu0 0.0
  %820 = vmatpush1.msra.mxu0 0.0
  %821 = vmatprep.subr.mxu0 0.0
  %822 = vmatpush1.msra.mxu0 0.0
  %823 = vmatprep.subr.mxu0 0.0
  %824 = vmatpush1.msra.mxu0 0.0
  %825 = vmatprep.subr.mxu0 0.0
  %826 = vmatpush1.msra.mxu0 0.0
  %827 = vmatprep.subr.mxu0 0.0
  %828 = vmatpush1.msra.mxu0 0.0
  %829 = vmatprep.subr.mxu0 0.0
  %830 = vmatpush1.msra.mxu0 0.0
  %831 = vmatprep.mubr.f32.mxu0 0.0
  %832 = vmatmul.mubr.f32.gmra.mrb[0].mxu0 %v740
  %v833 = vpop.f32.mrb[0].mxu0
  %v834 = vadd.f32 %v737, %v833
  %v835 = vpop.f32.mrb[0].mxu0
  %836 = vmatprep.mubr.f32.mxu0 0.0
  %837 = vmatmul.mubr.f32.gmra.mrb[0].mxu0 %v743
  %v838 = vpop.f32.mrb[0].mxu0
  %v839 = vadd.f32 %v737, %v838
  %v840 = vpop.f32.mrb[0].mxu0
  %841 = vmatprep.mubr.f32.mxu0 0.0
  %842 = vmatmul.mubr.f32.gmra.mrb[0].mxu0 %v746
  %v843 = vpop.f32.mrb[0].mxu0
  %v844 = vadd.f32 %v737, %v843
  %v845 = vpop.f32.mrb[0].mxu0
  %846 = vmatprep.mubr.f32.mxu0 0.0
  %847 = vmatmul.mubr.f32.gmra.mrb[0].mxu0 %v749
  %v848 = vpop.f32.mrb[0].mxu0
  %v849 = vadd.f32 %v737, %v848
  %v850 = vpop.f32.mrb[0].mxu0
  %851 = vmatprep.mubr.f32.mxu0 0.0
  %852 = vmatmul.mubr.f32.gmra.mrb[0].mxu0 %v752
  %v853 = vpop.f32.mrb[0].mxu0
  %v854 = vadd.f32 %v737, %v853
  %v855 = vpop.f32.mrb[0].mxu0
  %856 = vmatprep.mubr.f32.mxu0 0.0
  %857 = vmatmul.mubr.f32.gmra.mrb[0].mxu0 %v755
  %v858 = vpop.f32.mrb[0].mxu0
  %v859 = vadd.f32 %v737, %v858
  %v860 = vpop.f32.mrb[0].mxu0
  %861 = vmatprep.mubr.f32.mxu0 0.0
  %862 = vmatmul.mubr.f32.gmra.mrb[0].mxu0 %v758
  %v863 = vpop.f32.mrb[0].mxu0
  %v864 = vadd.f32 %v737, %v863
  %v865 = vpop.f32.mrb[0].mxu0
  %866 = vmatprep.mubr.f32.mxu0 0.0
  %867 = vmatmul.mubr.f32.gmra.mrb[0].mxu0 %v761
  %v868 = vpop.f32.mrb[0].mxu0
  %v869 = vadd.f32 %v737, %v868
  %v870 = vpop.f32.mrb[0].mxu0
  %871 = vdwg.mxu0
  %v872 = vmax.f32 %v834, 0.0
  %v873 = vmax.f32 %v839, 0.0
  %v874 = vmax.f32 %v844, 0.0
  %v875 = vmax.f32 %v849, 0.0
  %v876 = vmax.f32 %v854, 0.0
  %v877 = vmax.f32 %v859, 0.0
  %v878 = vmax.f32 %v864, 0.0
  %v879 = vmax.f32 %v869, 0.0
  %v880 = vlaneseq
  %v881 = vshrl.u32 %v880, 7
  %v882 = vsub.s32 0, %v881
  %v883 = vrot.slane %v30, %v882
  %v885 = vsel %vm531, %v872, 0
  %v888 = vsel %vm531, %v873, 0
  %v891 = vsel %vm531, %v874, 0
  %v894 = vsel %vm531, %v875, 0
  %v897 = vsel %vm531, %v876, 0
  %v900 = vsel %vm531, %v877, 0
  %v903 = vsel %vm531, %v878, 0
  %v906 = vsel %vm531, %v879, 0
  %908 = vmatprep.subr.mxu0 0.0
  %909 = vmatpush1.msra.mxu0 %v28
  %910 = vmatprep.subr.mxu0 0.0
  %911 = vmatpush1.msra.mxu0 %v29
  %912 = vmatprep.subr.mxu0 0.0
  %913 = vmatpush1.msra.mxu0 0.0
  %914 = vmatprep.subr.mxu0 0.0
  %915 = vmatpush1.msra.mxu0 0.0
  %916 = vmatprep.subr.mxu0 0.0
  %917 = vmatpush1.msra.mxu0 0.0
  %918 = vmatprep.subr.mxu0 0.0
  %919 = vmatpush1.msra.mxu0 0.0
  %920 = vmatprep.subr.mxu0 0.0
  %921 = vmatpush1.msra.mxu0 0.0
  %922 = vmatprep.subr.mxu0 0.0
  %923 = vmatpush1.msra.mxu0 0.0
  %924 = vmatprep.subr.mxu0 0.0
  %925 = vmatpush1.msra.mxu0 0.0
  %926 = vmatprep.subr.mxu0 0.0
  %927 = vmatpush1.msra.mxu0 0.0
  %928 = vmatprep.subr.mxu0 0.0
  %929 = vmatpush1.msra.mxu0 0.0
  %930 = vmatprep.subr.mxu0 0.0
  %931 = vmatpush1.msra.mxu0 0.0
  %932 = vmatprep.subr.mxu0 0.0
  %933 = vmatpush1.msra.mxu0 0.0
  %934 = vmatprep.subr.mxu0 0.0
  %935 = vmatpush1.msra.mxu0 0.0
  %936 = vmatprep.subr.mxu0 0.0
  %937 = vmatpush1.msra.mxu0 0.0
  %938 = vmatprep.subr.mxu0 0.0
  %939 = vmatpush1.msra.mxu0 0.0
  %940 = vmatprep.subr.mxu0 0.0
  %941 = vmatpush1.msra.mxu0 0.0
  %942 = vmatprep.subr.mxu0 0.0
  %943 = vmatpush1.msra.mxu0 0.0
  %944 = vmatprep.subr.mxu0 0.0
  %945 = vmatpush1.msra.mxu0 0.0
  %946 = vmatprep.subr.mxu0 0.0
  %947 = vmatpush1.msra.mxu0 0.0
  %948 = vmatprep.subr.mxu0 0.0
  %949 = vmatpush1.msra.mxu0 0.0
  %950 = vmatprep.subr.mxu0 0.0
  %951 = vmatpush1.msra.mxu0 0.0
  %952 = vmatprep.subr.mxu0 0.0
  %953 = vmatpush1.msra.mxu0 0.0
  %954 = vmatprep.subr.mxu0 0.0
  %955 = vmatpush1.msra.mxu0 0.0
  %956 = vmatprep.subr.mxu0 0.0
  %957 = vmatpush1.msra.mxu0 0.0
  %958 = vmatprep.subr.mxu0 0.0
  %959 = vmatpush1.msra.mxu0 0.0
  %960 = vmatprep.subr.mxu0 0.0
  %961 = vmatpush1.msra.mxu0 0.0
  %962 = vmatprep.subr.mxu0 0.0
  %963 = vmatpush1.msra.mxu0 0.0
  %964 = vmatprep.subr.mxu0 0.0
  %965 = vmatpush1.msra.mxu0 0.0
  %966 = vmatprep.subr.mxu0 0.0
  %967 = vmatpush1.msra.mxu0 0.0
  %968 = vmatprep.subr.mxu0 0.0
  %969 = vmatpush1.msra.mxu0 0.0
  %970 = vmatprep.subr.mxu0 0.0
  %971 = vmatpush1.msra.mxu0 0.0
  %972 = vmatprep.mubr.f32.mxu0 0.0
  %973 = vmatmul.mubr.f32.gmra.mrb[0].mxu0 %v885
  %v974 = vpop.f32.mrb[0].mxu0
  %v975 = vadd.f32 %v883, %v974
  %v976 = vpop.f32.mrb[0].mxu0
  %977 = vmatprep.mubr.f32.mxu0 0.0
  %978 = vmatmul.mubr.f32.gmra.mrb[0].mxu0 %v888
  %v979 = vpop.f32.mrb[0].mxu0
  %v980 = vadd.f32 %v883, %v979
  %v981 = vpop.f32.mrb[0].mxu0
  %982 = vmatprep.mubr.f32.mxu0 0.0
  %983 = vmatmul.mubr.f32.gmra.mrb[0].mxu0 %v891
  %v984 = vpop.f32.mrb[0].mxu0
  %v985 = vadd.f32 %v883, %v984
  %v986 = vpop.f32.mrb[0].mxu0
  %987 = vmatprep.mubr.f32.mxu0 0.0
  %988 = vmatmul.mubr.f32.gmra.mrb[0].mxu0 %v894
  %v989 = vpop.f32.mrb[0].mxu0
  %v990 = vadd.f32 %v883, %v989
  %v991 = vpop.f32.mrb[0].mxu0
  %992 = vmatprep.mubr.f32.mxu0 0.0
  %993 = vmatmul.mubr.f32.gmra.mrb[0].mxu0 %v897
  %v994 = vpop.f32.mrb[0].mxu0
  %v995 = vadd.f32 %v883, %v994
  %v996 = vpop.f32.mrb[0].mxu0
  %997 = vmatprep.mubr.f32.mxu0 0.0
  %998 = vmatmul.mubr.f32.gmra.mrb[0].mxu0 %v900
  %v999 = vpop.f32.mrb[0].mxu0
  %v1000 = vadd.f32 %v883, %v999
  %v1001 = vpop.f32.mrb[0].mxu0
  %1002 = vmatprep.mubr.f32.mxu0 0.0
  %1003 = vmatmul.mubr.f32.gmra.mrb[0].mxu0 %v903
  %v1004 = vpop.f32.mrb[0].mxu0
  %v1005 = vadd.f32 %v883, %v1004
  %v1006 = vpop.f32.mrb[0].mxu0
  %1007 = vmatprep.mubr.f32.mxu0 0.0
  %1008 = vmatmul.mubr.f32.gmra.mrb[0].mxu0 %v906
  %v1009 = vpop.f32.mrb[0].mxu0
  %v1010 = vadd.f32 %v883, %v1009
  %v1011 = vpop.f32.mrb[0].mxu0
  %1012 = vdwg.mxu0
  %v1013 = vmax.f32 %v975, 0.0
  %v1014 = vmax.f32 %v980, 0.0
  %v1015 = vmax.f32 %v985, 0.0
  %v1016 = vmax.f32 %v990, 0.0
  %v1017 = vmax.f32 %v995, 0.0
  %v1018 = vmax.f32 %v1000, 0.0
  %v1019 = vmax.f32 %v1005, 0.0
  %v1020 = vmax.f32 %v1010, 0.0
  %v1021 = vlaneseq
  %v1022 = vshrl.u32 %v1021, 7
  %v1023 = vsub.s32 0, %v1022
  %v1024 = vrot.slane %v25, %v1023
  %v1025 = vsel %vm68, %v64, 0
  %v1027 = vsel %vm68, %v65, 0
  %1029 = vmatprep.subr.mxu0 0.0
  %1030 = vmatpush1.msra.mxu0 %v21
  %1031 = vmatprep.subr.mxu0 0.0
  %1032 = vmatpush1.msra.mxu0 %v22
  %1033 = vmatprep.subr.mxu0 0.0
  %1034 = vmatpush1.msra.mxu0 %v23
  %1035 = vmatprep.subr.mxu0 0.0
  %1036 = vmatpush1.msra.mxu0 %v24
  %1037 = vmatprep.subr.mxu0 0.0
  %1038 = vmatpush1.msra.mxu0 0.0
  %1039 = vmatprep.subr.mxu0 0.0
  %1040 = vmatpush1.msra.mxu0 0.0
  %1041 = vmatprep.subr.mxu0 0.0
  %1042 = vmatpush1.msra.mxu0 0.0
  %1043 = vmatprep.subr.mxu0 0.0
  %1044 = vmatpush1.msra.mxu0 0.0
  %1045 = vmatprep.subr.mxu0 0.0
  %1046 = vmatpush1.msra.mxu0 0.0
  %1047 = vmatprep.subr.mxu0 0.0
  %1048 = vmatpush1.msra.mxu0 0.0
  %1049 = vmatprep.subr.mxu0 0.0
  %1050 = vmatpush1.msra.mxu0 0.0
  %1051 = vmatprep.subr.mxu0 0.0
  %1052 = vmatpush1.msra.mxu0 0.0
  %1053 = vmatprep.subr.mxu0 0.0
  %1054 = vmatpush1.msra.mxu0 0.0
  %1055 = vmatprep.subr.mxu0 0.0
  %1056 = vmatpush1.msra.mxu0 0.0
  %1057 = vmatprep.subr.mxu0 0.0
  %1058 = vmatpush1.msra.mxu0 0.0
  %1059 = vmatprep.subr.mxu0 0.0
  %1060 = vmatpush1.msra.mxu0 0.0
  %1061 = vmatprep.subr.mxu0 0.0
  %1062 = vmatpush1.msra.mxu0 0.0
  %1063 = vmatprep.subr.mxu0 0.0
  %1064 = vmatpush1.msra.mxu0 0.0
  %1065 = vmatprep.subr.mxu0 0.0
  %1066 = vmatpush1.msra.mxu0 0.0
  %1067 = vmatprep.subr.mxu0 0.0
  %1068 = vmatpush1.msra.mxu0 0.0
  %1069 = vmatprep.subr.mxu0 0.0
  %1070 = vmatpush1.msra.mxu0 0.0
  %1071 = vmatprep.subr.mxu0 0.0
  %1072 = vmatpush1.msra.mxu0 0.0
  %1073 = vmatprep.subr.mxu0 0.0
  %1074 = vmatpush1.msra.mxu0 0.0
  %1075 = vmatprep.subr.mxu0 0.0
  %1076 = vmatpush1.msra.mxu0 0.0
  %1077 = vmatprep.subr.mxu0 0.0
  %1078 = vmatpush1.msra.mxu0 0.0
  %1079 = vmatprep.subr.mxu0 0.0
  %1080 = vmatpush1.msra.mxu0 0.0
  %1081 = vmatprep.subr.mxu0 0.0
  %1082 = vmatpush1.msra.mxu0 0.0
  %1083 = vmatprep.subr.mxu0 0.0
  %1084 = vmatpush1.msra.mxu0 0.0
  %1085 = vmatprep.subr.mxu0 0.0
  %1086 = vmatpush1.msra.mxu0 0.0
  %1087 = vmatprep.subr.mxu0 0.0
  %1088 = vmatpush1.msra.mxu0 0.0
  %1089 = vmatprep.subr.mxu0 0.0
  %1090 = vmatpush1.msra.mxu0 0.0
  %1091 = vmatprep.subr.mxu0 0.0
  %1092 = vmatpush1.msra.mxu0 0.0
  %1093 = vmatprep.mubr.f32.mxu0 0.0
  %1094 = vmatmul.mubr.f32.gmra.mrb[0].mxu0 %v1025
  %v1095 = vpop.f32.mrb[0].mxu0
  %v1096 = vadd.f32 %v1024, %v1095
  %v1097 = vpop.f32.mrb[0].mxu0
  %1098 = vmatprep.mubr.f32.mxu0 0.0
  %1099 = vmatmul.mubr.f32.gmra.mrb[0].mxu0 %v1027
  %v1100 = vpop.f32.mrb[0].mxu0
  %v1101 = vadd.f32 %v1024, %v1100
  %v1102 = vpop.f32.mrb[0].mxu0
  %1103 = vdwg.mxu0
  %v1104 = vmax.f32 %v1096, 0.0
  %v1105 = vmax.f32 %v1101, 0.0
  %v1106 = vlaneseq
  %v1107 = vshrl.u32 %v1106, 7
  %v1108 = vsub.s32 0, %v1107
  %v1109 = vrot.slane %v43, %v1108
  %v1111 = vsel %vm531, %v1013, 0
  %v1114 = vsel %vm531, %v1014, 0
  %v1117 = vsel %vm531, %v1015, 0
  %v1120 = vsel %vm531, %v1016, 0
  %v1123 = vsel %vm531, %v1017, 0
  %v1126 = vsel %vm531, %v1018, 0
  %v1129 = vsel %vm531, %v1019, 0
  %v1132 = vsel %vm531, %v1020, 0
  %1134 = vmatprep.subr.mxu0 0.0
  %1135 = vmatpush1.msra.mxu0 %v41
  %1136 = vmatprep.subr.mxu0 0.0
  %1137 = vmatpush1.msra.mxu0 %v42
  %1138 = vmatprep.subr.mxu0 0.0
  %1139 = vmatpush1.msra.mxu0 0.0
  %1140 = vmatprep.subr.mxu0 0.0
  %1141 = vmatpush1.msra.mxu0 0.0
  %1142 = vmatprep.subr.mxu0 0.0
  %1143 = vmatpush1.msra.mxu0 0.0
  %1144 = vmatprep.subr.mxu0 0.0
  %1145 = vmatpush1.msra.mxu0 0.0
  %1146 = vmatprep.subr.mxu0 0.0
  %1147 = vmatpush1.msra.mxu0 0.0
  %1148 = vmatprep.subr.mxu0 0.0
  %1149 = vmatpush1.msra.mxu0 0.0
  %1150 = vmatprep.subr.mxu0 0.0
  %1151 = vmatpush1.msra.mxu0 0.0
  %1152 = vmatprep.subr.mxu0 0.0
  %1153 = vmatpush1.msra.mxu0 0.0
  %1154 = vmatprep.subr.mxu0 0.0
  %1155 = vmatpush1.msra.mxu0 0.0
  %1156 = vmatprep.subr.mxu0 0.0
  %1157 = vmatpush1.msra.mxu0 0.0
  %1158 = vmatprep.subr.mxu0 0.0
  %1159 = vmatpush1.msra.mxu0 0.0
  %1160 = vmatprep.subr.mxu0 0.0
  %1161 = vmatpush1.msra.mxu0 0.0
  %1162 = vmatprep.subr.mxu0 0.0
  %1163 = vmatpush1.msra.mxu0 0.0
  %1164 = vmatprep.subr.mxu0 0.0
  %1165 = vmatpush1.msra.mxu0 0.0
  %1166 = vmatprep.subr.mxu0 0.0
  %1167 = vmatpush1.msra.mxu0 0.0
  %1168 = vmatprep.subr.mxu0 0.0
  %1169 = vmatpush1.msra.mxu0 0.0
  %1170 = vmatprep.subr.mxu0 0.0
  %1171 = vmatpush1.msra.mxu0 0.0
  %1172 = vmatprep.subr.mxu0 0.0
  %1173 = vmatpush1.msra.mxu0 0.0
  %1174 = vmatprep.subr.mxu0 0.0
  %1175 = vmatpush1.msra.mxu0 0.0
  %1176 = vmatprep.subr.mxu0 0.0
  %1177 = vmatpush1.msra.mxu0 0.0
  %1178 = vmatprep.subr.mxu0 0.0
  %1179 = vmatpush1.msra.mxu0 0.0
  %1180 = vmatprep.subr.mxu0 0.0
  %1181 = vmatpush1.msra.mxu0 0.0
  %1182 = vmatprep.subr.mxu0 0.0
  %1183 = vmatpush1.msra.mxu0 0.0
  %1184 = vmatprep.subr.mxu0 0.0
  %1185 = vmatpush1.msra.mxu0 0.0
  %1186 = vmatprep.subr.mxu0 0.0
  %1187 = vmatpush1.msra.mxu0 0.0
  %1188 = vmatprep.subr.mxu0 0.0
  %1189 = vmatpush1.msra.mxu0 0.0
  %1190 = vmatprep.subr.mxu0 0.0
  %1191 = vmatpush1.msra.mxu0 0.0
  %1192 = vmatprep.subr.mxu0 0.0
  %1193 = vmatpush1.msra.mxu0 0.0
  %1194 = vmatprep.subr.mxu0 0.0
  %1195 = vmatpush1.msra.mxu0 0.0
  %1196 = vmatprep.subr.mxu0 0.0
  %1197 = vmatpush1.msra.mxu0 0.0
  %1198 = vmatprep.mubr.f32.mxu0 0.0
  %1199 = vmatmul.mubr.f32.gmra.mrb[0].mxu0 %v1111
  %v1200 = vpop.f32.mrb[0].mxu0
  %v1201 = vadd.f32 %v1109, %v1200
  %v1202 = vpop.f32.mrb[0].mxu0
  %1203 = vmatprep.mubr.f32.mxu0 0.0
  %1204 = vmatmul.mubr.f32.gmra.mrb[0].mxu0 %v1114
  %v1205 = vpop.f32.mrb[0].mxu0
  %v1206 = vadd.f32 %v1109, %v1205
  %v1207 = vpop.f32.mrb[0].mxu0
  %1208 = vmatprep.mubr.f32.mxu0 0.0
  %1209 = vmatmul.mubr.f32.gmra.mrb[0].mxu0 %v1117
  %v1210 = vpop.f32.mrb[0].mxu0
  %v1211 = vadd.f32 %v1109, %v1210
  %v1212 = vpop.f32.mrb[0].mxu0
  %1213 = vmatprep.mubr.f32.mxu0 0.0
  %1214 = vmatmul.mubr.f32.gmra.mrb[0].mxu0 %v1120
  %v1215 = vpop.f32.mrb[0].mxu0
  %v1216 = vadd.f32 %v1109, %v1215
  %v1217 = vpop.f32.mrb[0].mxu0
  %1218 = vmatprep.mubr.f32.mxu0 0.0
  %1219 = vmatmul.mubr.f32.gmra.mrb[0].mxu0 %v1123
  %v1220 = vpop.f32.mrb[0].mxu0
  %v1221 = vadd.f32 %v1109, %v1220
  %v1222 = vpop.f32.mrb[0].mxu0
  %1223 = vmatprep.mubr.f32.mxu0 0.0
  %1224 = vmatmul.mubr.f32.gmra.mrb[0].mxu0 %v1126
  %v1225 = vpop.f32.mrb[0].mxu0
  %v1226 = vadd.f32 %v1109, %v1225
  %v1227 = vpop.f32.mrb[0].mxu0
  %1228 = vmatprep.mubr.f32.mxu0 0.0
  %1229 = vmatmul.mubr.f32.gmra.mrb[0].mxu0 %v1129
  %v1230 = vpop.f32.mrb[0].mxu0
  %v1231 = vadd.f32 %v1109, %v1230
  %v1232 = vpop.f32.mrb[0].mxu0
  %1233 = vmatprep.mubr.f32.mxu0 0.0
  %1234 = vmatmul.mubr.f32.gmra.mrb[0].mxu0 %v1132
  %v1235 = vpop.f32.mrb[0].mxu0
  %v1236 = vadd.f32 %v1109, %v1235
  %v1237 = vpop.f32.mrb[0].mxu0
  %1238 = vdwg.mxu0
  %v1239 = vsel %vm429, 1.0, 0.0
  %v1240 = vsel %vm430, 1.0, 0.0
  %v1241 = vmul.f32 %v1104, %v1239
  %v1242 = vmul.f32 %v1105, %v1240
  %v1243 = vsub.f32 %v1104, %v1241
  %v1244 = vsub.f32 %v1105, %v1242
  %v1246 = vsel %vm68, %v1243, 0
  %v1249 = vsel %vm68, %v1244, 0
  %1251 = vmatprep.subr.mxu0 0.0
  %1252 = vmatpush1.msra.mxu0 %v35
  %1253 = vmatprep.subr.mxu0 0.0
  %1254 = vmatpush1.msra.mxu0 %v36
  %1255 = vmatprep.subr.mxu0 0.0
  %1256 = vmatpush1.msra.mxu0 %v37
  %1257 = vmatprep.subr.mxu0 0.0
  %1258 = vmatpush1.msra.mxu0 %v38
  %1259 = vmatprep.subr.mxu0 0.0
  %1260 = vmatpush1.msra.mxu0 0.0
  %1261 = vmatprep.subr.mxu0 0.0
  %1262 = vmatpush1.msra.mxu0 0.0
  %1263 = vmatprep.subr.mxu0 0.0
  %1264 = vmatpush1.msra.mxu0 0.0
  %1265 = vmatprep.subr.mxu0 0.0
  %1266 = vmatpush1.msra.mxu0 0.0
  %1267 = vmatprep.subr.mxu0 0.0
  %1268 = vmatpush1.msra.mxu0 0.0
  %1269 = vmatprep.subr.mxu0 0.0
  %1270 = vmatpush1.msra.mxu0 0.0
  %1271 = vmatprep.subr.mxu0 0.0
  %1272 = vmatpush1.msra.mxu0 0.0
  %1273 = vmatprep.subr.mxu0 0.0
  %1274 = vmatpush1.msra.mxu0 0.0
  %1275 = vmatprep.subr.mxu0 0.0
  %1276 = vmatpush1.msra.mxu0 0.0
  %1277 = vmatprep.subr.mxu0 0.0
  %1278 = vmatpush1.msra.mxu0 0.0
  %1279 = vmatprep.subr.mxu0 0.0
  %1280 = vmatpush1.msra.mxu0 0.0
  %1281 = vmatprep.subr.mxu0 0.0
  %1282 = vmatpush1.msra.mxu0 0.0
  %1283 = vmatprep.subr.mxu0 0.0
  %1284 = vmatpush1.msra.mxu0 0.0
  %1285 = vmatprep.subr.mxu0 0.0
  %1286 = vmatpush1.msra.mxu0 0.0
  %1287 = vmatprep.subr.mxu0 0.0
  %1288 = vmatpush1.msra.mxu0 0.0
  %1289 = vmatprep.subr.mxu0 0.0
  %1290 = vmatpush1.msra.mxu0 0.0
  %1291 = vmatprep.subr.mxu0 0.0
  %1292 = vmatpush1.msra.mxu0 0.0
  %1293 = vmatprep.subr.mxu0 0.0
  %1294 = vmatpush1.msra.mxu0 0.0
  %1295 = vmatprep.subr.mxu0 0.0
  %1296 = vmatpush1.msra.mxu0 0.0
  %1297 = vmatprep.subr.mxu0 0.0
  %1298 = vmatpush1.msra.mxu0 0.0
  %1299 = vmatprep.subr.mxu0 0.0
  %1300 = vmatpush1.msra.mxu0 0.0
  %1301 = vmatprep.subr.mxu0 0.0
  %1302 = vmatpush1.msra.mxu0 0.0
  %1303 = vmatprep.subr.mxu0 0.0
  %1304 = vmatpush1.msra.mxu0 0.0
  %1305 = vmatprep.subr.mxu0 0.0
  %1306 = vmatpush1.msra.mxu0 0.0
  %1307 = vmatprep.subr.mxu0 0.0
  %1308 = vmatpush1.msra.mxu0 0.0
  %1309 = vmatprep.subr.mxu0 0.0
  %1310 = vmatpush1.msra.mxu0 0.0
  %1311 = vmatprep.subr.mxu0 0.0
  %1312 = vmatpush1.msra.mxu0 0.0
  %1313 = vmatprep.subr.mxu0 0.0
  %1314 = vmatpush1.msra.mxu0 0.0
  %1315 = vmatprep.mubr.f32.mxu0 0.0
  %1316 = vmatmul.mubr.f32.gmra.mrb[0].mxu0 %v1246
  %v1317 = vpop.f32.mrb[0].mxu0
  %v1318 = vadd.f32 0.0, %v1317
  %v1319 = vpop.f32.mrb[0].mxu0
  %1320 = vmatprep.mubr.f32.mxu0 0.0
  %1321 = vmatmul.mubr.f32.gmra.mrb[0].mxu0 %v1249
  %v1322 = vpop.f32.mrb[0].mxu0
  %v1323 = vadd.f32 0.0, %v1322
  %v1324 = vpop.f32.mrb[0].mxu0
  %1325 = vdwg.mxu0
  %v1327 = vsel %vm68, %v1241, 0
  %v1330 = vsel %vm68, %v1242, 0
  %1332 = vmatprep.subr.mxu0 0.0
  %1333 = vmatpush1.msra.mxu0 %v31
  %1334 = vmatprep.subr.mxu0 0.0
  %1335 = vmatpush1.msra.mxu0 %v32
  %1336 = vmatprep.subr.mxu0 0.0
  %1337 = vmatpush1.msra.mxu0 %v33
  %1338 = vmatprep.subr.mxu0 0.0
  %1339 = vmatpush1.msra.mxu0 %v34
  %1340 = vmatprep.subr.mxu0 0.0
  %1341 = vmatpush1.msra.mxu0 0.0
  %1342 = vmatprep.subr.mxu0 0.0
  %1343 = vmatpush1.msra.mxu0 0.0
  %1344 = vmatprep.subr.mxu0 0.0
  %1345 = vmatpush1.msra.mxu0 0.0
  %1346 = vmatprep.subr.mxu0 0.0
  %1347 = vmatpush1.msra.mxu0 0.0
  %1348 = vmatprep.subr.mxu0 0.0
  %1349 = vmatpush1.msra.mxu0 0.0
  %1350 = vmatprep.subr.mxu0 0.0
  %1351 = vmatpush1.msra.mxu0 0.0
  %1352 = vmatprep.subr.mxu0 0.0
  %1353 = vmatpush1.msra.mxu0 0.0
  %1354 = vmatprep.subr.mxu0 0.0
  %1355 = vmatpush1.msra.mxu0 0.0
  %1356 = vmatprep.subr.mxu0 0.0
  %1357 = vmatpush1.msra.mxu0 0.0
  %1358 = vmatprep.subr.mxu0 0.0
  %1359 = vmatpush1.msra.mxu0 0.0
  %1360 = vmatprep.subr.mxu0 0.0
  %1361 = vmatpush1.msra.mxu0 0.0
  %1362 = vmatprep.subr.mxu0 0.0
  %1363 = vmatpush1.msra.mxu0 0.0
  %1364 = vmatprep.subr.mxu0 0.0
  %1365 = vmatpush1.msra.mxu0 0.0
  %1366 = vmatprep.subr.mxu0 0.0
  %1367 = vmatpush1.msra.mxu0 0.0
  %1368 = vmatprep.subr.mxu0 0.0
  %1369 = vmatpush1.msra.mxu0 0.0
  %1370 = vmatprep.subr.mxu0 0.0
  %1371 = vmatpush1.msra.mxu0 0.0
  %1372 = vmatprep.subr.mxu0 0.0
  %1373 = vmatpush1.msra.mxu0 0.0
  %1374 = vmatprep.subr.mxu0 0.0
  %1375 = vmatpush1.msra.mxu0 0.0
  %1376 = vmatprep.subr.mxu0 0.0
  %1377 = vmatpush1.msra.mxu0 0.0
  %1378 = vmatprep.subr.mxu0 0.0
  %1379 = vmatpush1.msra.mxu0 0.0
  %1380 = vmatprep.subr.mxu0 0.0
  %1381 = vmatpush1.msra.mxu0 0.0
  %1382 = vmatprep.subr.mxu0 0.0
  %1383 = vmatpush1.msra.mxu0 0.0
  %1384 = vmatprep.subr.mxu0 0.0
  %1385 = vmatpush1.msra.mxu0 0.0
  %1386 = vmatprep.subr.mxu0 0.0
  %1387 = vmatpush1.msra.mxu0 0.0
  %1388 = vmatprep.subr.mxu0 0.0
  %1389 = vmatpush1.msra.mxu0 0.0
  %1390 = vmatprep.subr.mxu0 0.0
  %1391 = vmatpush1.msra.mxu0 0.0
  %1392 = vmatprep.subr.mxu0 0.0
  %1393 = vmatpush1.msra.mxu0 0.0
  %1394 = vmatprep.subr.mxu0 0.0
  %1395 = vmatpush1.msra.mxu0 0.0
  %1396 = vmatprep.mubr.f32.mxu0 0.0
  %1397 = vmatmul.mubr.f32.gmra.mrb[0].mxu0 %v1327
  %v1398 = vpop.f32.mrb[0].mxu0
  %v1399 = vadd.f32 %v1318, %v1398
  %v1400 = vpop.f32.mrb[0].mxu0
  %1401 = vmatprep.mubr.f32.mxu0 0.0
  %1402 = vmatmul.mubr.f32.gmra.mrb[0].mxu0 %v1330
  %v1403 = vpop.f32.mrb[0].mxu0
  %v1404 = vadd.f32 %v1323, %v1403
  %v1405 = vpop.f32.mrb[0].mxu0
  %1406 = vdwg.mxu0
  %1407 = vmatprep.subr.mxu0 0.0
  %1408 = vmatpush1.msra.mxu0 %v39
  %1409 = vmatprep.subr.mxu0 0.0
  %1410 = vmatpush1.msra.mxu0 %v40
  %1411 = vmatprep.subr.mxu0 0.0
  %1412 = vmatpush1.msra.mxu0 0.0
  %1413 = vmatprep.subr.mxu0 0.0
  %1414 = vmatpush1.msra.mxu0 0.0
  %1415 = vmatprep.subr.mxu0 0.0
  %1416 = vmatpush1.msra.mxu0 0.0
  %1417 = vmatprep.subr.mxu0 0.0
  %1418 = vmatpush1.msra.mxu0 0.0
  %1419 = vmatprep.subr.mxu0 0.0
  %1420 = vmatpush1.msra.mxu0 0.0
  %1421 = vmatprep.subr.mxu0 0.0
  %1422 = vmatpush1.msra.mxu0 0.0
  %1423 = vmatprep.subr.mxu0 0.0
  %1424 = vmatpush1.msra.mxu0 0.0
  %1425 = vmatprep.subr.mxu0 0.0
  %1426 = vmatpush1.msra.mxu0 0.0
  %1427 = vmatprep.subr.mxu0 0.0
  %1428 = vmatpush1.msra.mxu0 0.0
  %1429 = vmatprep.subr.mxu0 0.0
  %1430 = vmatpush1.msra.mxu0 0.0
  %1431 = vmatprep.subr.mxu0 0.0
  %1432 = vmatpush1.msra.mxu0 0.0
  %1433 = vmatprep.subr.mxu0 0.0
  %1434 = vmatpush1.msra.mxu0 0.0
  %1435 = vmatprep.subr.mxu0 0.0
  %1436 = vmatpush1.msra.mxu0 0.0
  %1437 = vmatprep.subr.mxu0 0.0
  %1438 = vmatpush1.msra.mxu0 0.0
  %1439 = vmatprep.subr.mxu0 0.0
  %1440 = vmatpush1.msra.mxu0 0.0
  %1441 = vmatprep.subr.mxu0 0.0
  %1442 = vmatpush1.msra.mxu0 0.0
  %1443 = vmatprep.subr.mxu0 0.0
  %1444 = vmatpush1.msra.mxu0 0.0
  %1445 = vmatprep.subr.mxu0 0.0
  %1446 = vmatpush1.msra.mxu0 0.0
  %1447 = vmatprep.subr.mxu0 0.0
  %1448 = vmatpush1.msra.mxu0 0.0
  %1449 = vmatprep.subr.mxu0 0.0
  %1450 = vmatpush1.msra.mxu0 0.0
  %1451 = vmatprep.subr.mxu0 0.0
  %1452 = vmatpush1.msra.mxu0 0.0
  %1453 = vmatprep.subr.mxu0 0.0
  %1454 = vmatpush1.msra.mxu0 0.0
  %1455 = vmatprep.subr.mxu0 0.0
  %1456 = vmatpush1.msra.mxu0 0.0
  %1457 = vmatprep.subr.mxu0 0.0
  %1458 = vmatpush1.msra.mxu0 0.0
  %1459 = vmatprep.subr.mxu0 0.0
  %1460 = vmatpush1.msra.mxu0 0.0
  %1461 = vmatprep.subr.mxu0 0.0
  %1462 = vmatpush1.msra.mxu0 0.0
  %1463 = vmatprep.subr.mxu0 0.0
  %1464 = vmatpush1.msra.mxu0 0.0
  %1465 = vmatprep.subr.mxu0 0.0
  %1466 = vmatpush1.msra.mxu0 0.0
  %1467 = vmatprep.subr.mxu0 0.0
  %1468 = vmatpush1.msra.mxu0 0.0
  %1469 = vmatprep.subr.mxu0 0.0
  %1470 = vmatpush1.msra.mxu0 0.0
  %1471 = vmatprep.mubr.f32.mxu0 0.0
  %1472 = vmatmul.mubr.f32.gmra.mrb[0].mxu0 %v1111
  %v1473 = vpop.f32.mrb[0].mxu0
  %v1474 = vadd.f32 0.0, %v1473
  %v1475 = vpop.f32.mrb[0].mxu0
  %1476 = vmatprep.mubr.f32.mxu0 0.0
  %1477 = vmatmul.mubr.f32.gmra.mrb[0].mxu0 %v1114
  %v1478 = vpop.f32.mrb[0].mxu0
  %v1479 = vadd.f32 0.0, %v1478
  %v1480 = vpop.f32.mrb[0].mxu0
  %1481 = vmatprep.mubr.f32.mxu0 0.0
  %1482 = vmatmul.mubr.f32.gmra.mrb[0].mxu0 %v1117
  %v1483 = vpop.f32.mrb[0].mxu0
  %v1484 = vadd.f32 0.0, %v1483
  %v1485 = vpop.f32.mrb[0].mxu0
  %1486 = vmatprep.mubr.f32.mxu0 0.0
  %1487 = vmatmul.mubr.f32.gmra.mrb[0].mxu0 %v1120
  %v1488 = vpop.f32.mrb[0].mxu0
  %v1489 = vadd.f32 0.0, %v1488
  %v1490 = vpop.f32.mrb[0].mxu0
  %1491 = vmatprep.mubr.f32.mxu0 0.0
  %1492 = vmatmul.mubr.f32.gmra.mrb[0].mxu0 %v1123
  %v1493 = vpop.f32.mrb[0].mxu0
  %v1494 = vadd.f32 0.0, %v1493
  %v1495 = vpop.f32.mrb[0].mxu0
  %1496 = vmatprep.mubr.f32.mxu0 0.0
  %1497 = vmatmul.mubr.f32.gmra.mrb[0].mxu0 %v1126
  %v1498 = vpop.f32.mrb[0].mxu0
  %v1499 = vadd.f32 0.0, %v1498
  %v1500 = vpop.f32.mrb[0].mxu0
  %1501 = vmatprep.mubr.f32.mxu0 0.0
  %1502 = vmatmul.mubr.f32.gmra.mrb[0].mxu0 %v1129
  %v1503 = vpop.f32.mrb[0].mxu0
  %v1504 = vadd.f32 0.0, %v1503
  %v1505 = vpop.f32.mrb[0].mxu0
  %1506 = vmatprep.mubr.f32.mxu0 0.0
  %1507 = vmatmul.mubr.f32.gmra.mrb[0].mxu0 %v1132
  %v1508 = vpop.f32.mrb[0].mxu0
  %v1509 = vadd.f32 0.0, %v1508
  %v1510 = vpop.f32.mrb[0].mxu0
  %1511 = vdwg.mxu0
  %1512 = vmatprep.subr.mxu0 0.0
  %1513 = vmatpush1.msra.mxu0 %v1399
  %1514 = vmatprep.subr.mxu0 0.0
  %1515 = vmatpush1.msra.mxu0 %v1404
  %1516 = vmatprep.subr.mxu0 0.0
  %1517 = vmatpush1.msra.mxu0 0.0
  %1518 = vmatprep.subr.mxu0 0.0
  %1519 = vmatpush1.msra.mxu0 0.0
  %1520 = vmatprep.subr.mxu0 0.0
  %1521 = vmatpush1.msra.mxu0 0.0
  %1522 = vmatprep.subr.mxu0 0.0
  %1523 = vmatpush1.msra.mxu0 0.0
  %1524 = vmatprep.subr.mxu0 0.0
  %1525 = vmatpush1.msra.mxu0 0.0
  %1526 = vmatprep.subr.mxu0 0.0
  %1527 = vmatpush1.msra.mxu0 0.0
  %1528 = vmatprep.subr.mxu0 0.0
  %1529 = vmatpush1.msra.mxu0 0.0
  %1530 = vmatprep.subr.mxu0 0.0
  %1531 = vmatpush1.msra.mxu0 0.0
  %1532 = vmatprep.subr.mxu0 0.0
  %1533 = vmatpush1.msra.mxu0 0.0
  %1534 = vmatprep.subr.mxu0 0.0
  %1535 = vmatpush1.msra.mxu0 0.0
  %1536 = vmatprep.subr.mxu0 0.0
  %1537 = vmatpush1.msra.mxu0 0.0
  %1538 = vmatprep.subr.mxu0 0.0
  %1539 = vmatpush1.msra.mxu0 0.0
  %1540 = vmatprep.subr.mxu0 0.0
  %1541 = vmatpush1.msra.mxu0 0.0
  %1542 = vmatprep.subr.mxu0 0.0
  %1543 = vmatpush1.msra.mxu0 0.0
  %1544 = vmatprep.subr.mxu0 0.0
  %1545 = vmatpush1.msra.mxu0 0.0
  %1546 = vmatprep.subr.mxu0 0.0
  %1547 = vmatpush1.msra.mxu0 0.0
  %1548 = vmatprep.subr.mxu0 0.0
  %1549 = vmatpush1.msra.mxu0 0.0
  %1550 = vmatprep.subr.mxu0 0.0
  %1551 = vmatpush1.msra.mxu0 0.0
  %1552 = vmatprep.subr.mxu0 0.0
  %1553 = vmatpush1.msra.mxu0 0.0
  %1554 = vmatprep.subr.mxu0 0.0
  %1555 = vmatpush1.msra.mxu0 0.0
  %1556 = vmatprep.subr.mxu0 0.0
  %1557 = vmatpush1.msra.mxu0 0.0
  %1558 = vmatprep.subr.mxu0 0.0
  %1559 = vmatpush1.msra.mxu0 0.0
  %1560 = vmatprep.subr.mxu0 0.0
  %1561 = vmatpush1.msra.mxu0 0.0
  %1562 = vmatprep.subr.mxu0 0.0
  %1563 = vmatpush1.msra.mxu0 0.0
  %1564 = vmatprep.subr.mxu0 0.0
  %1565 = vmatpush1.msra.mxu0 0.0
  %1566 = vmatprep.subr.mxu0 0.0
  %1567 = vmatpush1.msra.mxu0 0.0
  %1568 = vmatprep.subr.mxu0 0.0
  %1569 = vmatpush1.msra.mxu0 0.0
  %1570 = vmatprep.subr.mxu0 0.0
  %1571 = vmatpush1.msra.mxu0 0.0
  %1572 = vmatprep.subr.mxu0 0.0
  %1573 = vmatpush1.msra.mxu0 0.0
  %1574 = vmatprep.subr.mxu0 0.0
  %1575 = vmatpush1.msra.mxu0 0.0
  %1576 = vmatprep.mubr.f32.mxu0 0.0
  %1577 = vmatmul.mubr.f32.gmra.mrb[0].mxu0 %v532
  %v1578 = vpop.f32.mrb[0].mxu0
  %v1579 = vadd.f32 %v1474, %v1578
  %v1580 = vpop.f32.mrb[0].mxu0
  %1581 = vmatprep.mubr.f32.mxu0 0.0
  %1582 = vmatmul.mubr.f32.gmra.mrb[0].mxu0 %v534
  %v1583 = vpop.f32.mrb[0].mxu0
  %v1584 = vadd.f32 %v1479, %v1583
  %v1585 = vpop.f32.mrb[0].mxu0
  %1586 = vmatprep.mubr.f32.mxu0 0.0
  %1587 = vmatmul.mubr.f32.gmra.mrb[0].mxu0 %v536
  %v1588 = vpop.f32.mrb[0].mxu0
  %v1589 = vadd.f32 %v1484, %v1588
  %v1590 = vpop.f32.mrb[0].mxu0
  %1591 = vmatprep.mubr.f32.mxu0 0.0
  %1592 = vmatmul.mubr.f32.gmra.mrb[0].mxu0 %v538
  %v1593 = vpop.f32.mrb[0].mxu0
  %v1594 = vadd.f32 %v1489, %v1593
  %v1595 = vpop.f32.mrb[0].mxu0
  %1596 = vmatprep.mubr.f32.mxu0 0.0
  %1597 = vmatmul.mubr.f32.gmra.mrb[0].mxu0 %v540
  %v1598 = vpop.f32.mrb[0].mxu0
  %v1599 = vadd.f32 %v1494, %v1598
  %v1600 = vpop.f32.mrb[0].mxu0
  %1601 = vmatprep.mubr.f32.mxu0 0.0
  %1602 = vmatmul.mubr.f32.gmra.mrb[0].mxu0 %v542
  %v1603 = vpop.f32.mrb[0].mxu0
  %v1604 = vadd.f32 %v1499, %v1603
  %v1605 = vpop.f32.mrb[0].mxu0
  %1606 = vmatprep.mubr.f32.mxu0 0.0
  %1607 = vmatmul.mubr.f32.gmra.mrb[0].mxu0 %v544
  %v1608 = vpop.f32.mrb[0].mxu0
  %v1609 = vadd.f32 %v1504, %v1608
  %v1610 = vpop.f32.mrb[0].mxu0
  %1611 = vmatprep.mubr.f32.mxu0 0.0
  %1612 = vmatmul.mubr.f32.gmra.mrb[0].mxu0 %v546
  %v1613 = vpop.f32.mrb[0].mxu0
  %v1614 = vadd.f32 %v1509, %v1613
  %v1615 = vpop.f32.mrb[0].mxu0
  %1616 = vdwg.mxu0
  %v1617 = vadd.f32 %v1579, %v1201
  %v1618 = vadd.f32 %v1584, %v1206
  %v1619 = vadd.f32 %v1589, %v1211
  %v1620 = vadd.f32 %v1594, %v1216
  %v1621 = vadd.f32 %v1599, %v1221
  %v1622 = vadd.f32 %v1604, %v1226
  %v1623 = vadd.f32 %v1609, %v1231
  %v1624 = vadd.f32 %v1614, %v1236
  %v1625 = vmax.f32 %v1617, 0.0
  %v1626 = vmax.f32 %v1618, 0.0
  %v1627 = vmax.f32 %v1619, 0.0
  %v1628 = vmax.f32 %v1620, 0.0
  %v1629 = vmax.f32 %v1621, 0.0
  %v1630 = vmax.f32 %v1622, 0.0
  %v1631 = vmax.f32 %v1623, 0.0
  %v1632 = vmax.f32 %v1624, 0.0
  %v1633 = vlaneseq
  %v1634 = vshrl.u32 %v1633, 7
  %v1635 = vsub.s32 0, %v1634
  %v1636 = vrot.slane %v46, %v1635
  %v1638 = vsel %vm531, %v1625, 0
  %v1641 = vsel %vm531, %v1626, 0
  %v1644 = vsel %vm531, %v1627, 0
  %v1647 = vsel %vm531, %v1628, 0
  %v1650 = vsel %vm531, %v1629, 0
  %v1653 = vsel %vm531, %v1630, 0
  %v1656 = vsel %vm531, %v1631, 0
  %v1659 = vsel %vm531, %v1632, 0
  %1661 = vmatprep.subr.mxu0 0.0
  %1662 = vmatpush1.msra.mxu0 %v44
  %1663 = vmatprep.subr.mxu0 0.0
  %1664 = vmatpush1.msra.mxu0 %v45
  %1665 = vmatprep.subr.mxu0 0.0
  %1666 = vmatpush1.msra.mxu0 0.0
  %1667 = vmatprep.subr.mxu0 0.0
  %1668 = vmatpush1.msra.mxu0 0.0
  %1669 = vmatprep.subr.mxu0 0.0
  %1670 = vmatpush1.msra.mxu0 0.0
  %1671 = vmatprep.subr.mxu0 0.0
  %1672 = vmatpush1.msra.mxu0 0.0
  %1673 = vmatprep.subr.mxu0 0.0
  %1674 = vmatpush1.msra.mxu0 0.0
  %1675 = vmatprep.subr.mxu0 0.0
  %1676 = vmatpush1.msra.mxu0 0.0
  %1677 = vmatprep.subr.mxu0 0.0
  %1678 = vmatpush1.msra.mxu0 0.0
  %1679 = vmatprep.subr.mxu0 0.0
  %1680 = vmatpush1.msra.mxu0 0.0
  %1681 = vmatprep.subr.mxu0 0.0
  %1682 = vmatpush1.msra.mxu0 0.0
  %1683 = vmatprep.subr.mxu0 0.0
  %1684 = vmatpush1.msra.mxu0 0.0
  %1685 = vmatprep.subr.mxu0 0.0
  %1686 = vmatpush1.msra.mxu0 0.0
  %1687 = vmatprep.subr.mxu0 0.0
  %1688 = vmatpush1.msra.mxu0 0.0
  %1689 = vmatprep.subr.mxu0 0.0
  %1690 = vmatpush1.msra.mxu0 0.0
  %1691 = vmatprep.subr.mxu0 0.0
  %1692 = vmatpush1.msra.mxu0 0.0
  %1693 = vmatprep.subr.mxu0 0.0
  %1694 = vmatpush1.msra.mxu0 0.0
  %1695 = vmatprep.subr.mxu0 0.0
  %1696 = vmatpush1.msra.mxu0 0.0
  %1697 = vmatprep.subr.mxu0 0.0
  %1698 = vmatpush1.msra.mxu0 0.0
  %1699 = vmatprep.subr.mxu0 0.0
  %1700 = vmatpush1.msra.mxu0 0.0
  %1701 = vmatprep.subr.mxu0 0.0
  %1702 = vmatpush1.msra.mxu0 0.0
  %1703 = vmatprep.subr.mxu0 0.0
  %1704 = vmatpush1.msra.mxu0 0.0
  %1705 = vmatprep.subr.mxu0 0.0
  %1706 = vmatpush1.msra.mxu0 0.0
  %1707 = vmatprep.subr.mxu0 0.0
  %1708 = vmatpush1.msra.mxu0 0.0
  %1709 = vmatprep.subr.mxu0 0.0
  %1710 = vmatpush1.msra.mxu0 0.0
  %1711 = vmatprep.subr.mxu0 0.0
  %1712 = vmatpush1.msra.mxu0 0.0
  %1713 = vmatprep.subr.mxu0 0.0
  %1714 = vmatpush1.msra.mxu0 0.0
  %1715 = vmatprep.subr.mxu0 0.0
  %1716 = vmatpush1.msra.mxu0 0.0
  %1717 = vmatprep.subr.mxu0 0.0
  %1718 = vmatpush1.msra.mxu0 0.0
  %1719 = vmatprep.subr.mxu0 0.0
  %1720 = vmatpush1.msra.mxu0 0.0
  %1721 = vmatprep.subr.mxu0 0.0
  %1722 = vmatpush1.msra.mxu0 0.0
  %1723 = vmatprep.subr.mxu0 0.0
  %1724 = vmatpush1.msra.mxu0 0.0
  %1725 = vmatprep.mubr.f32.mxu0 0.0
  %1726 = vmatmul.mubr.f32.gmra.mrb[0].mxu0 %v1638
  %v1727 = vpop.f32.mrb[0].mxu0
  %v1728 = vadd.f32 %v1636, %v1727
  %v1729 = vpop.f32.mrb[0].mxu0
  %1730 = vmatprep.mubr.f32.mxu0 0.0
  %1731 = vmatmul.mubr.f32.gmra.mrb[0].mxu0 %v1641
  %v1732 = vpop.f32.mrb[0].mxu0
  %v1733 = vadd.f32 %v1636, %v1732
  %v1734 = vpop.f32.mrb[0].mxu0
  %1735 = vmatprep.mubr.f32.mxu0 0.0
  %1736 = vmatmul.mubr.f32.gmra.mrb[0].mxu0 %v1644
  %v1737 = vpop.f32.mrb[0].mxu0
  %v1738 = vadd.f32 %v1636, %v1737
  %v1739 = vpop.f32.mrb[0].mxu0
  %1740 = vmatprep.mubr.f32.mxu0 0.0
  %1741 = vmatmul.mubr.f32.gmra.mrb[0].mxu0 %v1647
  %v1742 = vpop.f32.mrb[0].mxu0
  %v1743 = vadd.f32 %v1636, %v1742
  %v1744 = vpop.f32.mrb[0].mxu0
  %1745 = vmatprep.mubr.f32.mxu0 0.0
  %1746 = vmatmul.mubr.f32.gmra.mrb[0].mxu0 %v1650
  %v1747 = vpop.f32.mrb[0].mxu0
  %v1748 = vadd.f32 %v1636, %v1747
  %v1749 = vpop.f32.mrb[0].mxu0
  %1750 = vmatprep.mubr.f32.mxu0 0.0
  %1751 = vmatmul.mubr.f32.gmra.mrb[0].mxu0 %v1653
  %v1752 = vpop.f32.mrb[0].mxu0
  %v1753 = vadd.f32 %v1636, %v1752
  %v1754 = vpop.f32.mrb[0].mxu0
  %1755 = vmatprep.mubr.f32.mxu0 0.0
  %1756 = vmatmul.mubr.f32.gmra.mrb[0].mxu0 %v1656
  %v1757 = vpop.f32.mrb[0].mxu0
  %v1758 = vadd.f32 %v1636, %v1757
  %v1759 = vpop.f32.mrb[0].mxu0
  %1760 = vmatprep.mubr.f32.mxu0 0.0
  %1761 = vmatmul.mubr.f32.gmra.mrb[0].mxu0 %v1659
  %v1762 = vpop.f32.mrb[0].mxu0
  %v1763 = vadd.f32 %v1636, %v1762
  %v1764 = vpop.f32.mrb[0].mxu0
  %1765 = vdwg.mxu0
  %v1766 = vmax.f32 %v1728, 0.0
  %v1767 = vmax.f32 %v1733, 0.0
  %v1768 = vmax.f32 %v1738, 0.0
  %v1769 = vmax.f32 %v1743, 0.0
  %v1770 = vmax.f32 %v1748, 0.0
  %v1771 = vmax.f32 %v1753, 0.0
  %v1772 = vmax.f32 %v1758, 0.0
  %v1773 = vmax.f32 %v1763, 0.0
  %vm1774 = vcmask 523264
  %v1776 = vsel %vm1774, %v19, 0
  %v1779 = vsel %vm1774, %v20, 0
  %1781 = vmatprep.subr.mxu0 0.0
  %1782 = vmatpush1.msra.mxu0 %v1766
  %1783 = vmatprep.subr.mxu0 0.0
  %1784 = vmatpush1.msra.mxu0 %v1767
  %1785 = vmatprep.subr.mxu0 0.0
  %1786 = vmatpush1.msra.mxu0 %v1768
  %1787 = vmatprep.subr.mxu0 0.0
  %1788 = vmatpush1.msra.mxu0 %v1769
  %1789 = vmatprep.subr.mxu0 0.0
  %1790 = vmatpush1.msra.mxu0 %v1770
  %1791 = vmatprep.subr.mxu0 0.0
  %1792 = vmatpush1.msra.mxu0 %v1771
  %1793 = vmatprep.subr.mxu0 0.0
  %1794 = vmatpush1.msra.mxu0 %v1772
  %1795 = vmatprep.subr.mxu0 0.0
  %1796 = vmatpush1.msra.mxu0 %v1773
  %1797 = vmatprep.subr.mxu0 0.0
  %1798 = vmatpush1.msra.mxu0 0.0
  %1799 = vmatprep.subr.mxu0 0.0
  %1800 = vmatpush1.msra.mxu0 0.0
  %1801 = vmatprep.subr.mxu0 0.0
  %1802 = vmatpush1.msra.mxu0 0.0
  %1803 = vmatprep.subr.mxu0 0.0
  %1804 = vmatpush1.msra.mxu0 0.0
  %1805 = vmatprep.subr.mxu0 0.0
  %1806 = vmatpush1.msra.mxu0 0.0
  %1807 = vmatprep.subr.mxu0 0.0
  %1808 = vmatpush1.msra.mxu0 0.0
  %1809 = vmatprep.subr.mxu0 0.0
  %1810 = vmatpush1.msra.mxu0 0.0
  %1811 = vmatprep.subr.mxu0 0.0
  %1812 = vmatpush1.msra.mxu0 0.0
  %1813 = vmatprep.subr.mxu0 0.0
  %1814 = vmatpush1.msra.mxu0 0.0
  %1815 = vmatprep.subr.mxu0 0.0
  %1816 = vmatpush1.msra.mxu0 0.0
  %1817 = vmatprep.subr.mxu0 0.0
  %1818 = vmatpush1.msra.mxu0 0.0
  %1819 = vmatprep.subr.mxu0 0.0
  %1820 = vmatpush1.msra.mxu0 0.0
  %1821 = vmatprep.subr.mxu0 0.0
  %1822 = vmatpush1.msra.mxu0 0.0
  %1823 = vmatprep.subr.mxu0 0.0
  %1824 = vmatpush1.msra.mxu0 0.0
  %1825 = vmatprep.subr.mxu0 0.0
  %1826 = vmatpush1.msra.mxu0 0.0
  %1827 = vmatprep.subr.mxu0 0.0
  %1828 = vmatpush1.msra.mxu0 0.0
  %1829 = vmatprep.subr.mxu0 0.0
  %1830 = vmatpush1.msra.mxu0 0.0
  %1831 = vmatprep.subr.mxu0 0.0
  %1832 = vmatpush1.msra.mxu0 0.0
  %1833 = vmatprep.subr.mxu0 0.0
  %1834 = vmatpush1.msra.mxu0 0.0
  %1835 = vmatprep.subr.mxu0 0.0
  %1836 = vmatpush1.msra.mxu0 0.0
  %1837 = vmatprep.subr.mxu0 0.0
  %1838 = vmatpush1.msra.mxu0 0.0
  %1839 = vmatprep.subr.mxu0 0.0
  %1840 = vmatpush1.msra.mxu0 0.0
  %1841 = vmatprep.subr.mxu0 0.0
  %1842 = vmatpush1.msra.mxu0 0.0
  %1843 = vmatprep.subr.mxu0 0.0
  %1844 = vmatpush1.msra.mxu0 0.0
  %1845 = vmatprep.mubr.f32.mxu0 0.0
  %1846 = vmatmul.mubr.f32.gmra.mrb[0].mxu0 %v1776
  %v1847 = vpop.f32.mrb[0].mxu0
  %v1848 = vadd.f32 0.0, %v1847
  %v1849 = vpop.f32.mrb[0].mxu0
  %1850 = vmatprep.mubr.f32.mxu0 0.0
  %1851 = vmatmul.mubr.f32.gmra.mrb[0].mxu0 %v1779
  %v1852 = vpop.f32.mrb[0].mxu0
  %v1853 = vadd.f32 0.0, %v1852
  %v1854 = vpop.f32.mrb[0].mxu0
  %1855 = vdwg.mxu0
  %v1857 = vsel %vm531, %v1848, 0
  %v1860 = vsel %vm531, %v1853, 0
  %1862 = vmatprep.subr.mxu0 0.0
  %1863 = vmatpush1.msra.mxu0 %v51
  %1864 = vmatprep.subr.mxu0 0.0
  %1865 = vmatpush1.msra.mxu0 %v52
  %1866 = vmatprep.subr.mxu0 0.0
  %1867 = vmatpush1.msra.mxu0 0.0
  %1868 = vmatprep.subr.mxu0 0.0
  %1869 = vmatpush1.msra.mxu0 0.0
  %1870 = vmatprep.subr.mxu0 0.0
  %1871 = vmatpush1.msra.mxu0 0.0
  %1872 = vmatprep.subr.mxu0 0.0
  %1873 = vmatpush1.msra.mxu0 0.0
  %1874 = vmatprep.subr.mxu0 0.0
  %1875 = vmatpush1.msra.mxu0 0.0
  %1876 = vmatprep.subr.mxu0 0.0
  %1877 = vmatpush1.msra.mxu0 0.0
  %1878 = vmatprep.subr.mxu0 0.0
  %1879 = vmatpush1.msra.mxu0 0.0
  %1880 = vmatprep.subr.mxu0 0.0
  %1881 = vmatpush1.msra.mxu0 0.0
  %1882 = vmatprep.subr.mxu0 0.0
  %1883 = vmatpush1.msra.mxu0 0.0
  %1884 = vmatprep.subr.mxu0 0.0
  %1885 = vmatpush1.msra.mxu0 0.0
  %1886 = vmatprep.subr.mxu0 0.0
  %1887 = vmatpush1.msra.mxu0 0.0
  %1888 = vmatprep.subr.mxu0 0.0
  %1889 = vmatpush1.msra.mxu0 0.0
  %1890 = vmatprep.subr.mxu0 0.0
  %1891 = vmatpush1.msra.mxu0 0.0
  %1892 = vmatprep.subr.mxu0 0.0
  %1893 = vmatpush1.msra.mxu0 0.0
  %1894 = vmatprep.subr.mxu0 0.0
  %1895 = vmatpush1.msra.mxu0 0.0
  %1896 = vmatprep.subr.mxu0 0.0
  %1897 = vmatpush1.msra.mxu0 0.0
  %1898 = vmatprep.subr.mxu0 0.0
  %1899 = vmatpush1.msra.mxu0 0.0
  %1900 = vmatprep.subr.mxu0 0.0
  %1901 = vmatpush1.msra.mxu0 0.0
  %1902 = vmatprep.subr.mxu0 0.0
  %1903 = vmatpush1.msra.mxu0 0.0
  %1904 = vmatprep.subr.mxu0 0.0
  %1905 = vmatpush1.msra.mxu0 0.0
  %1906 = vmatprep.subr.mxu0 0.0
  %1907 = vmatpush1.msra.mxu0 0.0
  %1908 = vmatprep.subr.mxu0 0.0
  %1909 = vmatpush1.msra.mxu0 0.0
  %1910 = vmatprep.subr.mxu0 0.0
  %1911 = vmatpush1.msra.mxu0 0.0
  %1912 = vmatprep.subr.mxu0 0.0
  %1913 = vmatpush1.msra.mxu0 0.0
  %1914 = vmatprep.subr.mxu0 0.0
  %1915 = vmatpush1.msra.mxu0 0.0
  %1916 = vmatprep.subr.mxu0 0.0
  %1917 = vmatpush1.msra.mxu0 0.0
  %1918 = vmatprep.subr.mxu0 0.0
  %1919 = vmatpush1.msra.mxu0 0.0
  %1920 = vmatprep.subr.mxu0 0.0
  %1921 = vmatpush1.msra.mxu0 0.0
  %1922 = vmatprep.subr.mxu0 0.0
  %1923 = vmatpush1.msra.mxu0 0.0
  %1924 = vmatprep.subr.mxu0 0.0
  %1925 = vmatpush1.msra.mxu0 0.0
  %1926 = vmatprep.mubr.f32.mxu0 0.0
  %1927 = vmatmul.mubr.f32.gmra.mrb[0].mxu0 %v1857
  %v1928 = vpop.f32.mrb[0].mxu0
  %v1929 = vadd.f32 0.0, %v1928
  %v1930 = vpop.f32.mrb[0].mxu0
  %1931 = vmatprep.mubr.f32.mxu0 0.0
  %1932 = vmatmul.mubr.f32.gmra.mrb[0].mxu0 %v1860
  %v1933 = vpop.f32.mrb[0].mxu0
  %v1934 = vadd.f32 0.0, %v1933
  %v1935 = vpop.f32.mrb[0].mxu0
  %1936 = vdwg.mxu0
  %v1938 = vsel %vm68, %v1104, 0
  %v1941 = vsel %vm68, %v1105, 0
  %1943 = vmatprep.subr.mxu0 0.0
  %1944 = vmatpush1.msra.mxu0 %v47
  %1945 = vmatprep.subr.mxu0 0.0
  %1946 = vmatpush1.msra.mxu0 %v48
  %1947 = vmatprep.subr.mxu0 0.0
  %1948 = vmatpush1.msra.mxu0 %v49
  %1949 = vmatprep.subr.mxu0 0.0
  %1950 = vmatpush1.msra.mxu0 %v50
  %1951 = vmatprep.subr.mxu0 0.0
  %1952 = vmatpush1.msra.mxu0 0.0
  %1953 = vmatprep.subr.mxu0 0.0
  %1954 = vmatpush1.msra.mxu0 0.0
  %1955 = vmatprep.subr.mxu0 0.0
  %1956 = vmatpush1.msra.mxu0 0.0
  %1957 = vmatprep.subr.mxu0 0.0
  %1958 = vmatpush1.msra.mxu0 0.0
  %1959 = vmatprep.subr.mxu0 0.0
  %1960 = vmatpush1.msra.mxu0 0.0
  %1961 = vmatprep.subr.mxu0 0.0
  %1962 = vmatpush1.msra.mxu0 0.0
  %1963 = vmatprep.subr.mxu0 0.0
  %1964 = vmatpush1.msra.mxu0 0.0
  %1965 = vmatprep.subr.mxu0 0.0
  %1966 = vmatpush1.msra.mxu0 0.0
  %1967 = vmatprep.subr.mxu0 0.0
  %1968 = vmatpush1.msra.mxu0 0.0
  %1969 = vmatprep.subr.mxu0 0.0
  %1970 = vmatpush1.msra.mxu0 0.0
  %1971 = vmatprep.subr.mxu0 0.0
  %1972 = vmatpush1.msra.mxu0 0.0
  %1973 = vmatprep.subr.mxu0 0.0
  %1974 = vmatpush1.msra.mxu0 0.0
  %1975 = vmatprep.subr.mxu0 0.0
  %1976 = vmatpush1.msra.mxu0 0.0
  %1977 = vmatprep.subr.mxu0 0.0
  %1978 = vmatpush1.msra.mxu0 0.0
  %1979 = vmatprep.subr.mxu0 0.0
  %1980 = vmatpush1.msra.mxu0 0.0
  %1981 = vmatprep.subr.mxu0 0.0
  %1982 = vmatpush1.msra.mxu0 0.0
  %1983 = vmatprep.subr.mxu0 0.0
  %1984 = vmatpush1.msra.mxu0 0.0
  %1985 = vmatprep.subr.mxu0 0.0
  %1986 = vmatpush1.msra.mxu0 0.0
  %1987 = vmatprep.subr.mxu0 0.0
  %1988 = vmatpush1.msra.mxu0 0.0
  %1989 = vmatprep.subr.mxu0 0.0
  %1990 = vmatpush1.msra.mxu0 0.0
  %1991 = vmatprep.subr.mxu0 0.0
  %1992 = vmatpush1.msra.mxu0 0.0
  %1993 = vmatprep.subr.mxu0 0.0
  %1994 = vmatpush1.msra.mxu0 0.0
  %1995 = vmatprep.subr.mxu0 0.0
  %1996 = vmatpush1.msra.mxu0 0.0
  %1997 = vmatprep.subr.mxu0 0.0
  %1998 = vmatpush1.msra.mxu0 0.0
  %1999 = vmatprep.subr.mxu0 0.0
  %2000 = vmatpush1.msra.mxu0 0.0
  %2001 = vmatprep.subr.mxu0 0.0
  %2002 = vmatpush1.msra.mxu0 0.0
  %2003 = vmatprep.subr.mxu0 0.0
  %2004 = vmatpush1.msra.mxu0 0.0
  %2005 = vmatprep.subr.mxu0 0.0
  %2006 = vmatpush1.msra.mxu0 0.0
  %2007 = vmatprep.mubr.f32.mxu0 0.0
  %2008 = vmatmul.mubr.f32.gmra.mrb[0].mxu0 %v1938
  %v2009 = vpop.f32.mrb[0].mxu0
  %v2010 = vadd.f32 %v1929, %v2009
  %v2011 = vpop.f32.mrb[0].mxu0
  %2012 = vmatprep.mubr.f32.mxu0 0.0
  %2013 = vmatmul.mubr.f32.gmra.mrb[0].mxu0 %v1941
  %v2014 = vpop.f32.mrb[0].mxu0
  %v2015 = vadd.f32 %v1934, %v2014
  %v2016 = vpop.f32.mrb[0].mxu0
  %2017 = vdwg.mxu0
  %v2018 = vlaneseq
  %v2019 = vshrl.u32 %v2018, 7
  %v2020 = vsub.s32 0, %v2019
  %v2021 = vrot.slane %v53, %v2020
  %v2022 = vadd.f32 %v2010, %v2021
  %v2023 = vadd.f32 %v2015, %v2021
  %v2024 = vmax.f32 %v2022, 0.0
  %v2025 = vmax.f32 %v2023, 0.0
  %v2026 = vlaneseq
  %v2027 = vshrl.u32 %v2026, 7
  %v2028 = vsub.s32 0, %v2027
  %v2029 = vrot.slane %v58, %v2028
  %v2031 = vsel %vm68, %v2024, 0
  %v2034 = vsel %vm68, %v2025, 0
  %2036 = vmatprep.subr.mxu0 0.0
  %2037 = vmatpush1.msra.mxu0 %v54
  %2038 = vmatprep.subr.mxu0 0.0
  %2039 = vmatpush1.msra.mxu0 %v55
  %2040 = vmatprep.subr.mxu0 0.0
  %2041 = vmatpush1.msra.mxu0 %v56
  %2042 = vmatprep.subr.mxu0 0.0
  %2043 = vmatpush1.msra.mxu0 %v57
  %2044 = vmatprep.subr.mxu0 0.0
  %2045 = vmatpush1.msra.mxu0 0.0
  %2046 = vmatprep.subr.mxu0 0.0
  %2047 = vmatpush1.msra.mxu0 0.0
  %2048 = vmatprep.subr.mxu0 0.0
  %2049 = vmatpush1.msra.mxu0 0.0
  %2050 = vmatprep.subr.mxu0 0.0
  %2051 = vmatpush1.msra.mxu0 0.0
  %2052 = vmatprep.subr.mxu0 0.0
  %2053 = vmatpush1.msra.mxu0 0.0
  %2054 = vmatprep.subr.mxu0 0.0
  %2055 = vmatpush1.msra.mxu0 0.0
  %2056 = vmatprep.subr.mxu0 0.0
  %2057 = vmatpush1.msra.mxu0 0.0
  %2058 = vmatprep.subr.mxu0 0.0
  %2059 = vmatpush1.msra.mxu0 0.0
  %2060 = vmatprep.subr.mxu0 0.0
  %2061 = vmatpush1.msra.mxu0 0.0
  %2062 = vmatprep.subr.mxu0 0.0
  %2063 = vmatpush1.msra.mxu0 0.0
  %2064 = vmatprep.subr.mxu0 0.0
  %2065 = vmatpush1.msra.mxu0 0.0
  %2066 = vmatprep.subr.mxu0 0.0
  %2067 = vmatpush1.msra.mxu0 0.0
  %2068 = vmatprep.subr.mxu0 0.0
  %2069 = vmatpush1.msra.mxu0 0.0
  %2070 = vmatprep.subr.mxu0 0.0
  %2071 = vmatpush1.msra.mxu0 0.0
  %2072 = vmatprep.subr.mxu0 0.0
  %2073 = vmatpush1.msra.mxu0 0.0
  %2074 = vmatprep.subr.mxu0 0.0
  %2075 = vmatpush1.msra.mxu0 0.0
  %2076 = vmatprep.subr.mxu0 0.0
  %2077 = vmatpush1.msra.mxu0 0.0
  %2078 = vmatprep.subr.mxu0 0.0
  %2079 = vmatpush1.msra.mxu0 0.0
  %2080 = vmatprep.subr.mxu0 0.0
  %2081 = vmatpush1.msra.mxu0 0.0
  %2082 = vmatprep.subr.mxu0 0.0
  %2083 = vmatpush1.msra.mxu0 0.0
  %2084 = vmatprep.subr.mxu0 0.0
  %2085 = vmatpush1.msra.mxu0 0.0
  %2086 = vmatprep.subr.mxu0 0.0
  %2087 = vmatpush1.msra.mxu0 0.0
  %2088 = vmatprep.subr.mxu0 0.0
  %2089 = vmatpush1.msra.mxu0 0.0
  %2090 = vmatprep.subr.mxu0 0.0
  %2091 = vmatpush1.msra.mxu0 0.0
  %2092 = vmatprep.subr.mxu0 0.0
  %2093 = vmatpush1.msra.mxu0 0.0
  %2094 = vmatprep.subr.mxu0 0.0
  %2095 = vmatpush1.msra.mxu0 0.0
  %2096 = vmatprep.subr.mxu0 0.0
  %2097 = vmatpush1.msra.mxu0 0.0
  %2098 = vmatprep.subr.mxu0 0.0
  %2099 = vmatpush1.msra.mxu0 0.0
  %2100 = vmatprep.mubr.f32.mxu0 0.0
  %2101 = vmatmul.mubr.f32.gmra.mrb[0].mxu0 %v2031
  %v2102 = vpop.f32.mrb[0].mxu0
  %v2103 = vadd.f32 %v2029, %v2102
  %v2104 = vpop.f32.mrb[0].mxu0
  %2105 = vmatprep.mubr.f32.mxu0 0.0
  %2106 = vmatmul.mubr.f32.gmra.mrb[0].mxu0 %v2034
  %v2107 = vpop.f32.mrb[0].mxu0
  %v2108 = vadd.f32 %v2029, %v2107
  %v2109 = vpop.f32.mrb[0].mxu0
  %2110 = vdwg.mxu0
  %v2111 = vmax.f32 %v2103, 0.0
  %v2112 = vmax.f32 %v2108, 0.0
  %v2113 = vlaneseq
  %v2114 = vshrl.u32 %v2113, 7
  %v2115 = vsub.s32 0, %v2114
  %v2116 = vrot.slane %v61, %v2115
  %v2118 = vsel %vm531, %v1766, 0
  %v2121 = vsel %vm531, %v1767, 0
  %v2124 = vsel %vm531, %v1768, 0
  %v2127 = vsel %vm531, %v1769, 0
  %v2130 = vsel %vm531, %v1770, 0
  %v2133 = vsel %vm531, %v1771, 0
  %v2136 = vsel %vm531, %v1772, 0
  %v2139 = vsel %vm531, %v1773, 0
  %2141 = vmatprep.subr.mxu0 0.0
  %2142 = vmatpush1.msra.mxu0 %v59
  %2143 = vmatprep.subr.mxu0 0.0
  %2144 = vmatpush1.msra.mxu0 %v60
  %2145 = vmatprep.subr.mxu0 0.0
  %2146 = vmatpush1.msra.mxu0 0.0
  %2147 = vmatprep.subr.mxu0 0.0
  %2148 = vmatpush1.msra.mxu0 0.0
  %2149 = vmatprep.subr.mxu0 0.0
  %2150 = vmatpush1.msra.mxu0 0.0
  %2151 = vmatprep.subr.mxu0 0.0
  %2152 = vmatpush1.msra.mxu0 0.0
  %2153 = vmatprep.subr.mxu0 0.0
  %2154 = vmatpush1.msra.mxu0 0.0
  %2155 = vmatprep.subr.mxu0 0.0
  %2156 = vmatpush1.msra.mxu0 0.0
  %2157 = vmatprep.subr.mxu0 0.0
  %2158 = vmatpush1.msra.mxu0 0.0
  %2159 = vmatprep.subr.mxu0 0.0
  %2160 = vmatpush1.msra.mxu0 0.0
  %2161 = vmatprep.subr.mxu0 0.0
  %2162 = vmatpush1.msra.mxu0 0.0
  %2163 = vmatprep.subr.mxu0 0.0
  %2164 = vmatpush1.msra.mxu0 0.0
  %2165 = vmatprep.subr.mxu0 0.0
  %2166 = vmatpush1.msra.mxu0 0.0
  %2167 = vmatprep.subr.mxu0 0.0
  %2168 = vmatpush1.msra.mxu0 0.0
  %2169 = vmatprep.subr.mxu0 0.0
  %2170 = vmatpush1.msra.mxu0 0.0
  %2171 = vmatprep.subr.mxu0 0.0
  %2172 = vmatpush1.msra.mxu0 0.0
  %2173 = vmatprep.subr.mxu0 0.0
  %2174 = vmatpush1.msra.mxu0 0.0
  %2175 = vmatprep.subr.mxu0 0.0
  %2176 = vmatpush1.msra.mxu0 0.0
  %2177 = vmatprep.subr.mxu0 0.0
  %2178 = vmatpush1.msra.mxu0 0.0
  %2179 = vmatprep.subr.mxu0 0.0
  %2180 = vmatpush1.msra.mxu0 0.0
  %2181 = vmatprep.subr.mxu0 0.0
  %2182 = vmatpush1.msra.mxu0 0.0
  %2183 = vmatprep.subr.mxu0 0.0
  %2184 = vmatpush1.msra.mxu0 0.0
  %2185 = vmatprep.subr.mxu0 0.0
  %2186 = vmatpush1.msra.mxu0 0.0
  %2187 = vmatprep.subr.mxu0 0.0
  %2188 = vmatpush1.msra.mxu0 0.0
  %2189 = vmatprep.subr.mxu0 0.0
  %2190 = vmatpush1.msra.mxu0 0.0
  %2191 = vmatprep.subr.mxu0 0.0
  %2192 = vmatpush1.msra.mxu0 0.0
  %2193 = vmatprep.subr.mxu0 0.0
  %2194 = vmatpush1.msra.mxu0 0.0
  %2195 = vmatprep.subr.mxu0 0.0
  %2196 = vmatpush1.msra.mxu0 0.0
  %2197 = vmatprep.subr.mxu0 0.0
  %2198 = vmatpush1.msra.mxu0 0.0
  %2199 = vmatprep.subr.mxu0 0.0
  %2200 = vmatpush1.msra.mxu0 0.0
  %2201 = vmatprep.subr.mxu0 0.0
  %2202 = vmatpush1.msra.mxu0 0.0
  %2203 = vmatprep.subr.mxu0 0.0
  %2204 = vmatpush1.msra.mxu0 0.0
  %2205 = vmatprep.mubr.f32.mxu0 0.0
  %2206 = vmatmul.mubr.f32.gmra.mrb[0].mxu0 %v2118
  %v2207 = vpop.f32.mrb[0].mxu0
  %v2208 = vadd.f32 %v2116, %v2207
  %v2209 = vpop.f32.mrb[0].mxu0
  %2210 = vmatprep.mubr.f32.mxu0 0.0
  %2211 = vmatmul.mubr.f32.gmra.mrb[0].mxu0 %v2121
  %v2212 = vpop.f32.mrb[0].mxu0
  %v2213 = vadd.f32 %v2116, %v2212
  %v2214 = vpop.f32.mrb[0].mxu0
  %2215 = vmatprep.mubr.f32.mxu0 0.0
  %2216 = vmatmul.mubr.f32.gmra.mrb[0].mxu0 %v2124
  %v2217 = vpop.f32.mrb[0].mxu0
  %v2218 = vadd.f32 %v2116, %v2217
  %v2219 = vpop.f32.mrb[0].mxu0
  %2220 = vmatprep.mubr.f32.mxu0 0.0
  %2221 = vmatmul.mubr.f32.gmra.mrb[0].mxu0 %v2127
  %v2222 = vpop.f32.mrb[0].mxu0
  %v2223 = vadd.f32 %v2116, %v2222
  %v2224 = vpop.f32.mrb[0].mxu0
  %2225 = vmatprep.mubr.f32.mxu0 0.0
  %2226 = vmatmul.mubr.f32.gmra.mrb[0].mxu0 %v2130
  %v2227 = vpop.f32.mrb[0].mxu0
  %v2228 = vadd.f32 %v2116, %v2227
  %v2229 = vpop.f32.mrb[0].mxu0
  %2230 = vmatprep.mubr.f32.mxu0 0.0
  %2231 = vmatmul.mubr.f32.gmra.mrb[0].mxu0 %v2133
  %v2232 = vpop.f32.mrb[0].mxu0
  %v2233 = vadd.f32 %v2116, %v2232
  %v2234 = vpop.f32.mrb[0].mxu0
  %2235 = vmatprep.mubr.f32.mxu0 0.0
  %2236 = vmatmul.mubr.f32.gmra.mrb[0].mxu0 %v2136
  %v2237 = vpop.f32.mrb[0].mxu0
  %v2238 = vadd.f32 %v2116, %v2237
  %v2239 = vpop.f32.mrb[0].mxu0
  %2240 = vmatprep.mubr.f32.mxu0 0.0
  %2241 = vmatmul.mubr.f32.gmra.mrb[0].mxu0 %v2139
  %v2242 = vpop.f32.mrb[0].mxu0
  %v2243 = vadd.f32 %v2116, %v2242
  %v2244 = vpop.f32.mrb[0].mxu0
  %2245 = vdwg.mxu0
  %v2246 = vmax.f32 %v2208, 0.0
  %v2247 = vmax.f32 %v2213, 0.0
  %v2248 = vmax.f32 %v2218, 0.0
  %v2249 = vmax.f32 %v2223, 0.0
  %v2250 = vmax.f32 %v2228, 0.0
  %v2251 = vmax.f32 %v2233, 0.0
  %v2252 = vmax.f32 %v2238, 0.0
  %v2253 = vmax.f32 %v2243, 0.0
  %2255 = vset.pattern.permute.xlu0 0
  %2256 = vperm.xlu0 %2255, %v63
  %v2257 = vpop.permute.xlu0 %2256
  %v2260 = vsel %vm531, %v62, 0
  %v2263 = vsel %vm531, %v2246, 0
  %v2266 = vsel %vm531, %v2247, 0
  %v2269 = vsel %vm531, %v2248, 0
  %v2272 = vsel %vm531, %v2249, 0
  %v2275 = vsel %vm531, %v2250, 0
  %v2278 = vsel %vm531, %v2251, 0
  %v2281 = vsel %vm531, %v2252, 0
  %v2284 = vsel %vm531, %v2253, 0
  %2286 = vmatprep.subr.mxu0 0.0
  %2287 = vmatpush1.xpose.msra.mxu0 %v2263
  %2288 = vmatprep.subr.mxu0 0.0
  %2289 = vmatpush1.xpose.msra.mxu0 %v2266
  %2290 = vmatprep.subr.mxu0 0.0
  %2291 = vmatpush1.xpose.msra.mxu0 %v2269
  %2292 = vmatprep.subr.mxu0 0.0
  %2293 = vmatpush1.xpose.msra.mxu0 %v2272
  %2294 = vmatprep.subr.mxu0 0.0
  %2295 = vmatpush1.xpose.msra.mxu0 %v2275
  %2296 = vmatprep.subr.mxu0 0.0
  %2297 = vmatpush1.xpose.msra.mxu0 %v2278
  %2298 = vmatprep.subr.mxu0 0.0
  %2299 = vmatpush1.xpose.msra.mxu0 %v2281
  %2300 = vmatprep.subr.mxu0 0.0
  %2301 = vmatpush1.xpose.msra.mxu0 %v2284
  %2302 = vmatprep.subr.mxu0 0.0
  %2303 = vmatpush1.xpose.msra.mxu0 0.0
  %2304 = vmatprep.subr.mxu0 0.0
  %2305 = vmatpush1.xpose.msra.mxu0 0.0
  %2306 = vmatprep.subr.mxu0 0.0
  %2307 = vmatpush1.xpose.msra.mxu0 0.0
  %2308 = vmatprep.subr.mxu0 0.0
  %2309 = vmatpush1.xpose.msra.mxu0 0.0
  %2310 = vmatprep.subr.mxu0 0.0
  %2311 = vmatpush1.xpose.msra.mxu0 0.0
  %2312 = vmatprep.subr.mxu0 0.0
  %2313 = vmatpush1.xpose.msra.mxu0 0.0
  %2314 = vmatprep.subr.mxu0 0.0
  %2315 = vmatpush1.xpose.msra.mxu0 0.0
  %2316 = vmatprep.subr.mxu0 0.0
  %2317 = vmatpush1.xpose.msra.mxu0 0.0
  %2318 = vmatprep.subr.mxu0 0.0
  %2319 = vmatpush1.xpose.msra.mxu0 0.0
  %2320 = vmatprep.subr.mxu0 0.0
  %2321 = vmatpush1.xpose.msra.mxu0 0.0
  %2322 = vmatprep.subr.mxu0 0.0
  %2323 = vmatpush1.xpose.msra.mxu0 0.0
  %2324 = vmatprep.subr.mxu0 0.0
  %2325 = vmatpush1.xpose.msra.mxu0 0.0
  %2326 = vmatprep.subr.mxu0 0.0
  %2327 = vmatpush1.xpose.msra.mxu0 0.0
  %2328 = vmatprep.subr.mxu0 0.0
  %2329 = vmatpush1.xpose.msra.mxu0 0.0
  %2330 = vmatprep.subr.mxu0 0.0
  %2331 = vmatpush1.xpose.msra.mxu0 0.0
  %2332 = vmatprep.subr.mxu0 0.0
  %2333 = vmatpush1.xpose.msra.mxu0 0.0
  %2334 = vmatprep.subr.mxu0 0.0
  %2335 = vmatpush1.xpose.msra.mxu0 0.0
  %2336 = vmatprep.subr.mxu0 0.0
  %2337 = vmatpush1.xpose.msra.mxu0 0.0
  %2338 = vmatprep.subr.mxu0 0.0
  %2339 = vmatpush1.xpose.msra.mxu0 0.0
  %2340 = vmatprep.subr.mxu0 0.0
  %2341 = vmatpush1.xpose.msra.mxu0 0.0
  %2342 = vmatprep.subr.mxu0 0.0
  %2343 = vmatpush1.xpose.msra.mxu0 0.0
  %2344 = vmatprep.subr.mxu0 0.0
  %2345 = vmatpush1.xpose.msra.mxu0 0.0
  %2346 = vmatprep.subr.mxu0 0.0
  %2347 = vmatpush1.xpose.msra.mxu0 0.0
  %2348 = vmatprep.subr.mxu0 0.0
  %2349 = vmatpush1.xpose.msra.mxu0 0.0
  %2350 = vmatprep.mubr.f32.mxu0 0.0
  %2351 = vmatmul.mubr.f32.gmra.mrb[0].mxu0 %v2260
  %v2352 = vpop.f32.mrb[0].mxu0
  %v2353 = vadd.f32 %v2257, %v2352
  %v2354 = vpop.f32.mrb[0].mxu0
  %2355 = vdwg.mxu0
  %v2356 = vxor.u32 %v2353, 2147483648
  %v2357 = vmul.f32 %v2356, 1.442695
  %v2358 = vpow.pop %v2357
  %v2359 = vadd.f32 %v2358, 1.0
  %v2360 = vrcp.pop %v2359
  %v2361 = vmul.f32 1.0, %v2360
  %vm2362 = vcmask 516096
  %2363 = vst.msk [vmem:[%s2] sm:$0x1] %vm2362, %v2361
  %v2364 = vmul.f32 %v2111, %v1239
  %v2365 = vmul.f32 %v2112, %v1240
  %v2366 = vsub.f32 %v2111, %v2364
  %v2367 = vsub.f32 %v2112, %v2365
  %v2369 = vsel %vm68, %v2366, 0
  %v2372 = vsel %vm68, %v2367, 0
  %2374 = vmatprep.subr.mxu0 0.0
  %2375 = vmatpush1.msra.mxu0 %v35
  %2376 = vmatprep.subr.mxu0 0.0
  %2377 = vmatpush1.msra.mxu0 %v36
  %2378 = vmatprep.subr.mxu0 0.0
  %2379 = vmatpush1.msra.mxu0 %v37
  %2380 = vmatprep.subr.mxu0 0.0
  %2381 = vmatpush1.msra.mxu0 %v38
  %2382 = vmatprep.subr.mxu0 0.0
  %2383 = vmatpush1.msra.mxu0 0.0
  %2384 = vmatprep.subr.mxu0 0.0
  %2385 = vmatpush1.msra.mxu0 0.0
  %2386 = vmatprep.subr.mxu0 0.0
  %2387 = vmatpush1.msra.mxu0 0.0
  %2388 = vmatprep.subr.mxu0 0.0
  %2389 = vmatpush1.msra.mxu0 0.0
  %2390 = vmatprep.subr.mxu0 0.0
  %2391 = vmatpush1.msra.mxu0 0.0
  %2392 = vmatprep.subr.mxu0 0.0
  %2393 = vmatpush1.msra.mxu0 0.0
  %2394 = vmatprep.subr.mxu0 0.0
  %2395 = vmatpush1.msra.mxu0 0.0
  %2396 = vmatprep.subr.mxu0 0.0
  %2397 = vmatpush1.msra.mxu0 0.0
  %2398 = vmatprep.subr.mxu0 0.0
  %2399 = vmatpush1.msra.mxu0 0.0
  %2400 = vmatprep.subr.mxu0 0.0
  %2401 = vmatpush1.msra.mxu0 0.0
  %2402 = vmatprep.subr.mxu0 0.0
  %2403 = vmatpush1.msra.mxu0 0.0
  %2404 = vmatprep.subr.mxu0 0.0
  %2405 = vmatpush1.msra.mxu0 0.0
  %2406 = vmatprep.subr.mxu0 0.0
  %2407 = vmatpush1.msra.mxu0 0.0
  %2408 = vmatprep.subr.mxu0 0.0
  %2409 = vmatpush1.msra.mxu0 0.0
  %2410 = vmatprep.subr.mxu0 0.0
  %2411 = vmatpush1.msra.mxu0 0.0
  %2412 = vmatprep.subr.mxu0 0.0
  %2413 = vmatpush1.msra.mxu0 0.0
  %2414 = vmatprep.subr.mxu0 0.0
  %2415 = vmatpush1.msra.mxu0 0.0
  %2416 = vmatprep.subr.mxu0 0.0
  %2417 = vmatpush1.msra.mxu0 0.0
  %2418 = vmatprep.subr.mxu0 0.0
  %2419 = vmatpush1.msra.mxu0 0.0
  %2420 = vmatprep.subr.mxu0 0.0
  %2421 = vmatpush1.msra.mxu0 0.0
  %2422 = vmatprep.subr.mxu0 0.0
  %2423 = vmatpush1.msra.mxu0 0.0
  %2424 = vmatprep.subr.mxu0 0.0
  %2425 = vmatpush1.msra.mxu0 0.0
  %2426 = vmatprep.subr.mxu0 0.0
  %2427 = vmatpush1.msra.mxu0 0.0
  %2428 = vmatprep.subr.mxu0 0.0
  %2429 = vmatpush1.msra.mxu0 0.0
  %2430 = vmatprep.subr.mxu0 0.0
  %2431 = vmatpush1.msra.mxu0 0.0
  %2432 = vmatprep.subr.mxu0 0.0
  %2433 = vmatpush1.msra.mxu0 0.0
  %2434 = vmatprep.subr.mxu0 0.0
  %2435 = vmatpush1.msra.mxu0 0.0
  %2436 = vmatprep.subr.mxu0 0.0
  %2437 = vmatpush1.msra.mxu0 0.0
  %2438 = vmatprep.mubr.f32.mxu0 0.0
  %2439 = vmatmul.mubr.f32.gmra.mrb[0].mxu0 %v2369
  %v2440 = vpop.f32.mrb[0].mxu0
  %v2441 = vadd.f32 0.0, %v2440
  %v2442 = vpop.f32.mrb[0].mxu0
  %2443 = vmatprep.mubr.f32.mxu0 0.0
  %2444 = vmatmul.mubr.f32.gmra.mrb[0].mxu0 %v2372
  %v2445 = vpop.f32.mrb[0].mxu0
  %v2446 = vadd.f32 0.0, %v2445
  %v2447 = vpop.f32.mrb[0].mxu0
  %2448 = vdwg.mxu0
  %v2450 = vsel %vm68, %v2364, 0
  %v2453 = vsel %vm68, %v2365, 0
  %2455 = vmatprep.subr.mxu0 0.0
  %2456 = vmatpush1.msra.mxu0 %v31
  %2457 = vmatprep.subr.mxu0 0.0
  %2458 = vmatpush1.msra.mxu0 %v32
  %2459 = vmatprep.subr.mxu0 0.0
  %2460 = vmatpush1.msra.mxu0 %v33
  %2461 = vmatprep.subr.mxu0 0.0
  %2462 = vmatpush1.msra.mxu0 %v34
  %2463 = vmatprep.subr.mxu0 0.0
  %2464 = vmatpush1.msra.mxu0 0.0
  %2465 = vmatprep.subr.mxu0 0.0
  %2466 = vmatpush1.msra.mxu0 0.0
  %2467 = vmatprep.subr.mxu0 0.0
  %2468 = vmatpush1.msra.mxu0 0.0
  %2469 = vmatprep.subr.mxu0 0.0
  %2470 = vmatpush1.msra.mxu0 0.0
  %2471 = vmatprep.subr.mxu0 0.0
  %2472 = vmatpush1.msra.mxu0 0.0
  %2473 = vmatprep.subr.mxu0 0.0
  %2474 = vmatpush1.msra.mxu0 0.0
  %2475 = vmatprep.subr.mxu0 0.0
  %2476 = vmatpush1.msra.mxu0 0.0
  %2477 = vmatprep.subr.mxu0 0.0
  %2478 = vmatpush1.msra.mxu0 0.0
  %2479 = vmatprep.subr.mxu0 0.0
  %2480 = vmatpush1.msra.mxu0 0.0
  %2481 = vmatprep.subr.mxu0 0.0
  %2482 = vmatpush1.msra.mxu0 0.0
  %2483 = vmatprep.subr.mxu0 0.0
  %2484 = vmatpush1.msra.mxu0 0.0
  %2485 = vmatprep.subr.mxu0 0.0
  %2486 = vmatpush1.msra.mxu0 0.0
  %2487 = vmatprep.subr.mxu0 0.0
  %2488 = vmatpush1.msra.mxu0 0.0
  %2489 = vmatprep.subr.mxu0 0.0
  %2490 = vmatpush1.msra.mxu0 0.0
  %2491 = vmatprep.subr.mxu0 0.0
  %2492 = vmatpush1.msra.mxu0 0.0
  %2493 = vmatprep.subr.mxu0 0.0
  %2494 = vmatpush1.msra.mxu0 0.0
  %2495 = vmatprep.subr.mxu0 0.0
  %2496 = vmatpush1.msra.mxu0 0.0
  %2497 = vmatprep.subr.mxu0 0.0
  %2498 = vmatpush1.msra.mxu0 0.0
  %2499 = vmatprep.subr.mxu0 0.0
  %2500 = vmatpush1.msra.mxu0 0.0
  %2501 = vmatprep.subr.mxu0 0.0
  %2502 = vmatpush1.msra.mxu0 0.0
  %2503 = vmatprep.subr.mxu0 0.0
  %2504 = vmatpush1.msra.mxu0 0.0
  %2505 = vmatprep.subr.mxu0 0.0
  %2506 = vmatpush1.msra.mxu0 0.0
  %2507 = vmatprep.subr.mxu0 0.0
  %2508 = vmatpush1.msra.mxu0 0.0
  %2509 = vmatprep.subr.mxu0 0.0
  %2510 = vmatpush1.msra.mxu0 0.0
  %2511 = vmatprep.subr.mxu0 0.0
  %2512 = vmatpush1.msra.mxu0 0.0
  %2513 = vmatprep.subr.mxu0 0.0
  %2514 = vmatpush1.msra.mxu0 0.0
  %2515 = vmatprep.subr.mxu0 0.0
  %2516 = vmatpush1.msra.mxu0 0.0
  %2517 = vmatprep.subr.mxu0 0.0
  %2518 = vmatpush1.msra.mxu0 0.0
  %2519 = vmatprep.mubr.f32.mxu0 0.0
  %2520 = vmatmul.mubr.f32.gmra.mrb[0].mxu0 %v2450
  %v2521 = vpop.f32.mrb[0].mxu0
  %v2522 = vadd.f32 %v2441, %v2521
  %v2523 = vpop.f32.mrb[0].mxu0
  %2524 = vmatprep.mubr.f32.mxu0 0.0
  %2525 = vmatmul.mubr.f32.gmra.mrb[0].mxu0 %v2453
  %v2526 = vpop.f32.mrb[0].mxu0
  %v2527 = vadd.f32 %v2446, %v2526
  %v2528 = vpop.f32.mrb[0].mxu0
  %2529 = vdwg.mxu0
  %2530 = vmatprep.subr.mxu0 0.0
  %2531 = vmatpush1.msra.mxu0 %v39
  %2532 = vmatprep.subr.mxu0 0.0
  %2533 = vmatpush1.msra.mxu0 %v40
  %2534 = vmatprep.subr.mxu0 0.0
  %2535 = vmatpush1.msra.mxu0 0.0
  %2536 = vmatprep.subr.mxu0 0.0
  %2537 = vmatpush1.msra.mxu0 0.0
  %2538 = vmatprep.subr.mxu0 0.0
  %2539 = vmatpush1.msra.mxu0 0.0
  %2540 = vmatprep.subr.mxu0 0.0
  %2541 = vmatpush1.msra.mxu0 0.0
  %2542 = vmatprep.subr.mxu0 0.0
  %2543 = vmatpush1.msra.mxu0 0.0
  %2544 = vmatprep.subr.mxu0 0.0
  %2545 = vmatpush1.msra.mxu0 0.0
  %2546 = vmatprep.subr.mxu0 0.0
  %2547 = vmatpush1.msra.mxu0 0.0
  %2548 = vmatprep.subr.mxu0 0.0
  %2549 = vmatpush1.msra.mxu0 0.0
  %2550 = vmatprep.subr.mxu0 0.0
  %2551 = vmatpush1.msra.mxu0 0.0
  %2552 = vmatprep.subr.mxu0 0.0
  %2553 = vmatpush1.msra.mxu0 0.0
  %2554 = vmatprep.subr.mxu0 0.0
  %2555 = vmatpush1.msra.mxu0 0.0
  %2556 = vmatprep.subr.mxu0 0.0
  %2557 = vmatpush1.msra.mxu0 0.0
  %2558 = vmatprep.subr.mxu0 0.0
  %2559 = vmatpush1.msra.mxu0 0.0
  %2560 = vmatprep.subr.mxu0 0.0
  %2561 = vmatpush1.msra.mxu0 0.0
  %2562 = vmatprep.subr.mxu0 0.0
  %2563 = vmatpush1.msra.mxu0 0.0
  %2564 = vmatprep.subr.mxu0 0.0
  %2565 = vmatpush1.msra.mxu0 0.0
  %2566 = vmatprep.subr.mxu0 0.0
  %2567 = vmatpush1.msra.mxu0 0.0
  %2568 = vmatprep.subr.mxu0 0.0
  %2569 = vmatpush1.msra.mxu0 0.0
  %2570 = vmatprep.subr.mxu0 0.0
  %2571 = vmatpush1.msra.mxu0 0.0
  %2572 = vmatprep.subr.mxu0 0.0
  %2573 = vmatpush1.msra.mxu0 0.0
  %2574 = vmatprep.subr.mxu0 0.0
  %2575 = vmatpush1.msra.mxu0 0.0
  %2576 = vmatprep.subr.mxu0 0.0
  %2577 = vmatpush1.msra.mxu0 0.0
  %2578 = vmatprep.subr.mxu0 0.0
  %2579 = vmatpush1.msra.mxu0 0.0
  %2580 = vmatprep.subr.mxu0 0.0
  %2581 = vmatpush1.msra.mxu0 0.0
  %2582 = vmatprep.subr.mxu0 0.0
  %2583 = vmatpush1.msra.mxu0 0.0
  %2584 = vmatprep.subr.mxu0 0.0
  %2585 = vmatpush1.msra.mxu0 0.0
  %2586 = vmatprep.subr.mxu0 0.0
  %2587 = vmatpush1.msra.mxu0 0.0
  %2588 = vmatprep.subr.mxu0 0.0
  %2589 = vmatpush1.msra.mxu0 0.0
  %2590 = vmatprep.subr.mxu0 0.0
  %2591 = vmatpush1.msra.mxu0 0.0
  %2592 = vmatprep.subr.mxu0 0.0
  %2593 = vmatpush1.msra.mxu0 0.0
  %2594 = vmatprep.mubr.f32.mxu0 0.0
  %2595 = vmatmul.mubr.f32.gmra.mrb[0].mxu0 %v2118
  %v2596 = vpop.f32.mrb[0].mxu0
  %v2597 = vadd.f32 0.0, %v2596
  %v2598 = vpop.f32.mrb[0].mxu0
  %2599 = vmatprep.mubr.f32.mxu0 0.0
  %2600 = vmatmul.mubr.f32.gmra.mrb[0].mxu0 %v2121
  %v2601 = vpop.f32.mrb[0].mxu0
  %v2602 = vadd.f32 0.0, %v2601
  %v2603 = vpop.f32.mrb[0].mxu0
  %2604 = vmatprep.mubr.f32.mxu0 0.0
  %2605 = vmatmul.mubr.f32.gmra.mrb[0].mxu0 %v2124
  %v2606 = vpop.f32.mrb[0].mxu0
  %v2607 = vadd.f32 0.0, %v2606
  %v2608 = vpop.f32.mrb[0].mxu0
  %2609 = vmatprep.mubr.f32.mxu0 0.0
  %2610 = vmatmul.mubr.f32.gmra.mrb[0].mxu0 %v2127
  %v2611 = vpop.f32.mrb[0].mxu0
  %v2612 = vadd.f32 0.0, %v2611
  %v2613 = vpop.f32.mrb[0].mxu0
  %2614 = vmatprep.mubr.f32.mxu0 0.0
  %2615 = vmatmul.mubr.f32.gmra.mrb[0].mxu0 %v2130
  %v2616 = vpop.f32.mrb[0].mxu0
  %v2617 = vadd.f32 0.0, %v2616
  %v2618 = vpop.f32.mrb[0].mxu0
  %2619 = vmatprep.mubr.f32.mxu0 0.0
  %2620 = vmatmul.mubr.f32.gmra.mrb[0].mxu0 %v2133
  %v2621 = vpop.f32.mrb[0].mxu0
  %v2622 = vadd.f32 0.0, %v2621
  %v2623 = vpop.f32.mrb[0].mxu0
  %2624 = vmatprep.mubr.f32.mxu0 0.0
  %2625 = vmatmul.mubr.f32.gmra.mrb[0].mxu0 %v2136
  %v2626 = vpop.f32.mrb[0].mxu0
  %v2627 = vadd.f32 0.0, %v2626
  %v2628 = vpop.f32.mrb[0].mxu0
  %2629 = vmatprep.mubr.f32.mxu0 0.0
  %2630 = vmatmul.mubr.f32.gmra.mrb[0].mxu0 %v2139
  %v2631 = vpop.f32.mrb[0].mxu0
  %v2632 = vadd.f32 0.0, %v2631
  %v2633 = vpop.f32.mrb[0].mxu0
  %2634 = vdwg.mxu0
  %2635 = vmatprep.subr.mxu0 0.0
  %2636 = vmatpush1.msra.mxu0 %v2522
  %2637 = vmatprep.subr.mxu0 0.0
  %2638 = vmatpush1.msra.mxu0 %v2527
  %2639 = vmatprep.subr.mxu0 0.0
  %2640 = vmatpush1.msra.mxu0 0.0
  %2641 = vmatprep.subr.mxu0 0.0
  %2642 = vmatpush1.msra.mxu0 0.0
  %2643 = vmatprep.subr.mxu0 0.0
  %2644 = vmatpush1.msra.mxu0 0.0
  %2645 = vmatprep.subr.mxu0 0.0
  %2646 = vmatpush1.msra.mxu0 0.0
  %2647 = vmatprep.subr.mxu0 0.0
  %2648 = vmatpush1.msra.mxu0 0.0
  %2649 = vmatprep.subr.mxu0 0.0
  %2650 = vmatpush1.msra.mxu0 0.0
  %2651 = vmatprep.subr.mxu0 0.0
  %2652 = vmatpush1.msra.mxu0 0.0
  %2653 = vmatprep.subr.mxu0 0.0
  %2654 = vmatpush1.msra.mxu0 0.0
  %2655 = vmatprep.subr.mxu0 0.0
  %2656 = vmatpush1.msra.mxu0 0.0
  %2657 = vmatprep.subr.mxu0 0.0
  %2658 = vmatpush1.msra.mxu0 0.0
  %2659 = vmatprep.subr.mxu0 0.0
  %2660 = vmatpush1.msra.mxu0 0.0
  %2661 = vmatprep.subr.mxu0 0.0
  %2662 = vmatpush1.msra.mxu0 0.0
  %2663 = vmatprep.subr.mxu0 0.0
  %2664 = vmatpush1.msra.mxu0 0.0
  %2665 = vmatprep.subr.mxu0 0.0
  %2666 = vmatpush1.msra.mxu0 0.0
  %2667 = vmatprep.subr.mxu0 0.0
  %2668 = vmatpush1.msra.mxu0 0.0
  %2669 = vmatprep.subr.mxu0 0.0
  %2670 = vmatpush1.msra.mxu0 0.0
  %2671 = vmatprep.subr.mxu0 0.0
  %2672 = vmatpush1.msra.mxu0 0.0
  %2673 = vmatprep.subr.mxu0 0.0
  %2674 = vmatpush1.msra.mxu0 0.0
  %2675 = vmatprep.subr.mxu0 0.0
  %2676 = vmatpush1.msra.mxu0 0.0
  %2677 = vmatprep.subr.mxu0 0.0
  %2678 = vmatpush1.msra.mxu0 0.0
  %2679 = vmatprep.subr.mxu0 0.0
  %2680 = vmatpush1.msra.mxu0 0.0
  %2681 = vmatprep.subr.mxu0 0.0
  %2682 = vmatpush1.msra.mxu0 0.0
  %2683 = vmatprep.subr.mxu0 0.0
  %2684 = vmatpush1.msra.mxu0 0.0
  %2685 = vmatprep.subr.mxu0 0.0
  %2686 = vmatpush1.msra.mxu0 0.0
  %2687 = vmatprep.subr.mxu0 0.0
  %2688 = vmatpush1.msra.mxu0 0.0
  %2689 = vmatprep.subr.mxu0 0.0
  %2690 = vmatpush1.msra.mxu0 0.0
  %2691 = vmatprep.subr.mxu0 0.0
  %2692 = vmatpush1.msra.mxu0 0.0
  %2693 = vmatprep.subr.mxu0 0.0
  %2694 = vmatpush1.msra.mxu0 0.0
  %2695 = vmatprep.subr.mxu0 0.0
  %2696 = vmatpush1.msra.mxu0 0.0
  %2697 = vmatprep.subr.mxu0 0.0
  %2698 = vmatpush1.msra.mxu0 0.0
  %2699 = vmatprep.mubr.f32.mxu0 0.0
  %2700 = vmatmul.mubr.f32.gmra.mrb[0].mxu0 %v532
  %v2701 = vpop.f32.mrb[0].mxu0
  %v2702 = vadd.f32 %v2597, %v2701
  %v2703 = vpop.f32.mrb[0].mxu0
  %2704 = vmatprep.mubr.f32.mxu0 0.0
  %2705 = vmatmul.mubr.f32.gmra.mrb[0].mxu0 %v534
  %v2706 = vpop.f32.mrb[0].mxu0
  %v2707 = vadd.f32 %v2602, %v2706
  %v2708 = vpop.f32.mrb[0].mxu0
  %2709 = vmatprep.mubr.f32.mxu0 0.0
  %2710 = vmatmul.mubr.f32.gmra.mrb[0].mxu0 %v536
  %v2711 = vpop.f32.mrb[0].mxu0
  %v2712 = vadd.f32 %v2607, %v2711
  %v2713 = vpop.f32.mrb[0].mxu0
  %2714 = vmatprep.mubr.f32.mxu0 0.0
  %2715 = vmatmul.mubr.f32.gmra.mrb[0].mxu0 %v538
  %v2716 = vpop.f32.mrb[0].mxu0
  %v2717 = vadd.f32 %v2612, %v2716
  %v2718 = vpop.f32.mrb[0].mxu0
  %2719 = vmatprep.mubr.f32.mxu0 0.0
  %2720 = vmatmul.mubr.f32.gmra.mrb[0].mxu0 %v540
  %v2721 = vpop.f32.mrb[0].mxu0
  %v2722 = vadd.f32 %v2617, %v2721
  %v2723 = vpop.f32.mrb[0].mxu0
  %2724 = vmatprep.mubr.f32.mxu0 0.0
  %2725 = vmatmul.mubr.f32.gmra.mrb[0].mxu0 %v542
  %v2726 = vpop.f32.mrb[0].mxu0
  %v2727 = vadd.f32 %v2622, %v2726
  %v2728 = vpop.f32.mrb[0].mxu0
  %2729 = vmatprep.mubr.f32.mxu0 0.0
  %2730 = vmatmul.mubr.f32.gmra.mrb[0].mxu0 %v544
  %v2731 = vpop.f32.mrb[0].mxu0
  %v2732 = vadd.f32 %v2627, %v2731
  %v2733 = vpop.f32.mrb[0].mxu0
  %2734 = vmatprep.mubr.f32.mxu0 0.0
  %2735 = vmatmul.mubr.f32.gmra.mrb[0].mxu0 %v546
  %v2736 = vpop.f32.mrb[0].mxu0
  %v2737 = vadd.f32 %v2632, %v2736
  %v2738 = vpop.f32.mrb[0].mxu0
  %2739 = vdwg.mxu0
  %v2740 = vadd.f32 %v2702, %v1201
  %v2741 = vadd.f32 %v2707, %v1206
  %v2742 = vadd.f32 %v2712, %v1211
  %v2743 = vadd.f32 %v2717, %v1216
  %v2744 = vadd.f32 %v2722, %v1221
  %v2745 = vadd.f32 %v2727, %v1226
  %v2746 = vadd.f32 %v2732, %v1231
  %v2747 = vadd.f32 %v2737, %v1236
  %v2748 = vmax.f32 %v2740, 0.0
  %v2749 = vmax.f32 %v2741, 0.0
  %v2750 = vmax.f32 %v2742, 0.0
  %v2751 = vmax.f32 %v2743, 0.0
  %v2752 = vmax.f32 %v2744, 0.0
  %v2753 = vmax.f32 %v2745, 0.0
  %v2754 = vmax.f32 %v2746, 0.0
  %v2755 = vmax.f32 %v2747, 0.0
  %v2757 = vsel %vm531, %v2748, 0
  %v2760 = vsel %vm531, %v2749, 0
  %v2763 = vsel %vm531, %v2750, 0
  %v2766 = vsel %vm531, %v2751, 0
  %v2769 = vsel %vm531, %v2752, 0
  %v2772 = vsel %vm531, %v2753, 0
  %v2775 = vsel %vm531, %v2754, 0
  %v2778 = vsel %vm531, %v2755, 0
  %2780 = vmatprep.subr.mxu0 0.0
  %2781 = vmatpush1.msra.mxu0 %v44
  %2782 = vmatprep.subr.mxu0 0.0
  %2783 = vmatpush1.msra.mxu0 %v45
  %2784 = vmatprep.subr.mxu0 0.0
  %2785 = vmatpush1.msra.mxu0 0.0
  %2786 = vmatprep.subr.mxu0 0.0
  %2787 = vmatpush1.msra.mxu0 0.0
  %2788 = vmatprep.subr.mxu0 0.0
  %2789 = vmatpush1.msra.mxu0 0.0
  %2790 = vmatprep.subr.mxu0 0.0
  %2791 = vmatpush1.msra.mxu0 0.0
  %2792 = vmatprep.subr.mxu0 0.0
  %2793 = vmatpush1.msra.mxu0 0.0
  %2794 = vmatprep.subr.mxu0 0.0
  %2795 = vmatpush1.msra.mxu0 0.0
  %2796 = vmatprep.subr.mxu0 0.0
  %2797 = vmatpush1.msra.mxu0 0.0
  %2798 = vmatprep.subr.mxu0 0.0
  %2799 = vmatpush1.msra.mxu0 0.0
  %2800 = vmatprep.subr.mxu0 0.0
  %2801 = vmatpush1.msra.mxu0 0.0
  %2802 = vmatprep.subr.mxu0 0.0
  %2803 = vmatpush1.msra.mxu0 0.0
  %2804 = vmatprep.subr.mxu0 0.0
  %2805 = vmatpush1.msra.mxu0 0.0
  %2806 = vmatprep.subr.mxu0 0.0
  %2807 = vmatpush1.msra.mxu0 0.0
  %2808 = vmatprep.subr.mxu0 0.0
  %2809 = vmatpush1.msra.mxu0 0.0
  %2810 = vmatprep.subr.mxu0 0.0
  %2811 = vmatpush1.msra.mxu0 0.0
  %2812 = vmatprep.subr.mxu0 0.0
  %2813 = vmatpush1.msra.mxu0 0.0
  %2814 = vmatprep.subr.mxu0 0.0
  %2815 = vmatpush1.msra.mxu0 0.0
  %2816 = vmatprep.subr.mxu0 0.0
  %2817 = vmatpush1.msra.mxu0 0.0
  %2818 = vmatprep.subr.mxu0 0.0
  %2819 = vmatpush1.msra.mxu0 0.0
  %2820 = vmatprep.subr.mxu0 0.0
  %2821 = vmatpush1.msra.mxu0 0.0
  %2822 = vmatprep.subr.mxu0 0.0
  %2823 = vmatpush1.msra.mxu0 0.0
  %2824 = vmatprep.subr.mxu0 0.0
  %2825 = vmatpush1.msra.mxu0 0.0
  %2826 = vmatprep.subr.mxu0 0.0
  %2827 = vmatpush1.msra.mxu0 0.0
  %2828 = vmatprep.subr.mxu0 0.0
  %2829 = vmatpush1.msra.mxu0 0.0
  %2830 = vmatprep.subr.mxu0 0.0
  %2831 = vmatpush1.msra.mxu0 0.0
  %2832 = vmatprep.subr.mxu0 0.0
  %2833 = vmatpush1.msra.mxu0 0.0
  %2834 = vmatprep.subr.mxu0 0.0
  %2835 = vmatpush1.msra.mxu0 0.0
  %2836 = vmatprep.subr.mxu0 0.0
  %2837 = vmatpush1.msra.mxu0 0.0
  %2838 = vmatprep.subr.mxu0 0.0
  %2839 = vmatpush1.msra.mxu0 0.0
  %2840 = vmatprep.subr.mxu0 0.0
  %2841 = vmatpush1.msra.mxu0 0.0
  %2842 = vmatprep.subr.mxu0 0.0
  %2843 = vmatpush1.msra.mxu0 0.0
  %2844 = vmatprep.mubr.f32.mxu0 0.0
  %2845 = vmatmul.mubr.f32.gmra.mrb[0].mxu0 %v2757
  %v2846 = vpop.f32.mrb[0].mxu0
  %v2847 = vadd.f32 %v1636, %v2846
  %v2848 = vpop.f32.mrb[0].mxu0
  %2849 = vmatprep.mubr.f32.mxu0 0.0
  %2850 = vmatmul.mubr.f32.gmra.mrb[0].mxu0 %v2760
  %v2851 = vpop.f32.mrb[0].mxu0
  %v2852 = vadd.f32 %v1636, %v2851
  %v2853 = vpop.f32.mrb[0].mxu0
  %2854 = vmatprep.mubr.f32.mxu0 0.0
  %2855 = vmatmul.mubr.f32.gmra.mrb[0].mxu0 %v2763
  %v2856 = vpop.f32.mrb[0].mxu0
  %v2857 = vadd.f32 %v1636, %v2856
  %v2858 = vpop.f32.mrb[0].mxu0
  %2859 = vmatprep.mubr.f32.mxu0 0.0
  %2860 = vmatmul.mubr.f32.gmra.mrb[0].mxu0 %v2766
  %v2861 = vpop.f32.mrb[0].mxu0
  %v2862 = vadd.f32 %v1636, %v2861
  %v2863 = vpop.f32.mrb[0].mxu0
  %2864 = vmatprep.mubr.f32.mxu0 0.0
  %2865 = vmatmul.mubr.f32.gmra.mrb[0].mxu0 %v2769
  %v2866 = vpop.f32.mrb[0].mxu0
  %v2867 = vadd.f32 %v1636, %v2866
  %v2868 = vpop.f32.mrb[0].mxu0
  %2869 = vmatprep.mubr.f32.mxu0 0.0
  %2870 = vmatmul.mubr.f32.gmra.mrb[0].mxu0 %v2772
  %v2871 = vpop.f32.mrb[0].mxu0
  %v2872 = vadd.f32 %v1636, %v2871
  %v2873 = vpop.f32.mrb[0].mxu0
  %2874 = vmatprep.mubr.f32.mxu0 0.0
  %2875 = vmatmul.mubr.f32.gmra.mrb[0].mxu0 %v2775
  %v2876 = vpop.f32.mrb[0].mxu0
  %v2877 = vadd.f32 %v1636, %v2876
  %v2878 = vpop.f32.mrb[0].mxu0
  %2879 = vmatprep.mubr.f32.mxu0 0.0
  %2880 = vmatmul.mubr.f32.gmra.mrb[0].mxu0 %v2778
  %v2881 = vpop.f32.mrb[0].mxu0
  %v2882 = vadd.f32 %v1636, %v2881
  %v2883 = vpop.f32.mrb[0].mxu0
  %2884 = vdwg.mxu0
  %v2885 = vmax.f32 %v2847, 0.0
  %v2886 = vmax.f32 %v2852, 0.0
  %v2887 = vmax.f32 %v2857, 0.0
  %v2888 = vmax.f32 %v2862, 0.0
  %v2889 = vmax.f32 %v2867, 0.0
  %v2890 = vmax.f32 %v2872, 0.0
  %v2891 = vmax.f32 %v2877, 0.0
  %v2892 = vmax.f32 %v2882, 0.0
  %2893 = vmatprep.subr.mxu0 0.0
  %2894 = vmatpush1.msra.mxu0 %v2885
  %2895 = vmatprep.subr.mxu0 0.0
  %2896 = vmatpush1.msra.mxu0 %v2886
  %2897 = vmatprep.subr.mxu0 0.0
  %2898 = vmatpush1.msra.mxu0 %v2887
  %2899 = vmatprep.subr.mxu0 0.0
  %2900 = vmatpush1.msra.mxu0 %v2888
  %2901 = vmatprep.subr.mxu0 0.0
  %2902 = vmatpush1.msra.mxu0 %v2889
  %2903 = vmatprep.subr.mxu0 0.0
  %2904 = vmatpush1.msra.mxu0 %v2890
  %2905 = vmatprep.subr.mxu0 0.0
  %2906 = vmatpush1.msra.mxu0 %v2891
  %2907 = vmatprep.subr.mxu0 0.0
  %2908 = vmatpush1.msra.mxu0 %v2892
  %2909 = vmatprep.subr.mxu0 0.0
  %2910 = vmatpush1.msra.mxu0 0.0
  %2911 = vmatprep.subr.mxu0 0.0
  %2912 = vmatpush1.msra.mxu0 0.0
  %2913 = vmatprep.subr.mxu0 0.0
  %2914 = vmatpush1.msra.mxu0 0.0
  %2915 = vmatprep.subr.mxu0 0.0
  %2916 = vmatpush1.msra.mxu0 0.0
  %2917 = vmatprep.subr.mxu0 0.0
  %2918 = vmatpush1.msra.mxu0 0.0
  %2919 = vmatprep.subr.mxu0 0.0
  %2920 = vmatpush1.msra.mxu0 0.0
  %2921 = vmatprep.subr.mxu0 0.0
  %2922 = vmatpush1.msra.mxu0 0.0
  %2923 = vmatprep.subr.mxu0 0.0
  %2924 = vmatpush1.msra.mxu0 0.0
  %2925 = vmatprep.subr.mxu0 0.0
  %2926 = vmatpush1.msra.mxu0 0.0
  %2927 = vmatprep.subr.mxu0 0.0
  %2928 = vmatpush1.msra.mxu0 0.0
  %2929 = vmatprep.subr.mxu0 0.0
  %2930 = vmatpush1.msra.mxu0 0.0
  %2931 = vmatprep.subr.mxu0 0.0
  %2932 = vmatpush1.msra.mxu0 0.0
  %2933 = vmatprep.subr.mxu0 0.0
  %2934 = vmatpush1.msra.mxu0 0.0
  %2935 = vmatprep.subr.mxu0 0.0
  %2936 = vmatpush1.msra.mxu0 0.0
  %2937 = vmatprep.subr.mxu0 0.0
  %2938 = vmatpush1.msra.mxu0 0.0
  %2939 = vmatprep.subr.mxu0 0.0
  %2940 = vmatpush1.msra.mxu0 0.0
  %2941 = vmatprep.subr.mxu0 0.0
  %2942 = vmatpush1.msra.mxu0 0.0
  %2943 = vmatprep.subr.mxu0 0.0
  %2944 = vmatpush1.msra.mxu0 0.0
  %2945 = vmatprep.subr.mxu0 0.0
  %2946 = vmatpush1.msra.mxu0 0.0
  %2947 = vmatprep.subr.mxu0 0.0
  %2948 = vmatpush1.msra.mxu0 0.0
  %2949 = vmatprep.subr.mxu0 0.0
  %2950 = vmatpush1.msra.mxu0 0.0
  %2951 = vmatprep.subr.mxu0 0.0
  %2952 = vmatpush1.msra.mxu0 0.0
  %2953 = vmatprep.subr.mxu0 0.0
  %2954 = vmatpush1.msra.mxu0 0.0
  %2955 = vmatprep.subr.mxu0 0.0
  %2956 = vmatpush1.msra.mxu0 0.0
  %2957 = vmatprep.mubr.f32.mxu0 0.0
  %2958 = vmatmul.mubr.f32.gmra.mrb[0].mxu0 %v1776
  %v2959 = vpop.f32.mrb[0].mxu0
  %v2960 = vadd.f32 0.0, %v2959
  %v2961 = vpop.f32.mrb[0].mxu0
  %2962 = vmatprep.mubr.f32.mxu0 0.0
  %2963 = vmatmul.mubr.f32.gmra.mrb[0].mxu0 %v1779
  %v2964 = vpop.f32.mrb[0].mxu0
  %v2965 = vadd.f32 0.0, %v2964
  %v2966 = vpop.f32.mrb[0].mxu0
  %2967 = vdwg.mxu0
  %v2969 = vsel %vm531, %v2960, 0
  %v2972 = vsel %vm531, %v2965, 0
  %2974 = vmatprep.subr.mxu0 0.0
  %2975 = vmatpush1.msra.mxu0 %v51
  %2976 = vmatprep.subr.mxu0 0.0
  %2977 = vmatpush1.msra.mxu0 %v52
  %2978 = vmatprep.subr.mxu0 0.0
  %2979 = vmatpush1.msra.mxu0 0.0
  %2980 = vmatprep.subr.mxu0 0.0
  %2981 = vmatpush1.msra.mxu0 0.0
  %2982 = vmatprep.subr.mxu0 0.0
  %2983 = vmatpush1.msra.mxu0 0.0
  %2984 = vmatprep.subr.mxu0 0.0
  %2985 = vmatpush1.msra.mxu0 0.0
  %2986 = vmatprep.subr.mxu0 0.0
  %2987 = vmatpush1.msra.mxu0 0.0
  %2988 = vmatprep.subr.mxu0 0.0
  %2989 = vmatpush1.msra.mxu0 0.0
  %2990 = vmatprep.subr.mxu0 0.0
  %2991 = vmatpush1.msra.mxu0 0.0
  %2992 = vmatprep.subr.mxu0 0.0
  %2993 = vmatpush1.msra.mxu0 0.0
  %2994 = vmatprep.subr.mxu0 0.0
  %2995 = vmatpush1.msra.mxu0 0.0
  %2996 = vmatprep.subr.mxu0 0.0
  %2997 = vmatpush1.msra.mxu0 0.0
  %2998 = vmatprep.subr.mxu0 0.0
  %2999 = vmatpush1.msra.mxu0 0.0
  %3000 = vmatprep.subr.mxu0 0.0
  %3001 = vmatpush1.msra.mxu0 0.0
  %3002 = vmatprep.subr.mxu0 0.0
  %3003 = vmatpush1.msra.mxu0 0.0
  %3004 = vmatprep.subr.mxu0 0.0
  %3005 = vmatpush1.msra.mxu0 0.0
  %3006 = vmatprep.subr.mxu0 0.0
  %3007 = vmatpush1.msra.mxu0 0.0
  %3008 = vmatprep.subr.mxu0 0.0
  %3009 = vmatpush1.msra.mxu0 0.0
  %3010 = vmatprep.subr.mxu0 0.0
  %3011 = vmatpush1.msra.mxu0 0.0
  %3012 = vmatprep.subr.mxu0 0.0
  %3013 = vmatpush1.msra.mxu0 0.0
  %3014 = vmatprep.subr.mxu0 0.0
  %3015 = vmatpush1.msra.mxu0 0.0
  %3016 = vmatprep.subr.mxu0 0.0
  %3017 = vmatpush1.msra.mxu0 0.0
  %3018 = vmatprep.subr.mxu0 0.0
  %3019 = vmatpush1.msra.mxu0 0.0
  %3020 = vmatprep.subr.mxu0 0.0
  %3021 = vmatpush1.msra.mxu0 0.0
  %3022 = vmatprep.subr.mxu0 0.0
  %3023 = vmatpush1.msra.mxu0 0.0
  %3024 = vmatprep.subr.mxu0 0.0
  %3025 = vmatpush1.msra.mxu0 0.0
  %3026 = vmatprep.subr.mxu0 0.0
  %3027 = vmatpush1.msra.mxu0 0.0
  %3028 = vmatprep.subr.mxu0 0.0
  %3029 = vmatpush1.msra.mxu0 0.0
  %3030 = vmatprep.subr.mxu0 0.0
  %3031 = vmatpush1.msra.mxu0 0.0
  %3032 = vmatprep.subr.mxu0 0.0
  %3033 = vmatpush1.msra.mxu0 0.0
  %3034 = vmatprep.subr.mxu0 0.0
  %3035 = vmatpush1.msra.mxu0 0.0
  %3036 = vmatprep.subr.mxu0 0.0
  %3037 = vmatpush1.msra.mxu0 0.0
  %3038 = vmatprep.mubr.f32.mxu0 0.0
  %3039 = vmatmul.mubr.f32.gmra.mrb[0].mxu0 %v2969
  %v3040 = vpop.f32.mrb[0].mxu0
  %v3041 = vadd.f32 0.0, %v3040
  %v3042 = vpop.f32.mrb[0].mxu0
  %3043 = vmatprep.mubr.f32.mxu0 0.0
  %3044 = vmatmul.mubr.f32.gmra.mrb[0].mxu0 %v2972
  %v3045 = vpop.f32.mrb[0].mxu0
  %v3046 = vadd.f32 0.0, %v3045
  %v3047 = vpop.f32.mrb[0].mxu0
  %3048 = vdwg.mxu0
  %v3050 = vsel %vm68, %v2111, 0
  %v3053 = vsel %vm68, %v2112, 0
  %3055 = vmatprep.subr.mxu0 0.0
  %3056 = vmatpush1.msra.mxu0 %v47
  %3057 = vmatprep.subr.mxu0 0.0
  %3058 = vmatpush1.msra.mxu0 %v48
  %3059 = vmatprep.subr.mxu0 0.0
  %3060 = vmatpush1.msra.mxu0 %v49
  %3061 = vmatprep.subr.mxu0 0.0
  %3062 = vmatpush1.msra.mxu0 %v50
  %3063 = vmatprep.subr.mxu0 0.0
  %3064 = vmatpush1.msra.mxu0 0.0
  %3065 = vmatprep.subr.mxu0 0.0
  %3066 = vmatpush1.msra.mxu0 0.0
  %3067 = vmatprep.subr.mxu0 0.0
  %3068 = vmatpush1.msra.mxu0 0.0
  %3069 = vmatprep.subr.mxu0 0.0
  %3070 = vmatpush1.msra.mxu0 0.0
  %3071 = vmatprep.subr.mxu0 0.0
  %3072 = vmatpush1.msra.mxu0 0.0
  %3073 = vmatprep.subr.mxu0 0.0
  %3074 = vmatpush1.msra.mxu0 0.0
  %3075 = vmatprep.subr.mxu0 0.0
  %3076 = vmatpush1.msra.mxu0 0.0
  %3077 = vmatprep.subr.mxu0 0.0
  %3078 = vmatpush1.msra.mxu0 0.0
  %3079 = vmatprep.subr.mxu0 0.0
  %3080 = vmatpush1.msra.mxu0 0.0
  %3081 = vmatprep.subr.mxu0 0.0
  %3082 = vmatpush1.msra.mxu0 0.0
  %3083 = vmatprep.subr.mxu0 0.0
  %3084 = vmatpush1.msra.mxu0 0.0
  %3085 = vmatprep.subr.mxu0 0.0
  %3086 = vmatpush1.msra.mxu0 0.0
  %3087 = vmatprep.subr.mxu0 0.0
  %3088 = vmatpush1.msra.mxu0 0.0
  %3089 = vmatprep.subr.mxu0 0.0
  %3090 = vmatpush1.msra.mxu0 0.0
  %3091 = vmatprep.subr.mxu0 0.0
  %3092 = vmatpush1.msra.mxu0 0.0
  %3093 = vmatprep.subr.mxu0 0.0
  %3094 = vmatpush1.msra.mxu0 0.0
  %3095 = vmatprep.subr.mxu0 0.0
  %3096 = vmatpush1.msra.mxu0 0.0
  %3097 = vmatprep.subr.mxu0 0.0
  %3098 = vmatpush1.msra.mxu0 0.0
  %3099 = vmatprep.subr.mxu0 0.0
  %3100 = vmatpush1.msra.mxu0 0.0
  %3101 = vmatprep.subr.mxu0 0.0
  %3102 = vmatpush1.msra.mxu0 0.0
  %3103 = vmatprep.subr.mxu0 0.0
  %3104 = vmatpush1.msra.mxu0 0.0
  %3105 = vmatprep.subr.mxu0 0.0
  %3106 = vmatpush1.msra.mxu0 0.0
  %3107 = vmatprep.subr.mxu0 0.0
  %3108 = vmatpush1.msra.mxu0 0.0
  %3109 = vmatprep.subr.mxu0 0.0
  %3110 = vmatpush1.msra.mxu0 0.0
  %3111 = vmatprep.subr.mxu0 0.0
  %3112 = vmatpush1.msra.mxu0 0.0
  %3113 = vmatprep.subr.mxu0 0.0
  %3114 = vmatpush1.msra.mxu0 0.0
  %3115 = vmatprep.subr.mxu0 0.0
  %3116 = vmatpush1.msra.mxu0 0.0
  %3117 = vmatprep.subr.mxu0 0.0
  %3118 = vmatpush1.msra.mxu0 0.0
  %3119 = vmatprep.mubr.f32.mxu0 0.0
  %3120 = vmatmul.mubr.f32.gmra.mrb[0].mxu0 %v3050
  %v3121 = vpop.f32.mrb[0].mxu0
  %v3122 = vadd.f32 %v3041, %v3121
  %v3123 = vpop.f32.mrb[0].mxu0
  %3124 = vmatprep.mubr.f32.mxu0 0.0
  %3125 = vmatmul.mubr.f32.gmra.mrb[0].mxu0 %v3053
  %v3126 = vpop.f32.mrb[0].mxu0
  %v3127 = vadd.f32 %v3046, %v3126
  %v3128 = vpop.f32.mrb[0].mxu0
  %3129 = vdwg.mxu0
  %v3130 = vadd.f32 %v3122, %v2021
  %v3131 = vadd.f32 %v3127, %v2021
  %v3132 = vmax.f32 %v3130, 0.0
  %v3133 = vmax.f32 %v3131, 0.0
  %v3135 = vsel %vm68, %v3132, 0
  %v3138 = vsel %vm68, %v3133, 0
  %3140 = vmatprep.subr.mxu0 0.0
  %3141 = vmatpush1.msra.mxu0 %v54
  %3142 = vmatprep.subr.mxu0 0.0
  %3143 = vmatpush1.msra.mxu0 %v55
  %3144 = vmatprep.subr.mxu0 0.0
  %3145 = vmatpush1.msra.mxu0 %v56
  %3146 = vmatprep.subr.mxu0 0.0
  %3147 = vmatpush1.msra.mxu0 %v57
  %3148 = vmatprep.subr.mxu0 0.0
  %3149 = vmatpush1.msra.mxu0 0.0
  %3150 = vmatprep.subr.mxu0 0.0
  %3151 = vmatpush1.msra.mxu0 0.0
  %3152 = vmatprep.subr.mxu0 0.0
  %3153 = vmatpush1.msra.mxu0 0.0
  %3154 = vmatprep.subr.mxu0 0.0
  %3155 = vmatpush1.msra.mxu0 0.0
  %3156 = vmatprep.subr.mxu0 0.0
  %3157 = vmatpush1.msra.mxu0 0.0
  %3158 = vmatprep.subr.mxu0 0.0
  %3159 = vmatpush1.msra.mxu0 0.0
  %3160 = vmatprep.subr.mxu0 0.0
  %3161 = vmatpush1.msra.mxu0 0.0
  %3162 = vmatprep.subr.mxu0 0.0
  %3163 = vmatpush1.msra.mxu0 0.0
  %3164 = vmatprep.subr.mxu0 0.0
  %3165 = vmatpush1.msra.mxu0 0.0
  %3166 = vmatprep.subr.mxu0 0.0
  %3167 = vmatpush1.msra.mxu0 0.0
  %3168 = vmatprep.subr.mxu0 0.0
  %3169 = vmatpush1.msra.mxu0 0.0
  %3170 = vmatprep.subr.mxu0 0.0
  %3171 = vmatpush1.msra.mxu0 0.0
  %3172 = vmatprep.subr.mxu0 0.0
  %3173 = vmatpush1.msra.mxu0 0.0
  %3174 = vmatprep.subr.mxu0 0.0
  %3175 = vmatpush1.msra.mxu0 0.0
  %3176 = vmatprep.subr.mxu0 0.0
  %3177 = vmatpush1.msra.mxu0 0.0
  %3178 = vmatprep.subr.mxu0 0.0
  %3179 = vmatpush1.msra.mxu0 0.0
  %3180 = vmatprep.subr.mxu0 0.0
  %3181 = vmatpush1.msra.mxu0 0.0
  %3182 = vmatprep.subr.mxu0 0.0
  %3183 = vmatpush1.msra.mxu0 0.0
  %3184 = vmatprep.subr.mxu0 0.0
  %3185 = vmatpush1.msra.mxu0 0.0
  %3186 = vmatprep.subr.mxu0 0.0
  %3187 = vmatpush1.msra.mxu0 0.0
  %3188 = vmatprep.subr.mxu0 0.0
  %3189 = vmatpush1.msra.mxu0 0.0
  %3190 = vmatprep.subr.mxu0 0.0
  %3191 = vmatpush1.msra.mxu0 0.0
  %3192 = vmatprep.subr.mxu0 0.0
  %3193 = vmatpush1.msra.mxu0 0.0
  %3194 = vmatprep.subr.mxu0 0.0
  %3195 = vmatpush1.msra.mxu0 0.0
  %3196 = vmatprep.subr.mxu0 0.0
  %3197 = vmatpush1.msra.mxu0 0.0
  %3198 = vmatprep.subr.mxu0 0.0
  %3199 = vmatpush1.msra.mxu0 0.0
  %3200 = vmatprep.subr.mxu0 0.0
  %3201 = vmatpush1.msra.mxu0 0.0
  %3202 = vmatprep.subr.mxu0 0.0
  %3203 = vmatpush1.msra.mxu0 0.0
  %3204 = vmatprep.mubr.f32.mxu0 0.0
  %3205 = vmatmul.mubr.f32.gmra.mrb[0].mxu0 %v3135
  %v3206 = vpop.f32.mrb[0].mxu0
  %v3207 = vadd.f32 %v2029, %v3206
  %v3208 = vpop.f32.mrb[0].mxu0
  %3209 = vmatprep.mubr.f32.mxu0 0.0
  %3210 = vmatmul.mubr.f32.gmra.mrb[0].mxu0 %v3138
  %v3211 = vpop.f32.mrb[0].mxu0
  %v3212 = vadd.f32 %v2029, %v3211
  %v3213 = vpop.f32.mrb[0].mxu0
  %3214 = vdwg.mxu0
  %v3215 = vmax.f32 %v3207, 0.0
  %v3216 = vmax.f32 %v3212, 0.0
  %v3218 = vsel %vm531, %v2885, 0
  %v3221 = vsel %vm531, %v2886, 0
  %v3224 = vsel %vm531, %v2887, 0
  %v3227 = vsel %vm531, %v2888, 0
  %v3230 = vsel %vm531, %v2889, 0
  %v3233 = vsel %vm531, %v2890, 0
  %v3236 = vsel %vm531, %v2891, 0
  %v3239 = vsel %vm531, %v2892, 0
  %3241 = vmatprep.subr.mxu0 0.0
  %3242 = vmatpush1.msra.mxu0 %v59
  %3243 = vmatprep.subr.mxu0 0.0
  %3244 = vmatpush1.msra.mxu0 %v60
  %3245 = vmatprep.subr.mxu0 0.0
  %3246 = vmatpush1.msra.mxu0 0.0
  %3247 = vmatprep.subr.mxu0 0.0
  %3248 = vmatpush1.msra.mxu0 0.0
  %3249 = vmatprep.subr.mxu0 0.0
  %3250 = vmatpush1.msra.mxu0 0.0
  %3251 = vmatprep.subr.mxu0 0.0
  %3252 = vmatpush1.msra.mxu0 0.0
  %3253 = vmatprep.subr.mxu0 0.0
  %3254 = vmatpush1.msra.mxu0 0.0
  %3255 = vmatprep.subr.mxu0 0.0
  %3256 = vmatpush1.msra.mxu0 0.0
  %3257 = vmatprep.subr.mxu0 0.0
  %3258 = vmatpush1.msra.mxu0 0.0
  %3259 = vmatprep.subr.mxu0 0.0
  %3260 = vmatpush1.msra.mxu0 0.0
  %3261 = vmatprep.subr.mxu0 0.0
  %3262 = vmatpush1.msra.mxu0 0.0
  %3263 = vmatprep.subr.mxu0 0.0
  %3264 = vmatpush1.msra.mxu0 0.0
  %3265 = vmatprep.subr.mxu0 0.0
  %3266 = vmatpush1.msra.mxu0 0.0
  %3267 = vmatprep.subr.mxu0 0.0
  %3268 = vmatpush1.msra.mxu0 0.0
  %3269 = vmatprep.subr.mxu0 0.0
  %3270 = vmatpush1.msra.mxu0 0.0
  %3271 = vmatprep.subr.mxu0 0.0
  %3272 = vmatpush1.msra.mxu0 0.0
  %3273 = vmatprep.subr.mxu0 0.0
  %3274 = vmatpush1.msra.mxu0 0.0
  %3275 = vmatprep.subr.mxu0 0.0
  %3276 = vmatpush1.msra.mxu0 0.0
  %3277 = vmatprep.subr.mxu0 0.0
  %3278 = vmatpush1.msra.mxu0 0.0
  %3279 = vmatprep.subr.mxu0 0.0
  %3280 = vmatpush1.msra.mxu0 0.0
  %3281 = vmatprep.subr.mxu0 0.0
  %3282 = vmatpush1.msra.mxu0 0.0
  %3283 = vmatprep.subr.mxu0 0.0
  %3284 = vmatpush1.msra.mxu0 0.0
  %3285 = vmatprep.subr.mxu0 0.0
  %3286 = vmatpush1.msra.mxu0 0.0
  %3287 = vmatprep.subr.mxu0 0.0
  %3288 = vmatpush1.msra.mxu0 0.0
  %3289 = vmatprep.subr.mxu0 0.0
  %3290 = vmatpush1.msra.mxu0 0.0
  %3291 = vmatprep.subr.mxu0 0.0
  %3292 = vmatpush1.msra.mxu0 0.0
  %3293 = vmatprep.subr.mxu0 0.0
  %3294 = vmatpush1.msra.mxu0 0.0
  %3295 = vmatprep.subr.mxu0 0.0
  %3296 = vmatpush1.msra.mxu0 0.0
  %3297 = vmatprep.subr.mxu0 0.0
  %3298 = vmatpush1.msra.mxu0 0.0
  %3299 = vmatprep.subr.mxu0 0.0
  %3300 = vmatpush1.msra.mxu0 0.0
  %3301 = vmatprep.subr.mxu0 0.0
  %3302 = vmatpush1.msra.mxu0 0.0
  %3303 = vmatprep.subr.mxu0 0.0
  %3304 = vmatpush1.msra.mxu0 0.0
  %3305 = vmatprep.mubr.f32.mxu0 0.0
  %3306 = vmatmul.mubr.f32.gmra.mrb[0].mxu0 %v3218
  %v3307 = vpop.f32.mrb[0].mxu0
  %v3308 = vadd.f32 %v2116, %v3307
  %v3309 = vpop.f32.mrb[0].mxu0
  %3310 = vmatprep.mubr.f32.mxu0 0.0
  %3311 = vmatmul.mubr.f32.gmra.mrb[0].mxu0 %v3221
  %v3312 = vpop.f32.mrb[0].mxu0
  %v3313 = vadd.f32 %v2116, %v3312
  %v3314 = vpop.f32.mrb[0].mxu0
  %3315 = vmatprep.mubr.f32.mxu0 0.0
  %3316 = vmatmul.mubr.f32.gmra.mrb[0].mxu0 %v3224
  %v3317 = vpop.f32.mrb[0].mxu0
  %v3318 = vadd.f32 %v2116, %v3317
  %v3319 = vpop.f32.mrb[0].mxu0
  %3320 = vmatprep.mubr.f32.mxu0 0.0
  %3321 = vmatmul.mubr.f32.gmra.mrb[0].mxu0 %v3227
  %v3322 = vpop.f32.mrb[0].mxu0
  %v3323 = vadd.f32 %v2116, %v3322
  %v3324 = vpop.f32.mrb[0].mxu0
  %3325 = vmatprep.mubr.f32.mxu0 0.0
  %3326 = vmatmul.mubr.f32.gmra.mrb[0].mxu0 %v3230
  %v3327 = vpop.f32.mrb[0].mxu0
  %v3328 = vadd.f32 %v2116, %v3327
  %v3329 = vpop.f32.mrb[0].mxu0
  %3330 = vmatprep.mubr.f32.mxu0 0.0
  %3331 = vmatmul.mubr.f32.gmra.mrb[0].mxu0 %v3233
  %v3332 = vpop.f32.mrb[0].mxu0
  %v3333 = vadd.f32 %v2116, %v3332
  %v3334 = vpop.f32.mrb[0].mxu0
  %3335 = vmatprep.mubr.f32.mxu0 0.0
  %3336 = vmatmul.mubr.f32.gmra.mrb[0].mxu0 %v3236
  %v3337 = vpop.f32.mrb[0].mxu0
  %v3338 = vadd.f32 %v2116, %v3337
  %v3339 = vpop.f32.mrb[0].mxu0
  %3340 = vmatprep.mubr.f32.mxu0 0.0
  %3341 = vmatmul.mubr.f32.gmra.mrb[0].mxu0 %v3239
  %v3342 = vpop.f32.mrb[0].mxu0
  %v3343 = vadd.f32 %v2116, %v3342
  %v3344 = vpop.f32.mrb[0].mxu0
  %3345 = vdwg.mxu0
  %v3346 = vmax.f32 %v3308, 0.0
  %v3347 = vmax.f32 %v3313, 0.0
  %v3348 = vmax.f32 %v3318, 0.0
  %v3349 = vmax.f32 %v3323, 0.0
  %v3350 = vmax.f32 %v3328, 0.0
  %v3351 = vmax.f32 %v3333, 0.0
  %v3352 = vmax.f32 %v3338, 0.0
  %v3353 = vmax.f32 %v3343, 0.0
  %v3355 = vsel %vm531, %v3346, 0
  %v3358 = vsel %vm531, %v3347, 0
  %v3361 = vsel %vm531, %v3348, 0
  %v3364 = vsel %vm531, %v3349, 0
  %v3367 = vsel %vm531, %v3350, 0
  %v3370 = vsel %vm531, %v3351, 0
  %v3373 = vsel %vm531, %v3352, 0
  %v3376 = vsel %vm531, %v3353, 0
  %3378 = vmatprep.subr.mxu0 0.0
  %3379 = vmatpush1.xpose.msra.mxu0 %v3355
  %3380 = vmatprep.subr.mxu0 0.0
  %3381 = vmatpush1.xpose.msra.mxu0 %v3358
  %3382 = vmatprep.subr.mxu0 0.0
  %3383 = vmatpush1.xpose.msra.mxu0 %v3361
  %3384 = vmatprep.subr.mxu0 0.0
  %3385 = vmatpush1.xpose.msra.mxu0 %v3364
  %3386 = vmatprep.subr.mxu0 0.0
  %3387 = vmatpush1.xpose.msra.mxu0 %v3367
  %3388 = vmatprep.subr.mxu0 0.0
  %3389 = vmatpush1.xpose.msra.mxu0 %v3370
  %3390 = vmatprep.subr.mxu0 0.0
  %3391 = vmatpush1.xpose.msra.mxu0 %v3373
  %3392 = vmatprep.subr.mxu0 0.0
  %3393 = vmatpush1.xpose.msra.mxu0 %v3376
  %3394 = vmatprep.subr.mxu0 0.0
  %3395 = vmatpush1.xpose.msra.mxu0 0.0
  %3396 = vmatprep.subr.mxu0 0.0
  %3397 = vmatpush1.xpose.msra.mxu0 0.0
  %3398 = vmatprep.subr.mxu0 0.0
  %3399 = vmatpush1.xpose.msra.mxu0 0.0
  %3400 = vmatprep.subr.mxu0 0.0
  %3401 = vmatpush1.xpose.msra.mxu0 0.0
  %3402 = vmatprep.subr.mxu0 0.0
  %3403 = vmatpush1.xpose.msra.mxu0 0.0
  %3404 = vmatprep.subr.mxu0 0.0
  %3405 = vmatpush1.xpose.msra.mxu0 0.0
  %3406 = vmatprep.subr.mxu0 0.0
  %3407 = vmatpush1.xpose.msra.mxu0 0.0
  %3408 = vmatprep.subr.mxu0 0.0
  %3409 = vmatpush1.xpose.msra.mxu0 0.0
  %3410 = vmatprep.subr.mxu0 0.0
  %3411 = vmatpush1.xpose.msra.mxu0 0.0
  %3412 = vmatprep.subr.mxu0 0.0
  %3413 = vmatpush1.xpose.msra.mxu0 0.0
  %3414 = vmatprep.subr.mxu0 0.0
  %3415 = vmatpush1.xpose.msra.mxu0 0.0
  %3416 = vmatprep.subr.mxu0 0.0
  %3417 = vmatpush1.xpose.msra.mxu0 0.0
  %3418 = vmatprep.subr.mxu0 0.0
  %3419 = vmatpush1.xpose.msra.mxu0 0.0
  %3420 = vmatprep.subr.mxu0 0.0
  %3421 = vmatpush1.xpose.msra.mxu0 0.0
  %3422 = vmatprep.subr.mxu0 0.0
  %3423 = vmatpush1.xpose.msra.mxu0 0.0
  %3424 = vmatprep.subr.mxu0 0.0
  %3425 = vmatpush1.xpose.msra.mxu0 0.0
  %3426 = vmatprep.subr.mxu0 0.0
  %3427 = vmatpush1.xpose.msra.mxu0 0.0
  %3428 = vmatprep.subr.mxu0 0.0
  %3429 = vmatpush1.xpose.msra.mxu0 0.0
  %3430 = vmatprep.subr.mxu0 0.0
  %3431 = vmatpush1.xpose.msra.mxu0 0.0
  %3432 = vmatprep.subr.mxu0 0.0
  %3433 = vmatpush1.xpose.msra.mxu0 0.0
  %3434 = vmatprep.subr.mxu0 0.0
  %3435 = vmatpush1.xpose.msra.mxu0 0.0
  %3436 = vmatprep.subr.mxu0 0.0
  %3437 = vmatpush1.xpose.msra.mxu0 0.0
  %3438 = vmatprep.subr.mxu0 0.0
  %3439 = vmatpush1.xpose.msra.mxu0 0.0
  %3440 = vmatprep.subr.mxu0 0.0
  %3441 = vmatpush1.xpose.msra.mxu0 0.0
  %3442 = vmatprep.mubr.f32.mxu0 0.0
  %3443 = vmatmul.mubr.f32.gmra.mrb[0].mxu0 %v2260
  %v3444 = vpop.f32.mrb[0].mxu0
  %v3445 = vadd.f32 %v2257, %v3444
  %v3446 = vpop.f32.mrb[0].mxu0
  %3447 = vdwg.mxu0
  %v3448 = vxor.u32 %v3445, 2147483648
  %v3449 = vmul.f32 %v3448, 1.442695
  %v3450 = vpow.pop %v3449
  %v3451 = vadd.f32 %v3450, 1.0
  %v3452 = vrcp.pop %v3451
  %v3453 = vmul.f32 1.0, %v3452
  %3454 = vst.msk [vmem:[%s2 + $0x1] sm:$0x1] %vm2362, %v3453
  %v3455 = vmul.f32 %v3215, %v1239
  %v3456 = vmul.f32 %v3216, %v1240
  %v3457 = vsub.f32 %v3215, %v3455
  %v3458 = vsub.f32 %v3216, %v3456
  %v3460 = vsel %vm68, %v3457, 0
  %v3463 = vsel %vm68, %v3458, 0
  %3465 = vmatprep.subr.mxu0 0.0
  %3466 = vmatpush1.msra.mxu0 %v35
  %3467 = vmatprep.subr.mxu0 0.0
  %3468 = vmatpush1.msra.mxu0 %v36
  %3469 = vmatprep.subr.mxu0 0.0
  %3470 = vmatpush1.msra.mxu0 %v37
  %3471 = vmatprep.subr.mxu0 0.0
  %3472 = vmatpush1.msra.mxu0 %v38
  %3473 = vmatprep.subr.mxu0 0.0
  %3474 = vmatpush1.msra.mxu0 0.0
  %3475 = vmatprep.subr.mxu0 0.0
  %3476 = vmatpush1.msra.mxu0 0.0
  %3477 = vmatprep.subr.mxu0 0.0
  %3478 = vmatpush1.msra.mxu0 0.0
  %3479 = vmatprep.subr.mxu0 0.0
  %3480 = vmatpush1.msra.mxu0 0.0
  %3481 = vmatprep.subr.mxu0 0.0
  %3482 = vmatpush1.msra.mxu0 0.0
  %3483 = vmatprep.subr.mxu0 0.0
  %3484 = vmatpush1.msra.mxu0 0.0
  %3485 = vmatprep.subr.mxu0 0.0
  %3486 = vmatpush1.msra.mxu0 0.0
  %3487 = vmatprep.subr.mxu0 0.0
  %3488 = vmatpush1.msra.mxu0 0.0
  %3489 = vmatprep.subr.mxu0 0.0
  %3490 = vmatpush1.msra.mxu0 0.0
  %3491 = vmatprep.subr.mxu0 0.0
  %3492 = vmatpush1.msra.mxu0 0.0
  %3493 = vmatprep.subr.mxu0 0.0
  %3494 = vmatpush1.msra.mxu0 0.0
  %3495 = vmatprep.subr.mxu0 0.0
  %3496 = vmatpush1.msra.mxu0 0.0
  %3497 = vmatprep.subr.mxu0 0.0
  %3498 = vmatpush1.msra.mxu0 0.0
  %3499 = vmatprep.subr.mxu0 0.0
  %3500 = vmatpush1.msra.mxu0 0.0
  %3501 = vmatprep.subr.mxu0 0.0
  %3502 = vmatpush1.msra.mxu0 0.0
  %3503 = vmatprep.subr.mxu0 0.0
  %3504 = vmatpush1.msra.mxu0 0.0
  %3505 = vmatprep.subr.mxu0 0.0
  %3506 = vmatpush1.msra.mxu0 0.0
  %3507 = vmatprep.subr.mxu0 0.0
  %3508 = vmatpush1.msra.mxu0 0.0
  %3509 = vmatprep.subr.mxu0 0.0
  %3510 = vmatpush1.msra.mxu0 0.0
  %3511 = vmatprep.subr.mxu0 0.0
  %3512 = vmatpush1.msra.mxu0 0.0
  %3513 = vmatprep.subr.mxu0 0.0
  %3514 = vmatpush1.msra.mxu0 0.0
  %3515 = vmatprep.subr.mxu0 0.0
  %3516 = vmatpush1.msra.mxu0 0.0
  %3517 = vmatprep.subr.mxu0 0.0
  %3518 = vmatpush1.msra.mxu0 0.0
  %3519 = vmatprep.subr.mxu0 0.0
  %3520 = vmatpush1.msra.mxu0 0.0
  %3521 = vmatprep.subr.mxu0 0.0
  %3522 = vmatpush1.msra.mxu0 0.0
  %3523 = vmatprep.subr.mxu0 0.0
  %3524 = vmatpush1.msra.mxu0 0.0
  %3525 = vmatprep.subr.mxu0 0.0
  %3526 = vmatpush1.msra.mxu0 0.0
  %3527 = vmatprep.subr.mxu0 0.0
  %3528 = vmatpush1.msra.mxu0 0.0
  %3529 = vmatprep.mubr.f32.mxu0 0.0
  %3530 = vmatmul.mubr.f32.gmra.mrb[0].mxu0 %v3460
  %v3531 = vpop.f32.mrb[0].mxu0
  %v3532 = vadd.f32 0.0, %v3531
  %v3533 = vpop.f32.mrb[0].mxu0
  %3534 = vmatprep.mubr.f32.mxu0 0.0
  %3535 = vmatmul.mubr.f32.gmra.mrb[0].mxu0 %v3463
  %v3536 = vpop.f32.mrb[0].mxu0
  %v3537 = vadd.f32 0.0, %v3536
  %v3538 = vpop.f32.mrb[0].mxu0
  %3539 = vdwg.mxu0
  %v3541 = vsel %vm68, %v3455, 0
  %v3544 = vsel %vm68, %v3456, 0
  %3546 = vmatprep.subr.mxu0 0.0
  %3547 = vmatpush1.msra.mxu0 %v31
  %3548 = vmatprep.subr.mxu0 0.0
  %3549 = vmatpush1.msra.mxu0 %v32
  %3550 = vmatprep.subr.mxu0 0.0
  %3551 = vmatpush1.msra.mxu0 %v33
  %3552 = vmatprep.subr.mxu0 0.0
  %3553 = vmatpush1.msra.mxu0 %v34
  %3554 = vmatprep.subr.mxu0 0.0
  %3555 = vmatpush1.msra.mxu0 0.0
  %3556 = vmatprep.subr.mxu0 0.0
  %3557 = vmatpush1.msra.mxu0 0.0
  %3558 = vmatprep.subr.mxu0 0.0
  %3559 = vmatpush1.msra.mxu0 0.0
  %3560 = vmatprep.subr.mxu0 0.0
  %3561 = vmatpush1.msra.mxu0 0.0
  %3562 = vmatprep.subr.mxu0 0.0
  %3563 = vmatpush1.msra.mxu0 0.0
  %3564 = vmatprep.subr.mxu0 0.0
  %3565 = vmatpush1.msra.mxu0 0.0
  %3566 = vmatprep.subr.mxu0 0.0
  %3567 = vmatpush1.msra.mxu0 0.0
  %3568 = vmatprep.subr.mxu0 0.0
  %3569 = vmatpush1.msra.mxu0 0.0
  %3570 = vmatprep.subr.mxu0 0.0
  %3571 = vmatpush1.msra.mxu0 0.0
  %3572 = vmatprep.subr.mxu0 0.0
  %3573 = vmatpush1.msra.mxu0 0.0
  %3574 = vmatprep.subr.mxu0 0.0
  %3575 = vmatpush1.msra.mxu0 0.0
  %3576 = vmatprep.subr.mxu0 0.0
  %3577 = vmatpush1.msra.mxu0 0.0
  %3578 = vmatprep.subr.mxu0 0.0
  %3579 = vmatpush1.msra.mxu0 0.0
  %3580 = vmatprep.subr.mxu0 0.0
  %3581 = vmatpush1.msra.mxu0 0.0
  %3582 = vmatprep.subr.mxu0 0.0
  %3583 = vmatpush1.msra.mxu0 0.0
  %3584 = vmatprep.subr.mxu0 0.0
  %3585 = vmatpush1.msra.mxu0 0.0
  %3586 = vmatprep.subr.mxu0 0.0
  %3587 = vmatpush1.msra.mxu0 0.0
  %3588 = vmatprep.subr.mxu0 0.0
  %3589 = vmatpush1.msra.mxu0 0.0
  %3590 = vmatprep.subr.mxu0 0.0
  %3591 = vmatpush1.msra.mxu0 0.0
  %3592 = vmatprep.subr.mxu0 0.0
  %3593 = vmatpush1.msra.mxu0 0.0
  %3594 = vmatprep.subr.mxu0 0.0
  %3595 = vmatpush1.msra.mxu0 0.0
  %3596 = vmatprep.subr.mxu0 0.0
  %3597 = vmatpush1.msra.mxu0 0.0
  %3598 = vmatprep.subr.mxu0 0.0
  %3599 = vmatpush1.msra.mxu0 0.0
  %3600 = vmatprep.subr.mxu0 0.0
  %3601 = vmatpush1.msra.mxu0 0.0
  %3602 = vmatprep.subr.mxu0 0.0
  %3603 = vmatpush1.msra.mxu0 0.0
  %3604 = vmatprep.subr.mxu0 0.0
  %3605 = vmatpush1.msra.mxu0 0.0
  %3606 = vmatprep.subr.mxu0 0.0
  %3607 = vmatpush1.msra.mxu0 0.0
  %3608 = vmatprep.subr.mxu0 0.0
  %3609 = vmatpush1.msra.mxu0 0.0
  %3610 = vmatprep.mubr.f32.mxu0 0.0
  %3611 = vmatmul.mubr.f32.gmra.mrb[0].mxu0 %v3541
  %v3612 = vpop.f32.mrb[0].mxu0
  %v3613 = vadd.f32 %v3532, %v3612
  %v3614 = vpop.f32.mrb[0].mxu0
  %3615 = vmatprep.mubr.f32.mxu0 0.0
  %3616 = vmatmul.mubr.f32.gmra.mrb[0].mxu0 %v3544
  %v3617 = vpop.f32.mrb[0].mxu0
  %v3618 = vadd.f32 %v3537, %v3617
  %v3619 = vpop.f32.mrb[0].mxu0
  %3620 = vdwg.mxu0
  %3621 = vmatprep.subr.mxu0 0.0
  %3622 = vmatpush1.msra.mxu0 %v39
  %3623 = vmatprep.subr.mxu0 0.0
  %3624 = vmatpush1.msra.mxu0 %v40
  %3625 = vmatprep.subr.mxu0 0.0
  %3626 = vmatpush1.msra.mxu0 0.0
  %3627 = vmatprep.subr.mxu0 0.0
  %3628 = vmatpush1.msra.mxu0 0.0
  %3629 = vmatprep.subr.mxu0 0.0
  %3630 = vmatpush1.msra.mxu0 0.0
  %3631 = vmatprep.subr.mxu0 0.0
  %3632 = vmatpush1.msra.mxu0 0.0
  %3633 = vmatprep.subr.mxu0 0.0
  %3634 = vmatpush1.msra.mxu0 0.0
  %3635 = vmatprep.subr.mxu0 0.0
  %3636 = vmatpush1.msra.mxu0 0.0
  %3637 = vmatprep.subr.mxu0 0.0
  %3638 = vmatpush1.msra.mxu0 0.0
  %3639 = vmatprep.subr.mxu0 0.0
  %3640 = vmatpush1.msra.mxu0 0.0
  %3641 = vmatprep.subr.mxu0 0.0
  %3642 = vmatpush1.msra.mxu0 0.0
  %3643 = vmatprep.subr.mxu0 0.0
  %3644 = vmatpush1.msra.mxu0 0.0
  %3645 = vmatprep.subr.mxu0 0.0
  %3646 = vmatpush1.msra.mxu0 0.0
  %3647 = vmatprep.subr.mxu0 0.0
  %3648 = vmatpush1.msra.mxu0 0.0
  %3649 = vmatprep.subr.mxu0 0.0
  %3650 = vmatpush1.msra.mxu0 0.0
  %3651 = vmatprep.subr.mxu0 0.0
  %3652 = vmatpush1.msra.mxu0 0.0
  %3653 = vmatprep.subr.mxu0 0.0
  %3654 = vmatpush1.msra.mxu0 0.0
  %3655 = vmatprep.subr.mxu0 0.0
  %3656 = vmatpush1.msra.mxu0 0.0
  %3657 = vmatprep.subr.mxu0 0.0
  %3658 = vmatpush1.msra.mxu0 0.0
  %3659 = vmatprep.subr.mxu0 0.0
  %3660 = vmatpush1.msra.mxu0 0.0
  %3661 = vmatprep.subr.mxu0 0.0
  %3662 = vmatpush1.msra.mxu0 0.0
  %3663 = vmatprep.subr.mxu0 0.0
  %3664 = vmatpush1.msra.mxu0 0.0
  %3665 = vmatprep.subr.mxu0 0.0
  %3666 = vmatpush1.msra.mxu0 0.0
  %3667 = vmatprep.subr.mxu0 0.0
  %3668 = vmatpush1.msra.mxu0 0.0
  %3669 = vmatprep.subr.mxu0 0.0
  %3670 = vmatpush1.msra.mxu0 0.0
  %3671 = vmatprep.subr.mxu0 0.0
  %3672 = vmatpush1.msra.mxu0 0.0
  %3673 = vmatprep.subr.mxu0 0.0
  %3674 = vmatpush1.msra.mxu0 0.0
  %3675 = vmatprep.subr.mxu0 0.0
  %3676 = vmatpush1.msra.mxu0 0.0
  %3677 = vmatprep.subr.mxu0 0.0
  %3678 = vmatpush1.msra.mxu0 0.0
  %3679 = vmatprep.subr.mxu0 0.0
  %3680 = vmatpush1.msra.mxu0 0.0
  %3681 = vmatprep.subr.mxu0 0.0
  %3682 = vmatpush1.msra.mxu0 0.0
  %3683 = vmatprep.subr.mxu0 0.0
  %3684 = vmatpush1.msra.mxu0 0.0
  %3685 = vmatprep.mubr.f32.mxu0 0.0
  %3686 = vmatmul.mubr.f32.gmra.mrb[0].mxu0 %v3218
  %v3687 = vpop.f32.mrb[0].mxu0
  %v3688 = vadd.f32 0.0, %v3687
  %v3689 = vpop.f32.mrb[0].mxu0
  %3690 = vmatprep.mubr.f32.mxu0 0.0
  %3691 = vmatmul.mubr.f32.gmra.mrb[0].mxu0 %v3221
  %v3692 = vpop.f32.mrb[0].mxu0
  %v3693 = vadd.f32 0.0, %v3692
  %v3694 = vpop.f32.mrb[0].mxu0
  %3695 = vmatprep.mubr.f32.mxu0 0.0
  %3696 = vmatmul.mubr.f32.gmra.mrb[0].mxu0 %v3224
  %v3697 = vpop.f32.mrb[0].mxu0
  %v3698 = vadd.f32 0.0, %v3697
  %v3699 = vpop.f32.mrb[0].mxu0
  %3700 = vmatprep.mubr.f32.mxu0 0.0
  %3701 = vmatmul.mubr.f32.gmra.mrb[0].mxu0 %v3227
  %v3702 = vpop.f32.mrb[0].mxu0
  %v3703 = vadd.f32 0.0, %v3702
  %v3704 = vpop.f32.mrb[0].mxu0
  %3705 = vmatprep.mubr.f32.mxu0 0.0
  %3706 = vmatmul.mubr.f32.gmra.mrb[0].mxu0 %v3230
  %v3707 = vpop.f32.mrb[0].mxu0
  %v3708 = vadd.f32 0.0, %v3707
  %v3709 = vpop.f32.mrb[0].mxu0
  %3710 = vmatprep.mubr.f32.mxu0 0.0
  %3711 = vmatmul.mubr.f32.gmra.mrb[0].mxu0 %v3233
  %v3712 = vpop.f32.mrb[0].mxu0
  %v3713 = vadd.f32 0.0, %v3712
  %v3714 = vpop.f32.mrb[0].mxu0
  %3715 = vmatprep.mubr.f32.mxu0 0.0
  %3716 = vmatmul.mubr.f32.gmra.mrb[0].mxu0 %v3236
  %v3717 = vpop.f32.mrb[0].mxu0
  %v3718 = vadd.f32 0.0, %v3717
  %v3719 = vpop.f32.mrb[0].mxu0
  %3720 = vmatprep.mubr.f32.mxu0 0.0
  %3721 = vmatmul.mubr.f32.gmra.mrb[0].mxu0 %v3239
  %v3722 = vpop.f32.mrb[0].mxu0
  %v3723 = vadd.f32 0.0, %v3722
  %v3724 = vpop.f32.mrb[0].mxu0
  %3725 = vdwg.mxu0
  %3726 = vmatprep.subr.mxu0 0.0
  %3727 = vmatpush1.msra.mxu0 %v3613
  %3728 = vmatprep.subr.mxu0 0.0
  %3729 = vmatpush1.msra.mxu0 %v3618
  %3730 = vmatprep.subr.mxu0 0.0
  %3731 = vmatpush1.msra.mxu0 0.0
  %3732 = vmatprep.subr.mxu0 0.0
  %3733 = vmatpush1.msra.mxu0 0.0
  %3734 = vmatprep.subr.mxu0 0.0
  %3735 = vmatpush1.msra.mxu0 0.0
  %3736 = vmatprep.subr.mxu0 0.0
  %3737 = vmatpush1.msra.mxu0 0.0
  %3738 = vmatprep.subr.mxu0 0.0
  %3739 = vmatpush1.msra.mxu0 0.0
  %3740 = vmatprep.subr.mxu0 0.0
  %3741 = vmatpush1.msra.mxu0 0.0
  %3742 = vmatprep.subr.mxu0 0.0
  %3743 = vmatpush1.msra.mxu0 0.0
  %3744 = vmatprep.subr.mxu0 0.0
  %3745 = vmatpush1.msra.mxu0 0.0
  %3746 = vmatprep.subr.mxu0 0.0
  %3747 = vmatpush1.msra.mxu0 0.0
  %3748 = vmatprep.subr.mxu0 0.0
  %3749 = vmatpush1.msra.mxu0 0.0
  %3750 = vmatprep.subr.mxu0 0.0
  %3751 = vmatpush1.msra.mxu0 0.0
  %3752 = vmatprep.subr.mxu0 0.0
  %3753 = vmatpush1.msra.mxu0 0.0
  %3754 = vmatprep.subr.mxu0 0.0
  %3755 = vmatpush1.msra.mxu0 0.0
  %3756 = vmatprep.subr.mxu0 0.0
  %3757 = vmatpush1.msra.mxu0 0.0
  %3758 = vmatprep.subr.mxu0 0.0
  %3759 = vmatpush1.msra.mxu0 0.0
  %3760 = vmatprep.subr.mxu0 0.0
  %3761 = vmatpush1.msra.mxu0 0.0
  %3762 = vmatprep.subr.mxu0 0.0
  %3763 = vmatpush1.msra.mxu0 0.0
  %3764 = vmatprep.subr.mxu0 0.0
  %3765 = vmatpush1.msra.mxu0 0.0
  %3766 = vmatprep.subr.mxu0 0.0
  %3767 = vmatpush1.msra.mxu0 0.0
  %3768 = vmatprep.subr.mxu0 0.0
  %3769 = vmatpush1.msra.mxu0 0.0
  %3770 = vmatprep.subr.mxu0 0.0
  %3771 = vmatpush1.msra.mxu0 0.0
  %3772 = vmatprep.subr.mxu0 0.0
  %3773 = vmatpush1.msra.mxu0 0.0
  %3774 = vmatprep.subr.mxu0 0.0
  %3775 = vmatpush1.msra.mxu0 0.0
  %3776 = vmatprep.subr.mxu0 0.0
  %3777 = vmatpush1.msra.mxu0 0.0
  %3778 = vmatprep.subr.mxu0 0.0
  %3779 = vmatpush1.msra.mxu0 0.0
  %3780 = vmatprep.subr.mxu0 0.0
  %3781 = vmatpush1.msra.mxu0 0.0
  %3782 = vmatprep.subr.mxu0 0.0
  %3783 = vmatpush1.msra.mxu0 0.0
  %3784 = vmatprep.subr.mxu0 0.0
  %3785 = vmatpush1.msra.mxu0 0.0
  %3786 = vmatprep.subr.mxu0 0.0
  %3787 = vmatpush1.msra.mxu0 0.0
  %3788 = vmatprep.subr.mxu0 0.0
  %3789 = vmatpush1.msra.mxu0 0.0
  %3790 = vmatprep.mubr.f32.mxu0 0.0
  %3791 = vmatmul.mubr.f32.gmra.mrb[0].mxu0 %v532
  %v3792 = vpop.f32.mrb[0].mxu0
  %v3793 = vadd.f32 %v3688, %v3792
  %v3794 = vpop.f32.mrb[0].mxu0
  %3795 = vmatprep.mubr.f32.mxu0 0.0
  %3796 = vmatmul.mubr.f32.gmra.mrb[0].mxu0 %v534
  %v3797 = vpop.f32.mrb[0].mxu0
  %v3798 = vadd.f32 %v3693, %v3797
  %v3799 = vpop.f32.mrb[0].mxu0
  %3800 = vmatprep.mubr.f32.mxu0 0.0
  %3801 = vmatmul.mubr.f32.gmra.mrb[0].mxu0 %v536
  %v3802 = vpop.f32.mrb[0].mxu0
  %v3803 = vadd.f32 %v3698, %v3802
  %v3804 = vpop.f32.mrb[0].mxu0
  %3805 = vmatprep.mubr.f32.mxu0 0.0
  %3806 = vmatmul.mubr.f32.gmra.mrb[0].mxu0 %v538
  %v3807 = vpop.f32.mrb[0].mxu0
  %v3808 = vadd.f32 %v3703, %v3807
  %v3809 = vpop.f32.mrb[0].mxu0
  %3810 = vmatprep.mubr.f32.mxu0 0.0
  %3811 = vmatmul.mubr.f32.gmra.mrb[0].mxu0 %v540
  %v3812 = vpop.f32.mrb[0].mxu0
  %v3813 = vadd.f32 %v3708, %v3812
  %v3814 = vpop.f32.mrb[0].mxu0
  %3815 = vmatprep.mubr.f32.mxu0 0.0
  %3816 = vmatmul.mubr.f32.gmra.mrb[0].mxu0 %v542
  %v3817 = vpop.f32.mrb[0].mxu0
  %v3818 = vadd.f32 %v3713, %v3817
  %v3819 = vpop.f32.mrb[0].mxu0
  %3820 = vmatprep.mubr.f32.mxu0 0.0
  %3821 = vmatmul.mubr.f32.gmra.mrb[0].mxu0 %v544
  %v3822 = vpop.f32.mrb[0].mxu0
  %v3823 = vadd.f32 %v3718, %v3822
  %v3824 = vpop.f32.mrb[0].mxu0
  %3825 = vmatprep.mubr.f32.mxu0 0.0
  %3826 = vmatmul.mubr.f32.gmra.mrb[0].mxu0 %v546
  %v3827 = vpop.f32.mrb[0].mxu0
  %v3828 = vadd.f32 %v3723, %v3827
  %v3829 = vpop.f32.mrb[0].mxu0
  %3830 = vdwg.mxu0
  %v3831 = vadd.f32 %v3793, %v1201
  %v3832 = vadd.f32 %v3798, %v1206
  %v3833 = vadd.f32 %v3803, %v1211
  %v3834 = vadd.f32 %v3808, %v1216
  %v3835 = vadd.f32 %v3813, %v1221
  %v3836 = vadd.f32 %v3818, %v1226
  %v3837 = vadd.f32 %v3823, %v1231
  %v3838 = vadd.f32 %v3828, %v1236
  %v3839 = vmax.f32 %v3831, 0.0
  %v3840 = vmax.f32 %v3832, 0.0
  %v3841 = vmax.f32 %v3833, 0.0
  %v3842 = vmax.f32 %v3834, 0.0
  %v3843 = vmax.f32 %v3835, 0.0
  %v3844 = vmax.f32 %v3836, 0.0
  %v3845 = vmax.f32 %v3837, 0.0
  %v3846 = vmax.f32 %v3838, 0.0
  %v3848 = vsel %vm531, %v3839, 0
  %v3851 = vsel %vm531, %v3840, 0
  %v3854 = vsel %vm531, %v3841, 0
  %v3857 = vsel %vm531, %v3842, 0
  %v3860 = vsel %vm531, %v3843, 0
  %v3863 = vsel %vm531, %v3844, 0
  %v3866 = vsel %vm531, %v3845, 0
  %v3869 = vsel %vm531, %v3846, 0
  %3871 = vmatprep.subr.mxu0 0.0
  %3872 = vmatpush1.msra.mxu0 %v44
  %3873 = vmatprep.subr.mxu0 0.0
  %3874 = vmatpush1.msra.mxu0 %v45
  %3875 = vmatprep.subr.mxu0 0.0
  %3876 = vmatpush1.msra.mxu0 0.0
  %3877 = vmatprep.subr.mxu0 0.0
  %3878 = vmatpush1.msra.mxu0 0.0
  %3879 = vmatprep.subr.mxu0 0.0
  %3880 = vmatpush1.msra.mxu0 0.0
  %3881 = vmatprep.subr.mxu0 0.0
  %3882 = vmatpush1.msra.mxu0 0.0
  %3883 = vmatprep.subr.mxu0 0.0
  %3884 = vmatpush1.msra.mxu0 0.0
  %3885 = vmatprep.subr.mxu0 0.0
  %3886 = vmatpush1.msra.mxu0 0.0
  %3887 = vmatprep.subr.mxu0 0.0
  %3888 = vmatpush1.msra.mxu0 0.0
  %3889 = vmatprep.subr.mxu0 0.0
  %3890 = vmatpush1.msra.mxu0 0.0
  %3891 = vmatprep.subr.mxu0 0.0
  %3892 = vmatpush1.msra.mxu0 0.0
  %3893 = vmatprep.subr.mxu0 0.0
  %3894 = vmatpush1.msra.mxu0 0.0
  %3895 = vmatprep.subr.mxu0 0.0
  %3896 = vmatpush1.msra.mxu0 0.0
  %3897 = vmatprep.subr.mxu0 0.0
  %3898 = vmatpush1.msra.mxu0 0.0
  %3899 = vmatprep.subr.mxu0 0.0
  %3900 = vmatpush1.msra.mxu0 0.0
  %3901 = vmatprep.subr.mxu0 0.0
  %3902 = vmatpush1.msra.mxu0 0.0
  %3903 = vmatprep.subr.mxu0 0.0
  %3904 = vmatpush1.msra.mxu0 0.0
  %3905 = vmatprep.subr.mxu0 0.0
  %3906 = vmatpush1.msra.mxu0 0.0
  %3907 = vmatprep.subr.mxu0 0.0
  %3908 = vmatpush1.msra.mxu0 0.0
  %3909 = vmatprep.subr.mxu0 0.0
  %3910 = vmatpush1.msra.mxu0 0.0
  %3911 = vmatprep.subr.mxu0 0.0
  %3912 = vmatpush1.msra.mxu0 0.0
  %3913 = vmatprep.subr.mxu0 0.0
  %3914 = vmatpush1.msra.mxu0 0.0
  %3915 = vmatprep.subr.mxu0 0.0
  %3916 = vmatpush1.msra.mxu0 0.0
  %3917 = vmatprep.subr.mxu0 0.0
  %3918 = vmatpush1.msra.mxu0 0.0
  %3919 = vmatprep.subr.mxu0 0.0
  %3920 = vmatpush1.msra.mxu0 0.0
  %3921 = vmatprep.subr.mxu0 0.0
  %3922 = vmatpush1.msra.mxu0 0.0
  %3923 = vmatprep.subr.mxu0 0.0
  %3924 = vmatpush1.msra.mxu0 0.0
  %3925 = vmatprep.subr.mxu0 0.0
  %3926 = vmatpush1.msra.mxu0 0.0
  %3927 = vmatprep.subr.mxu0 0.0
  %3928 = vmatpush1.msra.mxu0 0.0
  %3929 = vmatprep.subr.mxu0 0.0
  %3930 = vmatpush1.msra.mxu0 0.0
  %3931 = vmatprep.subr.mxu0 0.0
  %3932 = vmatpush1.msra.mxu0 0.0
  %3933 = vmatprep.subr.mxu0 0.0
  %3934 = vmatpush1.msra.mxu0 0.0
  %3935 = vmatprep.mubr.f32.mxu0 0.0
  %3936 = vmatmul.mubr.f32.gmra.mrb[0].mxu0 %v3848
  %v3937 = vpop.f32.mrb[0].mxu0
  %v3938 = vadd.f32 %v1636, %v3937
  %v3939 = vpop.f32.mrb[0].mxu0
  %3940 = vmatprep.mubr.f32.mxu0 0.0
  %3941 = vmatmul.mubr.f32.gmra.mrb[0].mxu0 %v3851
  %v3942 = vpop.f32.mrb[0].mxu0
  %v3943 = vadd.f32 %v1636, %v3942
  %v3944 = vpop.f32.mrb[0].mxu0
  %3945 = vmatprep.mubr.f32.mxu0 0.0
  %3946 = vmatmul.mubr.f32.gmra.mrb[0].mxu0 %v3854
  %v3947 = vpop.f32.mrb[0].mxu0
  %v3948 = vadd.f32 %v1636, %v3947
  %v3949 = vpop.f32.mrb[0].mxu0
  %3950 = vmatprep.mubr.f32.mxu0 0.0
  %3951 = vmatmul.mubr.f32.gmra.mrb[0].mxu0 %v3857
  %v3952 = vpop.f32.mrb[0].mxu0
  %v3953 = vadd.f32 %v1636, %v3952
  %v3954 = vpop.f32.mrb[0].mxu0
  %3955 = vmatprep.mubr.f32.mxu0 0.0
  %3956 = vmatmul.mubr.f32.gmra.mrb[0].mxu0 %v3860
  %v3957 = vpop.f32.mrb[0].mxu0
  %v3958 = vadd.f32 %v1636, %v3957
  %v3959 = vpop.f32.mrb[0].mxu0
  %3960 = vmatprep.mubr.f32.mxu0 0.0
  %3961 = vmatmul.mubr.f32.gmra.mrb[0].mxu0 %v3863
  %v3962 = vpop.f32.mrb[0].mxu0
  %v3963 = vadd.f32 %v1636, %v3962
  %v3964 = vpop.f32.mrb[0].mxu0
  %3965 = vmatprep.mubr.f32.mxu0 0.0
  %3966 = vmatmul.mubr.f32.gmra.mrb[0].mxu0 %v3866
  %v3967 = vpop.f32.mrb[0].mxu0
  %v3968 = vadd.f32 %v1636, %v3967
  %v3969 = vpop.f32.mrb[0].mxu0
  %3970 = vmatprep.mubr.f32.mxu0 0.0
  %3971 = vmatmul.mubr.f32.gmra.mrb[0].mxu0 %v3869
  %v3972 = vpop.f32.mrb[0].mxu0
  %v3973 = vadd.f32 %v1636, %v3972
  %v3974 = vpop.f32.mrb[0].mxu0
  %3975 = vdwg.mxu0
  %v3976 = vmax.f32 %v3938, 0.0
  %v3977 = vmax.f32 %v3943, 0.0
  %v3978 = vmax.f32 %v3948, 0.0
  %v3979 = vmax.f32 %v3953, 0.0
  %v3980 = vmax.f32 %v3958, 0.0
  %v3981 = vmax.f32 %v3963, 0.0
  %v3982 = vmax.f32 %v3968, 0.0
  %v3983 = vmax.f32 %v3973, 0.0
  %v3985 = vsel %vm531, %v3976, 0
  %v3988 = vsel %vm531, %v3977, 0
  %v3991 = vsel %vm531, %v3978, 0
  %v3994 = vsel %vm531, %v3979, 0
  %v3997 = vsel %vm531, %v3980, 0
  %v4000 = vsel %vm531, %v3981, 0
  %v4003 = vsel %vm531, %v3982, 0
  %v4006 = vsel %vm531, %v3983, 0
  %4008 = vmatprep.subr.mxu0 0.0
  %4009 = vmatpush1.msra.mxu0 %v59
  %4010 = vmatprep.subr.mxu0 0.0
  %4011 = vmatpush1.msra.mxu0 %v60
  %4012 = vmatprep.subr.mxu0 0.0
  %4013 = vmatpush1.msra.mxu0 0.0
  %4014 = vmatprep.subr.mxu0 0.0
  %4015 = vmatpush1.msra.mxu0 0.0
  %4016 = vmatprep.subr.mxu0 0.0
  %4017 = vmatpush1.msra.mxu0 0.0
  %4018 = vmatprep.subr.mxu0 0.0
  %4019 = vmatpush1.msra.mxu0 0.0
  %4020 = vmatprep.subr.mxu0 0.0
  %4021 = vmatpush1.msra.mxu0 0.0
  %4022 = vmatprep.subr.mxu0 0.0
  %4023 = vmatpush1.msra.mxu0 0.0
  %4024 = vmatprep.subr.mxu0 0.0
  %4025 = vmatpush1.msra.mxu0 0.0
  %4026 = vmatprep.subr.mxu0 0.0
  %4027 = vmatpush1.msra.mxu0 0.0
  %4028 = vmatprep.subr.mxu0 0.0
  %4029 = vmatpush1.msra.mxu0 0.0
  %4030 = vmatprep.subr.mxu0 0.0
  %4031 = vmatpush1.msra.mxu0 0.0
  %4032 = vmatprep.subr.mxu0 0.0
  %4033 = vmatpush1.msra.mxu0 0.0
  %4034 = vmatprep.subr.mxu0 0.0
  %4035 = vmatpush1.msra.mxu0 0.0
  %4036 = vmatprep.subr.mxu0 0.0
  %4037 = vmatpush1.msra.mxu0 0.0
  %4038 = vmatprep.subr.mxu0 0.0
  %4039 = vmatpush1.msra.mxu0 0.0
  %4040 = vmatprep.subr.mxu0 0.0
  %4041 = vmatpush1.msra.mxu0 0.0
  %4042 = vmatprep.subr.mxu0 0.0
  %4043 = vmatpush1.msra.mxu0 0.0
  %4044 = vmatprep.subr.mxu0 0.0
  %4045 = vmatpush1.msra.mxu0 0.0
  %4046 = vmatprep.subr.mxu0 0.0
  %4047 = vmatpush1.msra.mxu0 0.0
  %4048 = vmatprep.subr.mxu0 0.0
  %4049 = vmatpush1.msra.mxu0 0.0
  %4050 = vmatprep.subr.mxu0 0.0
  %4051 = vmatpush1.msra.mxu0 0.0
  %4052 = vmatprep.subr.mxu0 0.0
  %4053 = vmatpush1.msra.mxu0 0.0
  %4054 = vmatprep.subr.mxu0 0.0
  %4055 = vmatpush1.msra.mxu0 0.0
  %4056 = vmatprep.subr.mxu0 0.0
  %4057 = vmatpush1.msra.mxu0 0.0
  %4058 = vmatprep.subr.mxu0 0.0
  %4059 = vmatpush1.msra.mxu0 0.0
  %4060 = vmatprep.subr.mxu0 0.0
  %4061 = vmatpush1.msra.mxu0 0.0
  %4062 = vmatprep.subr.mxu0 0.0
  %4063 = vmatpush1.msra.mxu0 0.0
  %4064 = vmatprep.subr.mxu0 0.0
  %4065 = vmatpush1.msra.mxu0 0.0
  %4066 = vmatprep.subr.mxu0 0.0
  %4067 = vmatpush1.msra.mxu0 0.0
  %4068 = vmatprep.subr.mxu0 0.0
  %4069 = vmatpush1.msra.mxu0 0.0
  %4070 = vmatprep.subr.mxu0 0.0
  %4071 = vmatpush1.msra.mxu0 0.0
  %4072 = vmatprep.mubr.f32.mxu0 0.0
  %4073 = vmatmul.mubr.f32.gmra.mrb[0].mxu0 %v3985
  %v4074 = vpop.f32.mrb[0].mxu0
  %v4075 = vadd.f32 %v2116, %v4074
  %v4076 = vpop.f32.mrb[0].mxu0
  %4077 = vmatprep.mubr.f32.mxu0 0.0
  %4078 = vmatmul.mubr.f32.gmra.mrb[0].mxu0 %v3988
  %v4079 = vpop.f32.mrb[0].mxu0
  %v4080 = vadd.f32 %v2116, %v4079
  %v4081 = vpop.f32.mrb[0].mxu0
  %4082 = vmatprep.mubr.f32.mxu0 0.0
  %4083 = vmatmul.mubr.f32.gmra.mrb[0].mxu0 %v3991
  %v4084 = vpop.f32.mrb[0].mxu0
  %v4085 = vadd.f32 %v2116, %v4084
  %v4086 = vpop.f32.mrb[0].mxu0
  %4087 = vmatprep.mubr.f32.mxu0 0.0
  %4088 = vmatmul.mubr.f32.gmra.mrb[0].mxu0 %v3994
  %v4089 = vpop.f32.mrb[0].mxu0
  %v4090 = vadd.f32 %v2116, %v4089
  %v4091 = vpop.f32.mrb[0].mxu0
  %4092 = vmatprep.mubr.f32.mxu0 0.0
  %4093 = vmatmul.mubr.f32.gmra.mrb[0].mxu0 %v3997
  %v4094 = vpop.f32.mrb[0].mxu0
  %v4095 = vadd.f32 %v2116, %v4094
  %v4096 = vpop.f32.mrb[0].mxu0
  %4097 = vmatprep.mubr.f32.mxu0 0.0
  %4098 = vmatmul.mubr.f32.gmra.mrb[0].mxu0 %v4000
  %v4099 = vpop.f32.mrb[0].mxu0
  %v4100 = vadd.f32 %v2116, %v4099
  %v4101 = vpop.f32.mrb[0].mxu0
  %4102 = vmatprep.mubr.f32.mxu0 0.0
  %4103 = vmatmul.mubr.f32.gmra.mrb[0].mxu0 %v4003
  %v4104 = vpop.f32.mrb[0].mxu0
  %v4105 = vadd.f32 %v2116, %v4104
  %v4106 = vpop.f32.mrb[0].mxu0
  %4107 = vmatprep.mubr.f32.mxu0 0.0
  %4108 = vmatmul.mubr.f32.gmra.mrb[0].mxu0 %v4006
  %v4109 = vpop.f32.mrb[0].mxu0
  %v4110 = vadd.f32 %v2116, %v4109
  %v4111 = vpop.f32.mrb[0].mxu0
  %4112 = vdwg.mxu0
  %v4113 = vmax.f32 %v4075, 0.0
  %v4114 = vmax.f32 %v4080, 0.0
  %v4115 = vmax.f32 %v4085, 0.0
  %v4116 = vmax.f32 %v4090, 0.0
  %v4117 = vmax.f32 %v4095, 0.0
  %v4118 = vmax.f32 %v4100, 0.0
  %v4119 = vmax.f32 %v4105, 0.0
  %v4120 = vmax.f32 %v4110, 0.0
  %v4122 = vsel %vm531, %v4113, 0
  %v4125 = vsel %vm531, %v4114, 0
  %v4128 = vsel %vm531, %v4115, 0
  %v4131 = vsel %vm531, %v4116, 0
  %v4134 = vsel %vm531, %v4117, 0
  %v4137 = vsel %vm531, %v4118, 0
  %v4140 = vsel %vm531, %v4119, 0
  %v4143 = vsel %vm531, %v4120, 0
  %4145 = vmatprep.subr.mxu0 0.0
  %4146 = vmatpush1.xpose.msra.mxu0 %v4122
  %4147 = vmatprep.subr.mxu0 0.0
  %4148 = vmatpush1.xpose.msra.mxu0 %v4125
  %4149 = vmatprep.subr.mxu0 0.0
  %4150 = vmatpush1.xpose.msra.mxu0 %v4128
  %4151 = vmatprep.subr.mxu0 0.0
  %4152 = vmatpush1.xpose.msra.mxu0 %v4131
  %4153 = vmatprep.subr.mxu0 0.0
  %4154 = vmatpush1.xpose.msra.mxu0 %v4134
  %4155 = vmatprep.subr.mxu0 0.0
  %4156 = vmatpush1.xpose.msra.mxu0 %v4137
  %4157 = vmatprep.subr.mxu0 0.0
  %4158 = vmatpush1.xpose.msra.mxu0 %v4140
  %4159 = vmatprep.subr.mxu0 0.0
  %4160 = vmatpush1.xpose.msra.mxu0 %v4143
  %4161 = vmatprep.subr.mxu0 0.0
  %4162 = vmatpush1.xpose.msra.mxu0 0.0
  %4163 = vmatprep.subr.mxu0 0.0
  %4164 = vmatpush1.xpose.msra.mxu0 0.0
  %4165 = vmatprep.subr.mxu0 0.0
  %4166 = vmatpush1.xpose.msra.mxu0 0.0
  %4167 = vmatprep.subr.mxu0 0.0
  %4168 = vmatpush1.xpose.msra.mxu0 0.0
  %4169 = vmatprep.subr.mxu0 0.0
  %4170 = vmatpush1.xpose.msra.mxu0 0.0
  %4171 = vmatprep.subr.mxu0 0.0
  %4172 = vmatpush1.xpose.msra.mxu0 0.0
  %4173 = vmatprep.subr.mxu0 0.0
  %4174 = vmatpush1.xpose.msra.mxu0 0.0
  %4175 = vmatprep.subr.mxu0 0.0
  %4176 = vmatpush1.xpose.msra.mxu0 0.0
  %4177 = vmatprep.subr.mxu0 0.0
  %4178 = vmatpush1.xpose.msra.mxu0 0.0
  %4179 = vmatprep.subr.mxu0 0.0
  %4180 = vmatpush1.xpose.msra.mxu0 0.0
  %4181 = vmatprep.subr.mxu0 0.0
  %4182 = vmatpush1.xpose.msra.mxu0 0.0
  %4183 = vmatprep.subr.mxu0 0.0
  %4184 = vmatpush1.xpose.msra.mxu0 0.0
  %4185 = vmatprep.subr.mxu0 0.0
  %4186 = vmatpush1.xpose.msra.mxu0 0.0
  %4187 = vmatprep.subr.mxu0 0.0
  %4188 = vmatpush1.xpose.msra.mxu0 0.0
  %4189 = vmatprep.subr.mxu0 0.0
  %4190 = vmatpush1.xpose.msra.mxu0 0.0
  %4191 = vmatprep.subr.mxu0 0.0
  %4192 = vmatpush1.xpose.msra.mxu0 0.0
  %4193 = vmatprep.subr.mxu0 0.0
  %4194 = vmatpush1.xpose.msra.mxu0 0.0
  %4195 = vmatprep.subr.mxu0 0.0
  %4196 = vmatpush1.xpose.msra.mxu0 0.0
  %4197 = vmatprep.subr.mxu0 0.0
  %4198 = vmatpush1.xpose.msra.mxu0 0.0
  %4199 = vmatprep.subr.mxu0 0.0
  %4200 = vmatpush1.xpose.msra.mxu0 0.0
  %4201 = vmatprep.subr.mxu0 0.0
  %4202 = vmatpush1.xpose.msra.mxu0 0.0
  %4203 = vmatprep.subr.mxu0 0.0
  %4204 = vmatpush1.xpose.msra.mxu0 0.0
  %4205 = vmatprep.subr.mxu0 0.0
  %4206 = vmatpush1.xpose.msra.mxu0 0.0
  %4207 = vmatprep.subr.mxu0 0.0
  %4208 = vmatpush1.xpose.msra.mxu0 0.0
  %4209 = vmatprep.mubr.f32.mxu0 0.0
  %4210 = vmatmul.mubr.f32.gmra.mrb[0].mxu0 %v2260
  %v4211 = vpop.f32.mrb[0].mxu0
  %v4212 = vadd.f32 %v2257, %v4211
  %v4213 = vpop.f32.mrb[0].mxu0
  %4214 = vdwg.mxu0
  %v4215 = vxor.u32 %v4212, 2147483648
  %v4216 = vmul.f32 %v4215, 1.442695
  %v4217 = vpow.pop %v4216
  %v4218 = vadd.f32 %v4217, 1.0
  %v4219 = vrcp.pop %v4218
  %v4220 = vmul.f32 1.0, %v4219
  %4221 = vst.msk [vmem:[%s2 + $0x2] sm:$0x1] %vm2362, %v4220
  // Predicated region
  $region10: #{assignment_similarity_net.1} parent=0 // pred_check
    _
  $region11: #{assignment_similarity_net.1} parent=0 // pred_check_branch
    %4223 = sbr.rel (0) target = $region13
  $region12: #{assignment_similarity_net.1} parent=0 // pred_region
    _
  $region13: #{assignment_similarity_net.1} parent=0 // pred_fallthru
    _
  // Predicated region
  $region14: #{assignment_similarity_net.1} parent=0 // pred_check
    _
  $region15: #{assignment_similarity_net.1} parent=0 // pred_check_branch
    %4225 = sbr.rel (0) target = $region17
  $region16: #{assignment_similarity_net.1} parent=0 // pred_region
    _
  $region17: #{assignment_similarity_net.1} parent=0 // pred_fallthru
    _

</llo_original>
